<compile_context>
chip_gen: v6e
topology: v6e:2x2x1
jax: 0.10.0
libtpu: 0.0.40
codegen_flags: <defaults>
</compile_context>

<pallas_src>
import functools

import jax
import jax.numpy as jnp
from jax import lax
from jax.experimental import pallas as pl
from jax.experimental.pallas import tpu as pltpu

_LN_EPS = 1e-5


# ------------------------------- fused kernel --------------------------------

def _decoder_block_kernel(
    x_ref, kvc_ref, enc_ref,
    a1_wqv_ref, a1_bqv_ref, a1_wk_ref, a1_bk_ref, a1_wo_ref, a1_bo_ref,
    a2_wqv_ref, a2_bqv_ref, a2_wk_ref, a2_bk_ref, a2_wo_ref, a2_bo_ref,
    lng_ref, lnb_ref,
    f1w_ref, f1b_ref, f2w_ref, f2b_ref,
    o_ref, *, head):
  f32 = jnp.float32
  x = x_ref[0].astype(f32)      # (S, N)
  kvc = kvc_ref[0].astype(f32)  # (S, N)
  enc = enc_ref[0].astype(f32)  # (S, N)
  N = x.shape[-1]
  d = N // head
  inv_sqrt_d = 1.0 / (d ** 0.5)

  def mulatt(k_in, qv_in, wqv_ref, bqv_ref, wk_ref, bk_ref, wo_ref, bo_ref):
    # Fused Q/V projection (Q-input == V-input in this block): (S,N)@(N,2N).
    qv = jnp.dot(qv_in, wqv_ref[...].astype(f32),
                 preferred_element_type=f32) + bqv_ref[...].astype(f32)
    kp = jnp.dot(k_in, wk_ref[...].astype(f32),
                 preferred_element_type=f32) + bk_ref[...].astype(f32)
    wo = wo_ref[...].astype(f32)
    # concat_h(att_h) @ w_o == sum_h att_h @ w_o[h*d:(h+1)*d, :]
    # -> no in-kernel concat / head transpose needed.
    acc = jnp.zeros((qv.shape[0], N), dtype=f32)
    for h in range(head):          # short static loop; head lane-slices are static
      lo, hi = h * d, (h + 1) * d
      q_h = qv[:, lo:hi]           # (S, d)
      v_h = qv[:, N + lo:N + hi]   # (S, d)
      k_h = kp[:, lo:hi]           # (S, d)
      score = lax.dot_general(q_h, k_h, (((1,), (1,)), ((), ())),
                              preferred_element_type=f32) * inv_sqrt_d
      z = jnp.dot(score, v_h, preferred_element_type=f32)         # (S, d)
      z = z - jnp.max(z, axis=-1, keepdims=True)
      e = jnp.exp(z)
      att = e / jnp.sum(e, axis=-1, keepdims=True)                 # softmax over d
      acc = acc + jnp.dot(att, wo[lo:hi, :], preferred_element_type=f32)
    return acc + bo_ref[...].astype(f32)

  def add_norm(v, idx):
    # Add_Norm: v + LayerNorm(v); Dropout is identity in eval mode.
    g = lng_ref[idx].astype(f32)   # (1, N)
    b = lnb_ref[idx].astype(f32)   # (1, N)
    mu = jnp.mean(v, axis=-1, keepdims=True)
    var = jnp.mean((v - mu) * (v - mu), axis=-1, keepdims=True)
    ln = (v - mu) * lax.rsqrt(var + _LN_EPS) * g + b
    return v + ln

  # attention1(K=x, V=kvc, Q=kvc)
  x1 = mulatt(x, kvc, a1_wqv_ref, a1_bqv_ref, a1_wk_ref, a1_bk_ref,
              a1_wo_ref, a1_bo_ref)
  y = add_norm(x1, 0) + add_norm(x, 1)
  # attention2(K=y, V=enc_outputs, Q=enc_outputs)
  y1 = mulatt(y, enc, a2_wqv_ref, a2_bqv_ref, a2_wk_ref, a2_bk_ref,
              a2_wo_ref, a2_bo_ref)
  z = add_norm(y, 2) + add_norm(y1, 3)
  # PositionWiseFFN
  h1 = jnp.dot(z, f1w_ref[...].astype(f32), preferred_element_type=f32)
  h1 = jnp.maximum(h1 + f1b_ref[...].astype(f32), 0.0)
  ffn = jnp.dot(h1, f2w_ref[...].astype(f32),
                preferred_element_type=f32) + f2b_ref[...].astype(f32)
  out = add_norm(z, 4) + add_norm(ffn, 5)
  o_ref[0] = out.astype(o_ref.dtype)


def _fuse_qv(w, b):
  """From stacked [w_q, w_k, w_v, w_o] / biases, build kernel-ready pieces."""
  wqv = jnp.concatenate([w[0], w[2]], axis=1)   # (N, 2N)
  bqv = jnp.concatenate([b[0], b[2]], axis=1)   # (1, 2N)
  return wqv, bqv, w[1], b[1], w[3], b[3]       # + w_k, b_k, w_o, b_o


@functools.partial(jax.jit, static_argnames=("head",))
def decoder_block_pallas(params, x, kvc, enc, *, head):
  B, S, N = x.shape
  act_spec = pl.BlockSpec((1, S, N), lambda b: (b, 0, 0))

  def const_spec(arr):
    zeros = (0,) * arr.ndim
    return pl.BlockSpec(arr.shape, lambda b, _z=zeros: _z)

  weights = (*_fuse_qv(params["att1_w"], params["att1_b"]),
             *_fuse_qv(params["att2_w"], params["att2_b"]),
             params["ln_g"], params["ln_b"],
             params["ffn_w1"], params["ffn_b1"],
             params["ffn_w2"], params["ffn_b2"])

  return pl.pallas_call(
      functools.partial(_decoder_block_kernel, head=head),
      out_shape=jax.ShapeDtypeStruct((B, S, N), x.dtype),
      grid=(B,),
      in_specs=[act_spec, act_spec, act_spec] + [const_spec(w) for w in weights],
      out_specs=act_spec,
      compiler_params=pltpu.CompilerParams(dimension_semantics=("parallel",)),
  )(x, kvc, enc, *weights)


# ------------------------------ forward wrapper -------------------------------

def decoder_block_forward(params, x, state, head, block_idx=0):
  """Eval-mode DecoderBlock.forward.  state = (enc_outputs, enc_valid_lens, kv_caches)."""
  enc_outputs, enc_valid_lens = state[0], state[1]
  cache = state[2][block_idx]
  kvc = x if cache is None else jnp.concatenate([cache, x], axis=1)
  # TODO(synk): softmax_masker valid_len path (training-mode dec_valid_lens /
  # enc_valid_lens) and training-mode Dropout(0.1) are not implemented; this is
  # the eval path (valid_len=None, dropout=identity).
  assert enc_valid_lens is None
  assert kvc.shape[1] == x.shape[1], (
      "cached kv with longer seq is unsupported (the PyTorch DotAtt requires "
      "equal K/V sequence lengths in `score @ V`)")
  out = decoder_block_pallas(params, x, kvc, enc_outputs, head=head)
  return out, state


# ----------------------------- parameter creation -----------------------------

def init_decoder_block_params(key, q_hidden, k_hidden, v_hidden, num_hidden,
                              ffn_hidden, dtype=jnp.float32):
  """Synthetic params. Linear weights stored pre-transposed as (in, out)."""
  assert q_hidden == k_hidden == v_hidden == num_hidden, (
      "DecoderBlock's residual / LayerNorm structure requires equal hidden sizes")
  keys = iter(jax.random.split(key, 24))

  def lin(fan_in, fan_out):
    bound = 1.0 / (fan_in ** 0.5)
    w = jax.random.uniform(next(keys), (fan_in, fan_out), dtype, -bound, bound)
    b = jax.random.uniform(next(keys), (1, fan_out), dtype, -bound, bound)
    return w, b

  def att():
    ws, bs = zip(*[lin(num_hidden, num_hidden) for _ in range(4)])  # q, k, v, o
    return jnp.stack(ws), jnp.stack(bs)          # (4, N, N), (4, 1, N)

  a1w, a1b = att()
  a2w, a2b = att()
  # LayerNorm affine (6 Add_Norms); randomized (instead of ones/zeros) so the
  # reference check exercises the full math.
  ln_g = (1.0 + 0.1 * jax.random.normal(next(keys), (6, 1, num_hidden))).astype(dtype)
  ln_b = (0.1 * jax.random.normal(next(keys), (6, 1, num_hidden))).astype(dtype)
  f1w, f1b = lin(num_hidden, ffn_hidden)
  f2w, f2b = lin(ffn_hidden, num_hidden)
  return {"att1_w": a1w, "att1_b": a1b, "att2_w": a2w, "att2_b": a2b,
          "ln_g": ln_g, "ln_b": ln_b,
          "ffn_w1": f1w, "ffn_b1": f1b, "ffn_w2": f2w, "ffn_b2": f2b}


# ----------------------------- reference (pure JAX) ----------------------------

def decoder_block_reference(params, x, state, head, block_idx=0):
  enc = state[0]
  cache = state[2][block_idx]
  kvc = x if cache is None else jnp.concatenate([cache, x], axis=1)

  def mulatt(K, V, Q, w, b):
    N = w.shape[-1]
    d = N // head
    Qp = Q @ w[0] + b[0]
    Kp = K @ w[1] + b[1]
    Vp = V @ w[2] + b[2]

    def tqkv(t):
      Bt, St = t.shape[0], t.shape[1]
      return t.reshape(Bt, St, head, d).transpose(0, 2, 1, 3).reshape(Bt * head, St, d)

    tq, tk, tv = tqkv(Qp), tqkv(Kp), tqkv(Vp)
    score = jnp.einsum("bqd,bkd->bqk", tq, tk) / (d ** 0.5)
    z = jnp.einsum("bqk,bkd->bqd", score, tv)
    att = jax.nn.softmax(z, axis=-1)
    Bq, Sq = Q.shape[0], Q.shape[1]
    out_cat = att.reshape(Bq, head, Sq, d).transpose(0, 2, 1, 3).reshape(Bq, Sq, N)
    return out_cat @ w[3] + b[3]

  def add_norm(v, idx):
    g = params["ln_g"][idx, 0]
    be = params["ln_b"][idx, 0]
    mu = v.mean(-1, keepdims=True)
    var = ((v - mu) ** 2).mean(-1, keepdims=True)
    return v + ((v - mu) / jnp.sqrt(var + _LN_EPS) * g + be)

  x1 = mulatt(x, kvc, kvc, params["att1_w"], params["att1_b"])
  y = add_norm(x1, 0) + add_norm(x, 1)
  y1 = mulatt(y, enc, enc, params["att2_w"], params["att2_b"])
  z = add_norm(y, 2) + add_norm(y1, 3)
  h1 = jnp.maximum(z @ params["ffn_w1"] + params["ffn_b1"], 0.0)
  ffn = h1 @ params["ffn_w2"] + params["ffn_b2"]
  return add_norm(z, 4) + add_norm(ffn, 5)


# ----------------------------------- main --------------------------------------

if __name__ == "__main__":
  B, S = 2, 8
  num_hidden = 32
  ffn_hidden = 64
  head = 4

  key = jax.random.PRNGKey(0)
  k_param, k_x, k_enc = jax.random.split(key, 3)
  params = init_decoder_block_params(k_param, num_hidden, num_hidden, num_hidden,
                                     num_hidden, ffn_hidden)

  x = jax.random.normal(k_x, (B, S, num_hidden), jnp.float32)
  enc_outputs = jax.random.normal(k_enc, (B, S, num_hidden), jnp.float32)
  # state = (enc_outputs, enc_valid_lens, per-block kv caches); cache empty -> None
  state = (enc_outputs, None, [None])

  out, new_state = decoder_block_forward(params, x, state, head, block_idx=0)
  out = jax.block_until_ready(out)

  ref = decoder_block_reference(params, x, state, head, block_idx=0)
  assert out.shape == (B, S, num_hidden)
  assert jnp.allclose(out, ref, atol=2e-4, rtol=2e-4), "mismatch vs reference"

  print("KERNEL_OK")
</pallas_src>

<mosaic_0001>
module attributes {stable_mosaic.version = 11 : i64} {
  func.func @_decoder_block_kernel(%arg0: i32, %arg1: memref<1x8x32xf32, #tpu.memory_space<vmem>>, %arg2: memref<1x8x32xf32, #tpu.memory_space<vmem>>, %arg3: memref<1x8x32xf32, #tpu.memory_space<vmem>>, %arg4: memref<32x64xf32, #tpu.memory_space<vmem>>, %arg5: memref<1x64xf32, #tpu.memory_space<vmem>>, %arg6: memref<32x32xf32, #tpu.memory_space<vmem>>, %arg7: memref<1x32xf32, #tpu.memory_space<vmem>>, %arg8: memref<32x32xf32, #tpu.memory_space<vmem>>, %arg9: memref<1x32xf32, #tpu.memory_space<vmem>>, %arg10: memref<32x64xf32, #tpu.memory_space<vmem>>, %arg11: memref<1x64xf32, #tpu.memory_space<vmem>>, %arg12: memref<32x32xf32, #tpu.memory_space<vmem>>, %arg13: memref<1x32xf32, #tpu.memory_space<vmem>>, %arg14: memref<32x32xf32, #tpu.memory_space<vmem>>, %arg15: memref<1x32xf32, #tpu.memory_space<vmem>>, %arg16: memref<6x1x32xf32, #tpu.memory_space<vmem>>, %arg17: memref<6x1x32xf32, #tpu.memory_space<vmem>>, %arg18: memref<32x64xf32, #tpu.memory_space<vmem>>, %arg19: memref<1x64xf32, #tpu.memory_space<vmem>>, %arg20: memref<64x32xf32, #tpu.memory_space<vmem>>, %arg21: memref<1x32xf32, #tpu.memory_space<vmem>>, %arg22: memref<1x8x32xf32, #tpu.memory_space<vmem>>) attributes {dimension_semantics = [#tpu.dimension_semantics<parallel>], iteration_bounds = array<i64: 2>, scalar_prefetch = 0 : i64, scratch_operands = 0 : i64, tpu.core_type = #tpu.core_type<tc>, window_params = [{transform_indices = @transform_0, window_bounds = array<i64: 1, 8, 32>}, {transform_indices = @transform_1, window_bounds = array<i64: 1, 8, 32>}, {transform_indices = @transform_2, window_bounds = array<i64: 1, 8, 32>}, {pipeline_mode = #tpu.pipeline_mode<synchronous>, transform_indices = @transform_3, window_bounds = array<i64: 32, 64>}, {pipeline_mode = #tpu.pipeline_mode<synchronous>, transform_indices = @transform_4, window_bounds = array<i64: 1, 64>}, {pipeline_mode = #tpu.pipeline_mode<synchronous>, transform_indices = @transform_5, window_bounds = array<i64: 32, 32>}, {pipeline_mode = #tpu.pipeline_mode<synchronous>, transform_indices = @transform_6, window_bounds = array<i64: 1, 32>}, {pipeline_mode = #tpu.pipeline_mode<synchronous>, transform_indices = @transform_7, window_bounds = array<i64: 32, 32>}, {pipeline_mode = #tpu.pipeline_mode<synchronous>, transform_indices = @transform_8, window_bounds = array<i64: 1, 32>}, {pipeline_mode = #tpu.pipeline_mode<synchronous>, transform_indices = @transform_9, window_bounds = array<i64: 32, 64>}, {pipeline_mode = #tpu.pipeline_mode<synchronous>, transform_indices = @transform_10, window_bounds = array<i64: 1, 64>}, {pipeline_mode = #tpu.pipeline_mode<synchronous>, transform_indices = @transform_11, window_bounds = array<i64: 32, 32>}, {pipeline_mode = #tpu.pipeline_mode<synchronous>, transform_indices = @transform_12, window_bounds = array<i64: 1, 32>}, {pipeline_mode = #tpu.pipeline_mode<synchronous>, transform_indices = @transform_13, window_bounds = array<i64: 32, 32>}, {pipeline_mode = #tpu.pipeline_mode<synchronous>, transform_indices = @transform_14, window_bounds = array<i64: 1, 32>}, {pipeline_mode = #tpu.pipeline_mode<synchronous>, transform_indices = @transform_15, window_bounds = array<i64: 6, 1, 32>}, {pipeline_mode = #tpu.pipeline_mode<synchronous>, transform_indices = @transform_16, window_bounds = array<i64: 6, 1, 32>}, {pipeline_mode = #tpu.pipeline_mode<synchronous>, transform_indices = @transform_17, window_bounds = array<i64: 32, 64>}, {pipeline_mode = #tpu.pipeline_mode<synchronous>, transform_indices = @transform_18, window_bounds = array<i64: 1, 64>}, {pipeline_mode = #tpu.pipeline_mode<synchronous>, transform_indices = @transform_19, window_bounds = array<i64: 64, 32>}, {pipeline_mode = #tpu.pipeline_mode<synchronous>, transform_indices = @transform_20, window_bounds = array<i64: 1, 32>}, {transform_indices = @transform_21, window_bounds = array<i64: 1, 8, 32>}]} {
    %c0 = arith.constant 0 : index
    %c0_0 = arith.constant 0 : index
    %c0_1 = arith.constant 0 : index
    %0 = vector.load %arg1[%c0, %c0_0, %c0_1] : memref<1x8x32xf32, #tpu.memory_space<vmem>>, vector<1x8x32xf32>
    %1 = vector.shape_cast %0 : vector<1x8x32xf32> to vector<8x32xf32>
    %c0_2 = arith.constant 0 : index
    %c0_3 = arith.constant 0 : index
    %c0_4 = arith.constant 0 : index
    %2 = vector.load %arg2[%c0_2, %c0_3, %c0_4] : memref<1x8x32xf32, #tpu.memory_space<vmem>>, vector<1x8x32xf32>
    %3 = vector.shape_cast %2 : vector<1x8x32xf32> to vector<8x32xf32>
    %c0_5 = arith.constant 0 : index
    %c0_6 = arith.constant 0 : index
    %c0_7 = arith.constant 0 : index
    %4 = vector.load %arg3[%c0_5, %c0_6, %c0_7] : memref<1x8x32xf32, #tpu.memory_space<vmem>>, vector<1x8x32xf32>
    %5 = vector.shape_cast %4 : vector<1x8x32xf32> to vector<8x32xf32>
    %c0_8 = arith.constant 0 : index
    %c0_9 = arith.constant 0 : index
    %6 = vector.load %arg4[%c0_8, %c0_9] : memref<32x64xf32, #tpu.memory_space<vmem>>, vector<32x64xf32>
    %cst = arith.constant dense<0.000000e+00> : vector<8x64xf32>
    %7 = tpu.matmul %3, %6, %cst {dimension_numbers = #tpu.dot_dimension_numbers<[1], [0], [0], [1], [0, 0, 1, 1], [], []>} : vector<8x32xf32>, vector<32x64xf32>, vector<8x64xf32> -> vector<8x64xf32>
    %c0_10 = arith.constant 0 : index
    %c0_11 = arith.constant 0 : index
    %8 = vector.load %arg5[%c0_10, %c0_11] : memref<1x64xf32, #tpu.memory_space<vmem>>, vector<1x64xf32>
    %9 = vector.broadcast %8 : vector<1x64xf32> to vector<8x64xf32>
    %10 = arith.addf %7, %9 : vector<8x64xf32>
    %c0_12 = arith.constant 0 : index
    %c0_13 = arith.constant 0 : index
    %11 = vector.load %arg6[%c0_12, %c0_13] : memref<32x32xf32, #tpu.memory_space<vmem>>, vector<32x32xf32>
    %cst_14 = arith.constant dense<0.000000e+00> : vector<8x32xf32>
    %12 = tpu.matmul %1, %11, %cst_14 {dimension_numbers = #tpu.dot_dimension_numbers<[1], [0], [0], [1], [0, 0, 1, 1], [], []>} : vector<8x32xf32>, vector<32x32xf32>, vector<8x32xf32> -> vector<8x32xf32>
    %c0_15 = arith.constant 0 : index
    %c0_16 = arith.constant 0 : index
    %13 = vector.load %arg7[%c0_15, %c0_16] : memref<1x32xf32, #tpu.memory_space<vmem>>, vector<1x32xf32>
    %14 = vector.broadcast %13 : vector<1x32xf32> to vector<8x32xf32>
    %15 = arith.addf %12, %14 : vector<8x32xf32>
    %c0_17 = arith.constant 0 : index
    %c0_18 = arith.constant 0 : index
    %16 = vector.load %arg8[%c0_17, %c0_18] : memref<32x32xf32, #tpu.memory_space<vmem>>, vector<32x32xf32>
    %cst_19 = arith.constant 0.000000e+00 : f32
    %17 = vector.broadcast %cst_19 : f32 to vector<8x32xf32>
    %18 = vector.extract_strided_slice %10 {offsets = [0, 0], sizes = [8, 8], strides = [1, 1]} : vector<8x64xf32> to vector<8x8xf32>
    %19 = vector.extract_strided_slice %10 {offsets = [0, 32], sizes = [8, 8], strides = [1, 1]} : vector<8x64xf32> to vector<8x8xf32>
    %20 = vector.extract_strided_slice %15 {offsets = [0, 0], sizes = [8, 8], strides = [1, 1]} : vector<8x32xf32> to vector<8x8xf32>
    %cst_20 = arith.constant dense<0.000000e+00> : vector<8x8xf32>
    %21 = tpu.matmul %18, %20, %cst_20 {dimension_numbers = #tpu.dot_dimension_numbers<[1], [1], [0], [0], [0, 0, 1, 0], [], []>} : vector<8x8xf32>, vector<8x8xf32>, vector<8x8xf32> -> vector<8x8xf32>
    %cst_21 = arith.constant 0.353553385 : f32
    %22 = vector.broadcast %cst_21 : f32 to vector<8x8xf32>
    %23 = arith.mulf %21, %22 : vector<8x8xf32>
    %cst_22 = arith.constant dense<0.000000e+00> : vector<8x8xf32>
    %24 = tpu.matmul %23, %19, %cst_22 {dimension_numbers = #tpu.dot_dimension_numbers<[1], [0], [0], [1], [0, 0, 1, 1], [], []>} : vector<8x8xf32>, vector<8x8xf32>, vector<8x8xf32> -> vector<8x8xf32>
    %cst_23 = arith.constant dense<0xFF800000> : vector<8xf32>
    %25 = vector.multi_reduction <maximumf>, %24, %cst_23 [1] : vector<8x8xf32> to vector<8xf32>
    %26 = vector.shape_cast %25 : vector<8xf32> to vector<8x1xf32>
    %27 = vector.broadcast %26 : vector<8x1xf32> to vector<8x8xf32>
    %28 = arith.subf %24, %27 : vector<8x8xf32>
    %29 = math.exp %28 : vector<8x8xf32>
    %cst_24 = arith.constant dense<0.000000e+00> : vector<8xf32>
    %30 = vector.multi_reduction <add>, %29, %cst_24 [1] : vector<8x8xf32> to vector<8xf32>
    %31 = vector.shape_cast %30 : vector<8xf32> to vector<8x1xf32>
    %32 = vector.broadcast %31 : vector<8x1xf32> to vector<8x8xf32>
    %33 = arith.divf %29, %32 : vector<8x8xf32>
    %34 = vector.extract_strided_slice %16 {offsets = [0, 0], sizes = [8, 32], strides = [1, 1]} : vector<32x32xf32> to vector<8x32xf32>
    %cst_25 = arith.constant dense<0.000000e+00> : vector<8x32xf32>
    %35 = tpu.matmul %33, %34, %cst_25 {dimension_numbers = #tpu.dot_dimension_numbers<[1], [0], [0], [1], [0, 0, 1, 1], [], []>} : vector<8x8xf32>, vector<8x32xf32>, vector<8x32xf32> -> vector<8x32xf32>
    %36 = arith.addf %17, %35 : vector<8x32xf32>
    %37 = vector.extract_strided_slice %10 {offsets = [0, 8], sizes = [8, 8], strides = [1, 1]} : vector<8x64xf32> to vector<8x8xf32>
    %38 = vector.extract_strided_slice %10 {offsets = [0, 40], sizes = [8, 8], strides = [1, 1]} : vector<8x64xf32> to vector<8x8xf32>
    %39 = vector.extract_strided_slice %15 {offsets = [0, 8], sizes = [8, 8], strides = [1, 1]} : vector<8x32xf32> to vector<8x8xf32>
    %cst_26 = arith.constant dense<0.000000e+00> : vector<8x8xf32>
    %40 = tpu.matmul %37, %39, %cst_26 {dimension_numbers = #tpu.dot_dimension_numbers<[1], [1], [0], [0], [0, 0, 1, 0], [], []>} : vector<8x8xf32>, vector<8x8xf32>, vector<8x8xf32> -> vector<8x8xf32>
    %cst_27 = arith.constant 0.353553385 : f32
    %41 = vector.broadcast %cst_27 : f32 to vector<8x8xf32>
    %42 = arith.mulf %40, %41 : vector<8x8xf32>
    %cst_28 = arith.constant dense<0.000000e+00> : vector<8x8xf32>
    %43 = tpu.matmul %42, %38, %cst_28 {dimension_numbers = #tpu.dot_dimension_numbers<[1], [0], [0], [1], [0, 0, 1, 1], [], []>} : vector<8x8xf32>, vector<8x8xf32>, vector<8x8xf32> -> vector<8x8xf32>
    %cst_29 = arith.constant dense<0xFF800000> : vector<8xf32>
    %44 = vector.multi_reduction <maximumf>, %43, %cst_29 [1] : vector<8x8xf32> to vector<8xf32>
    %45 = vector.shape_cast %44 : vector<8xf32> to vector<8x1xf32>
    %46 = vector.broadcast %45 : vector<8x1xf32> to vector<8x8xf32>
    %47 = arith.subf %43, %46 : vector<8x8xf32>
    %48 = math.exp %47 : vector<8x8xf32>
    %cst_30 = arith.constant dense<0.000000e+00> : vector<8xf32>
    %49 = vector.multi_reduction <add>, %48, %cst_30 [1] : vector<8x8xf32> to vector<8xf32>
    %50 = vector.shape_cast %49 : vector<8xf32> to vector<8x1xf32>
    %51 = vector.broadcast %50 : vector<8x1xf32> to vector<8x8xf32>
    %52 = arith.divf %48, %51 : vector<8x8xf32>
    %53 = vector.extract_strided_slice %16 {offsets = [8, 0], sizes = [8, 32], strides = [1, 1]} : vector<32x32xf32> to vector<8x32xf32>
    %cst_31 = arith.constant dense<0.000000e+00> : vector<8x32xf32>
    %54 = tpu.matmul %52, %53, %cst_31 {dimension_numbers = #tpu.dot_dimension_numbers<[1], [0], [0], [1], [0, 0, 1, 1], [], []>} : vector<8x8xf32>, vector<8x32xf32>, vector<8x32xf32> -> vector<8x32xf32>
    %55 = arith.addf %36, %54 : vector<8x32xf32>
    %56 = vector.extract_strided_slice %10 {offsets = [0, 16], sizes = [8, 8], strides = [1, 1]} : vector<8x64xf32> to vector<8x8xf32>
    %57 = vector.extract_strided_slice %10 {offsets = [0, 48], sizes = [8, 8], strides = [1, 1]} : vector<8x64xf32> to vector<8x8xf32>
    %58 = vector.extract_strided_slice %15 {offsets = [0, 16], sizes = [8, 8], strides = [1, 1]} : vector<8x32xf32> to vector<8x8xf32>
    %cst_32 = arith.constant dense<0.000000e+00> : vector<8x8xf32>
    %59 = tpu.matmul %56, %58, %cst_32 {dimension_numbers = #tpu.dot_dimension_numbers<[1], [1], [0], [0], [0, 0, 1, 0], [], []>} : vector<8x8xf32>, vector<8x8xf32>, vector<8x8xf32> -> vector<8x8xf32>
    %cst_33 = arith.constant 0.353553385 : f32
    %60 = vector.broadcast %cst_33 : f32 to vector<8x8xf32>
    %61 = arith.mulf %59, %60 : vector<8x8xf32>
    %cst_34 = arith.constant dense<0.000000e+00> : vector<8x8xf32>
    %62 = tpu.matmul %61, %57, %cst_34 {dimension_numbers = #tpu.dot_dimension_numbers<[1], [0], [0], [1], [0, 0, 1, 1], [], []>} : vector<8x8xf32>, vector<8x8xf32>, vector<8x8xf32> -> vector<8x8xf32>
    %cst_35 = arith.constant dense<0xFF800000> : vector<8xf32>
    %63 = vector.multi_reduction <maximumf>, %62, %cst_35 [1] : vector<8x8xf32> to vector<8xf32>
    %64 = vector.shape_cast %63 : vector<8xf32> to vector<8x1xf32>
    %65 = vector.broadcast %64 : vector<8x1xf32> to vector<8x8xf32>
    %66 = arith.subf %62, %65 : vector<8x8xf32>
    %67 = math.exp %66 : vector<8x8xf32>
    %cst_36 = arith.constant dense<0.000000e+00> : vector<8xf32>
    %68 = vector.multi_reduction <add>, %67, %cst_36 [1] : vector<8x8xf32> to vector<8xf32>
    %69 = vector.shape_cast %68 : vector<8xf32> to vector<8x1xf32>
    %70 = vector.broadcast %69 : vector<8x1xf32> to vector<8x8xf32>
    %71 = arith.divf %67, %70 : vector<8x8xf32>
    %72 = vector.extract_strided_slice %16 {offsets = [16, 0], sizes = [8, 32], strides = [1, 1]} : vector<32x32xf32> to vector<8x32xf32>
    %cst_37 = arith.constant dense<0.000000e+00> : vector<8x32xf32>
    %73 = tpu.matmul %71, %72, %cst_37 {dimension_numbers = #tpu.dot_dimension_numbers<[1], [0], [0], [1], [0, 0, 1, 1], [], []>} : vector<8x8xf32>, vector<8x32xf32>, vector<8x32xf32> -> vector<8x32xf32>
    %74 = arith.addf %55, %73 : vector<8x32xf32>
    %75 = vector.extract_strided_slice %10 {offsets = [0, 24], sizes = [8, 8], strides = [1, 1]} : vector<8x64xf32> to vector<8x8xf32>
    %76 = vector.extract_strided_slice %10 {offsets = [0, 56], sizes = [8, 8], strides = [1, 1]} : vector<8x64xf32> to vector<8x8xf32>
    %77 = vector.extract_strided_slice %15 {offsets = [0, 24], sizes = [8, 8], strides = [1, 1]} : vector<8x32xf32> to vector<8x8xf32>
    %cst_38 = arith.constant dense<0.000000e+00> : vector<8x8xf32>
    %78 = tpu.matmul %75, %77, %cst_38 {dimension_numbers = #tpu.dot_dimension_numbers<[1], [1], [0], [0], [0, 0, 1, 0], [], []>} : vector<8x8xf32>, vector<8x8xf32>, vector<8x8xf32> -> vector<8x8xf32>
    %cst_39 = arith.constant 0.353553385 : f32
    %79 = vector.broadcast %cst_39 : f32 to vector<8x8xf32>
    %80 = arith.mulf %78, %79 : vector<8x8xf32>
    %cst_40 = arith.constant dense<0.000000e+00> : vector<8x8xf32>
    %81 = tpu.matmul %80, %76, %cst_40 {dimension_numbers = #tpu.dot_dimension_numbers<[1], [0], [0], [1], [0, 0, 1, 1], [], []>} : vector<8x8xf32>, vector<8x8xf32>, vector<8x8xf32> -> vector<8x8xf32>
    %cst_41 = arith.constant dense<0xFF800000> : vector<8xf32>
    %82 = vector.multi_reduction <maximumf>, %81, %cst_41 [1] : vector<8x8xf32> to vector<8xf32>
    %83 = vector.shape_cast %82 : vector<8xf32> to vector<8x1xf32>
    %84 = vector.broadcast %83 : vector<8x1xf32> to vector<8x8xf32>
    %85 = arith.subf %81, %84 : vector<8x8xf32>
    %86 = math.exp %85 : vector<8x8xf32>
    %cst_42 = arith.constant dense<0.000000e+00> : vector<8xf32>
    %87 = vector.multi_reduction <add>, %86, %cst_42 [1] : vector<8x8xf32> to vector<8xf32>
    %88 = vector.shape_cast %87 : vector<8xf32> to vector<8x1xf32>
    %89 = vector.broadcast %88 : vector<8x1xf32> to vector<8x8xf32>
    %90 = arith.divf %86, %89 : vector<8x8xf32>
    %91 = vector.extract_strided_slice %16 {offsets = [24, 0], sizes = [8, 32], strides = [1, 1]} : vector<32x32xf32> to vector<8x32xf32>
    %cst_43 = arith.constant dense<0.000000e+00> : vector<8x32xf32>
    %92 = tpu.matmul %90, %91, %cst_43 {dimension_numbers = #tpu.dot_dimension_numbers<[1], [0], [0], [1], [0, 0, 1, 1], [], []>} : vector<8x8xf32>, vector<8x32xf32>, vector<8x32xf32> -> vector<8x32xf32>
    %93 = arith.addf %74, %92 : vector<8x32xf32>
    %c0_44 = arith.constant 0 : index
    %c0_45 = arith.constant 0 : index
    %94 = vector.load %arg9[%c0_44, %c0_45] : memref<1x32xf32, #tpu.memory_space<vmem>>, vector<1x32xf32>
    %95 = vector.broadcast %94 : vector<1x32xf32> to vector<8x32xf32>
    %96 = arith.addf %93, %95 : vector<8x32xf32>
    %c0_46 = arith.constant 0 : index
    %c0_47 = arith.constant 0 : index
    %c0_48 = arith.constant 0 : index
    %97 = vector.load %arg16[%c0_46, %c0_47, %c0_48] : memref<6x1x32xf32, #tpu.memory_space<vmem>>, vector<1x1x32xf32>
    %98 = vector.shape_cast %97 : vector<1x1x32xf32> to vector<1x32xf32>
    %c0_49 = arith.constant 0 : index
    %c0_50 = arith.constant 0 : index
    %c0_51 = arith.constant 0 : index
    %99 = vector.load %arg17[%c0_49, %c0_50, %c0_51] : memref<6x1x32xf32, #tpu.memory_space<vmem>>, vector<1x1x32xf32>
    %100 = vector.shape_cast %99 : vector<1x1x32xf32> to vector<1x32xf32>
    %cst_52 = arith.constant dense<0.000000e+00> : vector<8xf32>
    %101 = vector.multi_reduction <add>, %96, %cst_52 [1] : vector<8x32xf32> to vector<8xf32>
    %102 = vector.shape_cast %101 : vector<8xf32> to vector<8x1xf32>
    %cst_53 = arith.constant 3.200000e+01 : f32
    %103 = vector.broadcast %cst_53 : f32 to vector<8x1xf32>
    %104 = arith.divf %102, %103 : vector<8x1xf32>
    %105 = vector.broadcast %104 : vector<8x1xf32> to vector<8x32xf32>
    %106 = arith.subf %96, %105 : vector<8x32xf32>
    %107 = vector.broadcast %104 : vector<8x1xf32> to vector<8x32xf32>
    %108 = arith.subf %96, %107 : vector<8x32xf32>
    %109 = arith.mulf %106, %108 : vector<8x32xf32>
    %cst_54 = arith.constant dense<0.000000e+00> : vector<8xf32>
    %110 = vector.multi_reduction <add>, %109, %cst_54 [1] : vector<8x32xf32> to vector<8xf32>
    %111 = vector.shape_cast %110 : vector<8xf32> to vector<8x1xf32>
    %cst_55 = arith.constant 3.200000e+01 : f32
    %112 = vector.broadcast %cst_55 : f32 to vector<8x1xf32>
    %113 = arith.divf %111, %112 : vector<8x1xf32>
    %114 = vector.broadcast %104 : vector<8x1xf32> to vector<8x32xf32>
    %115 = arith.subf %96, %114 : vector<8x32xf32>
    %cst_56 = arith.constant 9.99999974E-6 : f32
    %116 = vector.broadcast %cst_56 : f32 to vector<8x1xf32>
    %117 = arith.addf %113, %116 : vector<8x1xf32>
    %118 = math.rsqrt %117 : vector<8x1xf32>
    %119 = vector.broadcast %118 : vector<8x1xf32> to vector<8x32xf32>
    %120 = arith.mulf %115, %119 : vector<8x32xf32>
    %121 = vector.broadcast %98 : vector<1x32xf32> to vector<8x32xf32>
    %122 = arith.mulf %120, %121 : vector<8x32xf32>
    %123 = vector.broadcast %100 : vector<1x32xf32> to vector<8x32xf32>
    %124 = arith.addf %122, %123 : vector<8x32xf32>
    %125 = arith.addf %96, %124 : vector<8x32xf32>
    %c1 = arith.constant 1 : index
    %c0_57 = arith.constant 0 : index
    %c0_58 = arith.constant 0 : index
    %126 = vector.load %arg16[%c1, %c0_57, %c0_58] : memref<6x1x32xf32, #tpu.memory_space<vmem>>, vector<1x1x32xf32>
    %127 = vector.shape_cast %126 : vector<1x1x32xf32> to vector<1x32xf32>
    %c1_59 = arith.constant 1 : index
    %c0_60 = arith.constant 0 : index
    %c0_61 = arith.constant 0 : index
    %128 = vector.load %arg17[%c1_59, %c0_60, %c0_61] : memref<6x1x32xf32, #tpu.memory_space<vmem>>, vector<1x1x32xf32>
    %129 = vector.shape_cast %128 : vector<1x1x32xf32> to vector<1x32xf32>
    %cst_62 = arith.constant dense<0.000000e+00> : vector<8xf32>
    %130 = vector.multi_reduction <add>, %1, %cst_62 [1] : vector<8x32xf32> to vector<8xf32>
    %131 = vector.shape_cast %130 : vector<8xf32> to vector<8x1xf32>
    %cst_63 = arith.constant 3.200000e+01 : f32
    %132 = vector.broadcast %cst_63 : f32 to vector<8x1xf32>
    %133 = arith.divf %131, %132 : vector<8x1xf32>
    %134 = vector.broadcast %133 : vector<8x1xf32> to vector<8x32xf32>
    %135 = arith.subf %1, %134 : vector<8x32xf32>
    %136 = vector.broadcast %133 : vector<8x1xf32> to vector<8x32xf32>
    %137 = arith.subf %1, %136 : vector<8x32xf32>
    %138 = arith.mulf %135, %137 : vector<8x32xf32>
    %cst_64 = arith.constant dense<0.000000e+00> : vector<8xf32>
    %139 = vector.multi_reduction <add>, %138, %cst_64 [1] : vector<8x32xf32> to vector<8xf32>
    %140 = vector.shape_cast %139 : vector<8xf32> to vector<8x1xf32>
    %cst_65 = arith.constant 3.200000e+01 : f32
    %141 = vector.broadcast %cst_65 : f32 to vector<8x1xf32>
    %142 = arith.divf %140, %141 : vector<8x1xf32>
    %143 = vector.broadcast %133 : vector<8x1xf32> to vector<8x32xf32>
    %144 = arith.subf %1, %143 : vector<8x32xf32>
    %cst_66 = arith.constant 9.99999974E-6 : f32
    %145 = vector.broadcast %cst_66 : f32 to vector<8x1xf32>
    %146 = arith.addf %142, %145 : vector<8x1xf32>
    %147 = math.rsqrt %146 : vector<8x1xf32>
    %148 = vector.broadcast %147 : vector<8x1xf32> to vector<8x32xf32>
    %149 = arith.mulf %144, %148 : vector<8x32xf32>
    %150 = vector.broadcast %127 : vector<1x32xf32> to vector<8x32xf32>
    %151 = arith.mulf %149, %150 : vector<8x32xf32>
    %152 = vector.broadcast %129 : vector<1x32xf32> to vector<8x32xf32>
    %153 = arith.addf %151, %152 : vector<8x32xf32>
    %154 = arith.addf %1, %153 : vector<8x32xf32>
    %155 = arith.addf %125, %154 : vector<8x32xf32>
    %c0_67 = arith.constant 0 : index
    %c0_68 = arith.constant 0 : index
    %156 = vector.load %arg10[%c0_67, %c0_68] : memref<32x64xf32, #tpu.memory_space<vmem>>, vector<32x64xf32>
    %cst_69 = arith.constant dense<0.000000e+00> : vector<8x64xf32>
    %157 = tpu.matmul %5, %156, %cst_69 {dimension_numbers = #tpu.dot_dimension_numbers<[1], [0], [0], [1], [0, 0, 1, 1], [], []>} : vector<8x32xf32>, vector<32x64xf32>, vector<8x64xf32> -> vector<8x64xf32>
    %c0_70 = arith.constant 0 : index
    %c0_71 = arith.constant 0 : index
    %158 = vector.load %arg11[%c0_70, %c0_71] : memref<1x64xf32, #tpu.memory_space<vmem>>, vector<1x64xf32>
    %159 = vector.broadcast %158 : vector<1x64xf32> to vector<8x64xf32>
    %160 = arith.addf %157, %159 : vector<8x64xf32>
    %c0_72 = arith.constant 0 : index
    %c0_73 = arith.constant 0 : index
    %161 = vector.load %arg12[%c0_72, %c0_73] : memref<32x32xf32, #tpu.memory_space<vmem>>, vector<32x32xf32>
    %cst_74 = arith.constant dense<0.000000e+00> : vector<8x32xf32>
    %162 = tpu.matmul %155, %161, %cst_74 {dimension_numbers = #tpu.dot_dimension_numbers<[1], [0], [0], [1], [0, 0, 1, 1], [], []>} : vector<8x32xf32>, vector<32x32xf32>, vector<8x32xf32> -> vector<8x32xf32>
    %c0_75 = arith.constant 0 : index
    %c0_76 = arith.constant 0 : index
    %163 = vector.load %arg13[%c0_75, %c0_76] : memref<1x32xf32, #tpu.memory_space<vmem>>, vector<1x32xf32>
    %164 = vector.broadcast %163 : vector<1x32xf32> to vector<8x32xf32>
    %165 = arith.addf %162, %164 : vector<8x32xf32>
    %c0_77 = arith.constant 0 : index
    %c0_78 = arith.constant 0 : index
    %166 = vector.load %arg14[%c0_77, %c0_78] : memref<32x32xf32, #tpu.memory_space<vmem>>, vector<32x32xf32>
    %cst_79 = arith.constant 0.000000e+00 : f32
    %167 = vector.broadcast %cst_79 : f32 to vector<8x32xf32>
    %168 = vector.extract_strided_slice %160 {offsets = [0, 0], sizes = [8, 8], strides = [1, 1]} : vector<8x64xf32> to vector<8x8xf32>
    %169 = vector.extract_strided_slice %160 {offsets = [0, 32], sizes = [8, 8], strides = [1, 1]} : vector<8x64xf32> to vector<8x8xf32>
    %170 = vector.extract_strided_slice %165 {offsets = [0, 0], sizes = [8, 8], strides = [1, 1]} : vector<8x32xf32> to vector<8x8xf32>
    %cst_80 = arith.constant dense<0.000000e+00> : vector<8x8xf32>
    %171 = tpu.matmul %168, %170, %cst_80 {dimension_numbers = #tpu.dot_dimension_numbers<[1], [1], [0], [0], [0, 0, 1, 0], [], []>} : vector<8x8xf32>, vector<8x8xf32>, vector<8x8xf32> -> vector<8x8xf32>
    %cst_81 = arith.constant 0.353553385 : f32
    %172 = vector.broadcast %cst_81 : f32 to vector<8x8xf32>
    %173 = arith.mulf %171, %172 : vector<8x8xf32>
    %cst_82 = arith.constant dense<0.000000e+00> : vector<8x8xf32>
    %174 = tpu.matmul %173, %169, %cst_82 {dimension_numbers = #tpu.dot_dimension_numbers<[1], [0], [0], [1], [0, 0, 1, 1], [], []>} : vector<8x8xf32>, vector<8x8xf32>, vector<8x8xf32> -> vector<8x8xf32>
    %cst_83 = arith.constant dense<0xFF800000> : vector<8xf32>
    %175 = vector.multi_reduction <maximumf>, %174, %cst_83 [1] : vector<8x8xf32> to vector<8xf32>
    %176 = vector.shape_cast %175 : vector<8xf32> to vector<8x1xf32>
    %177 = vector.broadcast %176 : vector<8x1xf32> to vector<8x8xf32>
    %178 = arith.subf %174, %177 : vector<8x8xf32>
    %179 = math.exp %178 : vector<8x8xf32>
    %cst_84 = arith.constant dense<0.000000e+00> : vector<8xf32>
    %180 = vector.multi_reduction <add>, %179, %cst_84 [1] : vector<8x8xf32> to vector<8xf32>
    %181 = vector.shape_cast %180 : vector<8xf32> to vector<8x1xf32>
    %182 = vector.broadcast %181 : vector<8x1xf32> to vector<8x8xf32>
    %183 = arith.divf %179, %182 : vector<8x8xf32>
    %184 = vector.extract_strided_slice %166 {offsets = [0, 0], sizes = [8, 32], strides = [1, 1]} : vector<32x32xf32> to vector<8x32xf32>
    %cst_85 = arith.constant dense<0.000000e+00> : vector<8x32xf32>
    %185 = tpu.matmul %183, %184, %cst_85 {dimension_numbers = #tpu.dot_dimension_numbers<[1], [0], [0], [1], [0, 0, 1, 1], [], []>} : vector<8x8xf32>, vector<8x32xf32>, vector<8x32xf32> -> vector<8x32xf32>
    %186 = arith.addf %167, %185 : vector<8x32xf32>
    %187 = vector.extract_strided_slice %160 {offsets = [0, 8], sizes = [8, 8], strides = [1, 1]} : vector<8x64xf32> to vector<8x8xf32>
    %188 = vector.extract_strided_slice %160 {offsets = [0, 40], sizes = [8, 8], strides = [1, 1]} : vector<8x64xf32> to vector<8x8xf32>
    %189 = vector.extract_strided_slice %165 {offsets = [0, 8], sizes = [8, 8], strides = [1, 1]} : vector<8x32xf32> to vector<8x8xf32>
    %cst_86 = arith.constant dense<0.000000e+00> : vector<8x8xf32>
    %190 = tpu.matmul %187, %189, %cst_86 {dimension_numbers = #tpu.dot_dimension_numbers<[1], [1], [0], [0], [0, 0, 1, 0], [], []>} : vector<8x8xf32>, vector<8x8xf32>, vector<8x8xf32> -> vector<8x8xf32>
    %cst_87 = arith.constant 0.353553385 : f32
    %191 = vector.broadcast %cst_87 : f32 to vector<8x8xf32>
    %192 = arith.mulf %190, %191 : vector<8x8xf32>
    %cst_88 = arith.constant dense<0.000000e+00> : vector<8x8xf32>
    %193 = tpu.matmul %192, %188, %cst_88 {dimension_numbers = #tpu.dot_dimension_numbers<[1], [0], [0], [1], [0, 0, 1, 1], [], []>} : vector<8x8xf32>, vector<8x8xf32>, vector<8x8xf32> -> vector<8x8xf32>
    %cst_89 = arith.constant dense<0xFF800000> : vector<8xf32>
    %194 = vector.multi_reduction <maximumf>, %193, %cst_89 [1] : vector<8x8xf32> to vector<8xf32>
    %195 = vector.shape_cast %194 : vector<8xf32> to vector<8x1xf32>
    %196 = vector.broadcast %195 : vector<8x1xf32> to vector<8x8xf32>
    %197 = arith.subf %193, %196 : vector<8x8xf32>
    %198 = math.exp %197 : vector<8x8xf32>
    %cst_90 = arith.constant dense<0.000000e+00> : vector<8xf32>
    %199 = vector.multi_reduction <add>, %198, %cst_90 [1] : vector<8x8xf32> to vector<8xf32>
    %200 = vector.shape_cast %199 : vector<8xf32> to vector<8x1xf32>
    %201 = vector.broadcast %200 : vector<8x1xf32> to vector<8x8xf32>
    %202 = arith.divf %198, %201 : vector<8x8xf32>
    %203 = vector.extract_strided_slice %166 {offsets = [8, 0], sizes = [8, 32], strides = [1, 1]} : vector<32x32xf32> to vector<8x32xf32>
    %cst_91 = arith.constant dense<0.000000e+00> : vector<8x32xf32>
    %204 = tpu.matmul %202, %203, %cst_91 {dimension_numbers = #tpu.dot_dimension_numbers<[1], [0], [0], [1], [0, 0, 1, 1], [], []>} : vector<8x8xf32>, vector<8x32xf32>, vector<8x32xf32> -> vector<8x32xf32>
    %205 = arith.addf %186, %204 : vector<8x32xf32>
    %206 = vector.extract_strided_slice %160 {offsets = [0, 16], sizes = [8, 8], strides = [1, 1]} : vector<8x64xf32> to vector<8x8xf32>
    %207 = vector.extract_strided_slice %160 {offsets = [0, 48], sizes = [8, 8], strides = [1, 1]} : vector<8x64xf32> to vector<8x8xf32>
    %208 = vector.extract_strided_slice %165 {offsets = [0, 16], sizes = [8, 8], strides = [1, 1]} : vector<8x32xf32> to vector<8x8xf32>
    %cst_92 = arith.constant dense<0.000000e+00> : vector<8x8xf32>
    %209 = tpu.matmul %206, %208, %cst_92 {dimension_numbers = #tpu.dot_dimension_numbers<[1], [1], [0], [0], [0, 0, 1, 0], [], []>} : vector<8x8xf32>, vector<8x8xf32>, vector<8x8xf32> -> vector<8x8xf32>
    %cst_93 = arith.constant 0.353553385 : f32
    %210 = vector.broadcast %cst_93 : f32 to vector<8x8xf32>
    %211 = arith.mulf %209, %210 : vector<8x8xf32>
    %cst_94 = arith.constant dense<0.000000e+00> : vector<8x8xf32>
    %212 = tpu.matmul %211, %207, %cst_94 {dimension_numbers = #tpu.dot_dimension_numbers<[1], [0], [0], [1], [0, 0, 1, 1], [], []>} : vector<8x8xf32>, vector<8x8xf32>, vector<8x8xf32> -> vector<8x8xf32>
    %cst_95 = arith.constant dense<0xFF800000> : vector<8xf32>
    %213 = vector.multi_reduction <maximumf>, %212, %cst_95 [1] : vector<8x8xf32> to vector<8xf32>
    %214 = vector.shape_cast %213 : vector<8xf32> to vector<8x1xf32>
    %215 = vector.broadcast %214 : vector<8x1xf32> to vector<8x8xf32>
    %216 = arith.subf %212, %215 : vector<8x8xf32>
    %217 = math.exp %216 : vector<8x8xf32>
    %cst_96 = arith.constant dense<0.000000e+00> : vector<8xf32>
    %218 = vector.multi_reduction <add>, %217, %cst_96 [1] : vector<8x8xf32> to vector<8xf32>
    %219 = vector.shape_cast %218 : vector<8xf32> to vector<8x1xf32>
    %220 = vector.broadcast %219 : vector<8x1xf32> to vector<8x8xf32>
    %221 = arith.divf %217, %220 : vector<8x8xf32>
    %222 = vector.extract_strided_slice %166 {offsets = [16, 0], sizes = [8, 32], strides = [1, 1]} : vector<32x32xf32> to vector<8x32xf32>
    %cst_97 = arith.constant dense<0.000000e+00> : vector<8x32xf32>
    %223 = tpu.matmul %221, %222, %cst_97 {dimension_numbers = #tpu.dot_dimension_numbers<[1], [0], [0], [1], [0, 0, 1, 1], [], []>} : vector<8x8xf32>, vector<8x32xf32>, vector<8x32xf32> -> vector<8x32xf32>
    %224 = arith.addf %205, %223 : vector<8x32xf32>
    %225 = vector.extract_strided_slice %160 {offsets = [0, 24], sizes = [8, 8], strides = [1, 1]} : vector<8x64xf32> to vector<8x8xf32>
    %226 = vector.extract_strided_slice %160 {offsets = [0, 56], sizes = [8, 8], strides = [1, 1]} : vector<8x64xf32> to vector<8x8xf32>
    %227 = vector.extract_strided_slice %165 {offsets = [0, 24], sizes = [8, 8], strides = [1, 1]} : vector<8x32xf32> to vector<8x8xf32>
    %cst_98 = arith.constant dense<0.000000e+00> : vector<8x8xf32>
    %228 = tpu.matmul %225, %227, %cst_98 {dimension_numbers = #tpu.dot_dimension_numbers<[1], [1], [0], [0], [0, 0, 1, 0], [], []>} : vector<8x8xf32>, vector<8x8xf32>, vector<8x8xf32> -> vector<8x8xf32>
    %cst_99 = arith.constant 0.353553385 : f32
    %229 = vector.broadcast %cst_99 : f32 to vector<8x8xf32>
    %230 = arith.mulf %228, %229 : vector<8x8xf32>
    %cst_100 = arith.constant dense<0.000000e+00> : vector<8x8xf32>
    %231 = tpu.matmul %230, %226, %cst_100 {dimension_numbers = #tpu.dot_dimension_numbers<[1], [0], [0], [1], [0, 0, 1, 1], [], []>} : vector<8x8xf32>, vector<8x8xf32>, vector<8x8xf32> -> vector<8x8xf32>
    %cst_101 = arith.constant dense<0xFF800000> : vector<8xf32>
    %232 = vector.multi_reduction <maximumf>, %231, %cst_101 [1] : vector<8x8xf32> to vector<8xf32>
    %233 = vector.shape_cast %232 : vector<8xf32> to vector<8x1xf32>
    %234 = vector.broadcast %233 : vector<8x1xf32> to vector<8x8xf32>
    %235 = arith.subf %231, %234 : vector<8x8xf32>
    %236 = math.exp %235 : vector<8x8xf32>
    %cst_102 = arith.constant dense<0.000000e+00> : vector<8xf32>
    %237 = vector.multi_reduction <add>, %236, %cst_102 [1] : vector<8x8xf32> to vector<8xf32>
    %238 = vector.shape_cast %237 : vector<8xf32> to vector<8x1xf32>
    %239 = vector.broadcast %238 : vector<8x1xf32> to vector<8x8xf32>
    %240 = arith.divf %236, %239 : vector<8x8xf32>
    %241 = vector.extract_strided_slice %166 {offsets = [24, 0], sizes = [8, 32], strides = [1, 1]} : vector<32x32xf32> to vector<8x32xf32>
    %cst_103 = arith.constant dense<0.000000e+00> : vector<8x32xf32>
    %242 = tpu.matmul %240, %241, %cst_103 {dimension_numbers = #tpu.dot_dimension_numbers<[1], [0], [0], [1], [0, 0, 1, 1], [], []>} : vector<8x8xf32>, vector<8x32xf32>, vector<8x32xf32> -> vector<8x32xf32>
    %243 = arith.addf %224, %242 : vector<8x32xf32>
    %c0_104 = arith.constant 0 : index
    %c0_105 = arith.constant 0 : index
    %244 = vector.load %arg15[%c0_104, %c0_105] : memref<1x32xf32, #tpu.memory_space<vmem>>, vector<1x32xf32>
    %245 = vector.broadcast %244 : vector<1x32xf32> to vector<8x32xf32>
    %246 = arith.addf %243, %245 : vector<8x32xf32>
    %c2 = arith.constant 2 : index
    %c0_106 = arith.constant 0 : index
    %c0_107 = arith.constant 0 : index
    %247 = vector.load %arg16[%c2, %c0_106, %c0_107] : memref<6x1x32xf32, #tpu.memory_space<vmem>>, vector<1x1x32xf32>
    %248 = vector.shape_cast %247 : vector<1x1x32xf32> to vector<1x32xf32>
    %c2_108 = arith.constant 2 : index
    %c0_109 = arith.constant 0 : index
    %c0_110 = arith.constant 0 : index
    %249 = vector.load %arg17[%c2_108, %c0_109, %c0_110] : memref<6x1x32xf32, #tpu.memory_space<vmem>>, vector<1x1x32xf32>
    %250 = vector.shape_cast %249 : vector<1x1x32xf32> to vector<1x32xf32>
    %cst_111 = arith.constant dense<0.000000e+00> : vector<8xf32>
    %251 = vector.multi_reduction <add>, %155, %cst_111 [1] : vector<8x32xf32> to vector<8xf32>
    %252 = vector.shape_cast %251 : vector<8xf32> to vector<8x1xf32>
    %cst_112 = arith.constant 3.200000e+01 : f32
    %253 = vector.broadcast %cst_112 : f32 to vector<8x1xf32>
    %254 = arith.divf %252, %253 : vector<8x1xf32>
    %255 = vector.broadcast %254 : vector<8x1xf32> to vector<8x32xf32>
    %256 = arith.subf %155, %255 : vector<8x32xf32>
    %257 = vector.broadcast %254 : vector<8x1xf32> to vector<8x32xf32>
    %258 = arith.subf %155, %257 : vector<8x32xf32>
    %259 = arith.mulf %256, %258 : vector<8x32xf32>
    %cst_113 = arith.constant dense<0.000000e+00> : vector<8xf32>
    %260 = vector.multi_reduction <add>, %259, %cst_113 [1] : vector<8x32xf32> to vector<8xf32>
    %261 = vector.shape_cast %260 : vector<8xf32> to vector<8x1xf32>
    %cst_114 = arith.constant 3.200000e+01 : f32
    %262 = vector.broadcast %cst_114 : f32 to vector<8x1xf32>
    %263 = arith.divf %261, %262 : vector<8x1xf32>
    %264 = vector.broadcast %254 : vector<8x1xf32> to vector<8x32xf32>
    %265 = arith.subf %155, %264 : vector<8x32xf32>
    %cst_115 = arith.constant 9.99999974E-6 : f32
    %266 = vector.broadcast %cst_115 : f32 to vector<8x1xf32>
    %267 = arith.addf %263, %266 : vector<8x1xf32>
    %268 = math.rsqrt %267 : vector<8x1xf32>
    %269 = vector.broadcast %268 : vector<8x1xf32> to vector<8x32xf32>
    %270 = arith.mulf %265, %269 : vector<8x32xf32>
    %271 = vector.broadcast %248 : vector<1x32xf32> to vector<8x32xf32>
    %272 = arith.mulf %270, %271 : vector<8x32xf32>
    %273 = vector.broadcast %250 : vector<1x32xf32> to vector<8x32xf32>
    %274 = arith.addf %272, %273 : vector<8x32xf32>
    %275 = arith.addf %155, %274 : vector<8x32xf32>
    %c3 = arith.constant 3 : index
    %c0_116 = arith.constant 0 : index
    %c0_117 = arith.constant 0 : index
    %276 = vector.load %arg16[%c3, %c0_116, %c0_117] : memref<6x1x32xf32, #tpu.memory_space<vmem>>, vector<1x1x32xf32>
    %277 = vector.shape_cast %276 : vector<1x1x32xf32> to vector<1x32xf32>
    %c3_118 = arith.constant 3 : index
    %c0_119 = arith.constant 0 : index
    %c0_120 = arith.constant 0 : index
    %278 = vector.load %arg17[%c3_118, %c0_119, %c0_120] : memref<6x1x32xf32, #tpu.memory_space<vmem>>, vector<1x1x32xf32>
    %279 = vector.shape_cast %278 : vector<1x1x32xf32> to vector<1x32xf32>
    %cst_121 = arith.constant dense<0.000000e+00> : vector<8xf32>
    %280 = vector.multi_reduction <add>, %246, %cst_121 [1] : vector<8x32xf32> to vector<8xf32>
    %281 = vector.shape_cast %280 : vector<8xf32> to vector<8x1xf32>
    %cst_122 = arith.constant 3.200000e+01 : f32
    %282 = vector.broadcast %cst_122 : f32 to vector<8x1xf32>
    %283 = arith.divf %281, %282 : vector<8x1xf32>
    %284 = vector.broadcast %283 : vector<8x1xf32> to vector<8x32xf32>
    %285 = arith.subf %246, %284 : vector<8x32xf32>
    %286 = vector.broadcast %283 : vector<8x1xf32> to vector<8x32xf32>
    %287 = arith.subf %246, %286 : vector<8x32xf32>
    %288 = arith.mulf %285, %287 : vector<8x32xf32>
    %cst_123 = arith.constant dense<0.000000e+00> : vector<8xf32>
    %289 = vector.multi_reduction <add>, %288, %cst_123 [1] : vector<8x32xf32> to vector<8xf32>
    %290 = vector.shape_cast %289 : vector<8xf32> to vector<8x1xf32>
    %cst_124 = arith.constant 3.200000e+01 : f32
    %291 = vector.broadcast %cst_124 : f32 to vector<8x1xf32>
    %292 = arith.divf %290, %291 : vector<8x1xf32>
    %293 = vector.broadcast %283 : vector<8x1xf32> to vector<8x32xf32>
    %294 = arith.subf %246, %293 : vector<8x32xf32>
    %cst_125 = arith.constant 9.99999974E-6 : f32
    %295 = vector.broadcast %cst_125 : f32 to vector<8x1xf32>
    %296 = arith.addf %292, %295 : vector<8x1xf32>
    %297 = math.rsqrt %296 : vector<8x1xf32>
    %298 = vector.broadcast %297 : vector<8x1xf32> to vector<8x32xf32>
    %299 = arith.mulf %294, %298 : vector<8x32xf32>
    %300 = vector.broadcast %277 : vector<1x32xf32> to vector<8x32xf32>
    %301 = arith.mulf %299, %300 : vector<8x32xf32>
    %302 = vector.broadcast %279 : vector<1x32xf32> to vector<8x32xf32>
    %303 = arith.addf %301, %302 : vector<8x32xf32>
    %304 = arith.addf %246, %303 : vector<8x32xf32>
    %305 = arith.addf %275, %304 : vector<8x32xf32>
    %c0_126 = arith.constant 0 : index
    %c0_127 = arith.constant 0 : index
    %306 = vector.load %arg18[%c0_126, %c0_127] : memref<32x64xf32, #tpu.memory_space<vmem>>, vector<32x64xf32>
    %cst_128 = arith.constant dense<0.000000e+00> : vector<8x64xf32>
    %307 = tpu.matmul %305, %306, %cst_128 {dimension_numbers = #tpu.dot_dimension_numbers<[1], [0], [0], [1], [0, 0, 1, 1], [], []>} : vector<8x32xf32>, vector<32x64xf32>, vector<8x64xf32> -> vector<8x64xf32>
    %c0_129 = arith.constant 0 : index
    %c0_130 = arith.constant 0 : index
    %308 = vector.load %arg19[%c0_129, %c0_130] : memref<1x64xf32, #tpu.memory_space<vmem>>, vector<1x64xf32>
    %309 = vector.broadcast %308 : vector<1x64xf32> to vector<8x64xf32>
    %310 = arith.addf %307, %309 : vector<8x64xf32>
    %cst_131 = arith.constant 0.000000e+00 : f32
    %311 = vector.broadcast %cst_131 : f32 to vector<8x64xf32>
    %312 = arith.maximumf %310, %311 : vector<8x64xf32>
    %c0_132 = arith.constant 0 : index
    %c0_133 = arith.constant 0 : index
    %313 = vector.load %arg20[%c0_132, %c0_133] : memref<64x32xf32, #tpu.memory_space<vmem>>, vector<64x32xf32>
    %cst_134 = arith.constant dense<0.000000e+00> : vector<8x32xf32>
    %314 = tpu.matmul %312, %313, %cst_134 {dimension_numbers = #tpu.dot_dimension_numbers<[1], [0], [0], [1], [0, 0, 1, 1], [], []>} : vector<8x64xf32>, vector<64x32xf32>, vector<8x32xf32> -> vector<8x32xf32>
    %c0_135 = arith.constant 0 : index
    %c0_136 = arith.constant 0 : index
    %315 = vector.load %arg21[%c0_135, %c0_136] : memref<1x32xf32, #tpu.memory_space<vmem>>, vector<1x32xf32>
    %316 = vector.broadcast %315 : vector<1x32xf32> to vector<8x32xf32>
    %317 = arith.addf %314, %316 : vector<8x32xf32>
    %c4 = arith.constant 4 : index
    %c0_137 = arith.constant 0 : index
    %c0_138 = arith.constant 0 : index
    %318 = vector.load %arg16[%c4, %c0_137, %c0_138] : memref<6x1x32xf32, #tpu.memory_space<vmem>>, vector<1x1x32xf32>
    %319 = vector.shape_cast %318 : vector<1x1x32xf32> to vector<1x32xf32>
    %c4_139 = arith.constant 4 : index
    %c0_140 = arith.constant 0 : index
    %c0_141 = arith.constant 0 : index
    %320 = vector.load %arg17[%c4_139, %c0_140, %c0_141] : memref<6x1x32xf32, #tpu.memory_space<vmem>>, vector<1x1x32xf32>
    %321 = vector.shape_cast %320 : vector<1x1x32xf32> to vector<1x32xf32>
    %cst_142 = arith.constant dense<0.000000e+00> : vector<8xf32>
    %322 = vector.multi_reduction <add>, %305, %cst_142 [1] : vector<8x32xf32> to vector<8xf32>
    %323 = vector.shape_cast %322 : vector<8xf32> to vector<8x1xf32>
    %cst_143 = arith.constant 3.200000e+01 : f32
    %324 = vector.broadcast %cst_143 : f32 to vector<8x1xf32>
    %325 = arith.divf %323, %324 : vector<8x1xf32>
    %326 = vector.broadcast %325 : vector<8x1xf32> to vector<8x32xf32>
    %327 = arith.subf %305, %326 : vector<8x32xf32>
    %328 = vector.broadcast %325 : vector<8x1xf32> to vector<8x32xf32>
    %329 = arith.subf %305, %328 : vector<8x32xf32>
    %330 = arith.mulf %327, %329 : vector<8x32xf32>
    %cst_144 = arith.constant dense<0.000000e+00> : vector<8xf32>
    %331 = vector.multi_reduction <add>, %330, %cst_144 [1] : vector<8x32xf32> to vector<8xf32>
    %332 = vector.shape_cast %331 : vector<8xf32> to vector<8x1xf32>
    %cst_145 = arith.constant 3.200000e+01 : f32
    %333 = vector.broadcast %cst_145 : f32 to vector<8x1xf32>
    %334 = arith.divf %332, %333 : vector<8x1xf32>
    %335 = vector.broadcast %325 : vector<8x1xf32> to vector<8x32xf32>
    %336 = arith.subf %305, %335 : vector<8x32xf32>
    %cst_146 = arith.constant 9.99999974E-6 : f32
    %337 = vector.broadcast %cst_146 : f32 to vector<8x1xf32>
    %338 = arith.addf %334, %337 : vector<8x1xf32>
    %339 = math.rsqrt %338 : vector<8x1xf32>
    %340 = vector.broadcast %339 : vector<8x1xf32> to vector<8x32xf32>
    %341 = arith.mulf %336, %340 : vector<8x32xf32>
    %342 = vector.broadcast %319 : vector<1x32xf32> to vector<8x32xf32>
    %343 = arith.mulf %341, %342 : vector<8x32xf32>
    %344 = vector.broadcast %321 : vector<1x32xf32> to vector<8x32xf32>
    %345 = arith.addf %343, %344 : vector<8x32xf32>
    %346 = arith.addf %305, %345 : vector<8x32xf32>
    %c5 = arith.constant 5 : index
    %c0_147 = arith.constant 0 : index
    %c0_148 = arith.constant 0 : index
    %347 = vector.load %arg16[%c5, %c0_147, %c0_148] : memref<6x1x32xf32, #tpu.memory_space<vmem>>, vector<1x1x32xf32>
    %348 = vector.shape_cast %347 : vector<1x1x32xf32> to vector<1x32xf32>
    %c5_149 = arith.constant 5 : index
    %c0_150 = arith.constant 0 : index
    %c0_151 = arith.constant 0 : index
    %349 = vector.load %arg17[%c5_149, %c0_150, %c0_151] : memref<6x1x32xf32, #tpu.memory_space<vmem>>, vector<1x1x32xf32>
    %350 = vector.shape_cast %349 : vector<1x1x32xf32> to vector<1x32xf32>
    %cst_152 = arith.constant dense<0.000000e+00> : vector<8xf32>
    %351 = vector.multi_reduction <add>, %317, %cst_152 [1] : vector<8x32xf32> to vector<8xf32>
    %352 = vector.shape_cast %351 : vector<8xf32> to vector<8x1xf32>
    %cst_153 = arith.constant 3.200000e+01 : f32
    %353 = vector.broadcast %cst_153 : f32 to vector<8x1xf32>
    %354 = arith.divf %352, %353 : vector<8x1xf32>
    %355 = vector.broadcast %354 : vector<8x1xf32> to vector<8x32xf32>
    %356 = arith.subf %317, %355 : vector<8x32xf32>
    %357 = vector.broadcast %354 : vector<8x1xf32> to vector<8x32xf32>
    %358 = arith.subf %317, %357 : vector<8x32xf32>
    %359 = arith.mulf %356, %358 : vector<8x32xf32>
    %cst_154 = arith.constant dense<0.000000e+00> : vector<8xf32>
    %360 = vector.multi_reduction <add>, %359, %cst_154 [1] : vector<8x32xf32> to vector<8xf32>
    %361 = vector.shape_cast %360 : vector<8xf32> to vector<8x1xf32>
    %cst_155 = arith.constant 3.200000e+01 : f32
    %362 = vector.broadcast %cst_155 : f32 to vector<8x1xf32>
    %363 = arith.divf %361, %362 : vector<8x1xf32>
    %364 = vector.broadcast %354 : vector<8x1xf32> to vector<8x32xf32>
    %365 = arith.subf %317, %364 : vector<8x32xf32>
    %cst_156 = arith.constant 9.99999974E-6 : f32
    %366 = vector.broadcast %cst_156 : f32 to vector<8x1xf32>
    %367 = arith.addf %363, %366 : vector<8x1xf32>
    %368 = math.rsqrt %367 : vector<8x1xf32>
    %369 = vector.broadcast %368 : vector<8x1xf32> to vector<8x32xf32>
    %370 = arith.mulf %365, %369 : vector<8x32xf32>
    %371 = vector.broadcast %348 : vector<1x32xf32> to vector<8x32xf32>
    %372 = arith.mulf %370, %371 : vector<8x32xf32>
    %373 = vector.broadcast %350 : vector<1x32xf32> to vector<8x32xf32>
    %374 = arith.addf %372, %373 : vector<8x32xf32>
    %375 = arith.addf %317, %374 : vector<8x32xf32>
    %376 = arith.addf %346, %375 : vector<8x32xf32>
    %c0_157 = arith.constant 0 : index
    %c0_158 = arith.constant 0 : index
    %c0_159 = arith.constant 0 : index
    %377 = vector.load %arg22[%c0_157, %c0_158, %c0_159] : memref<1x8x32xf32, #tpu.memory_space<vmem>>, vector<1x8x32xf32>
    %378 = vector.shape_cast %377 : vector<1x8x32xf32> to vector<8x32xf32>
    %379 = vector.shape_cast %376 : vector<8x32xf32> to vector<1x8x32xf32>
    tpu.vector_store %arg22[%c0_157, %c0_158, %c0_159], %379 {strides = array<i32>} : memref<1x8x32xf32, #tpu.memory_space<vmem>>, vector<1x8x32xf32>,
    return
  }
  func.func @transform_0(%arg0: i32) -> (i32, i32, i32) {
    %c0_i32 = arith.constant 0 : i32
    %c0_i32_0 = arith.constant 0 : i32
    %c0_i32_1 = arith.constant 0 : i32
    return %arg0, %c0_i32, %c0_i32_0 : i32, i32, i32
  }
  func.func @transform_1(%arg0: i32) -> (i32, i32, i32) {
    %c0_i32 = arith.constant 0 : i32
    %c0_i32_0 = arith.constant 0 : i32
    %c0_i32_1 = arith.constant 0 : i32
    return %arg0, %c0_i32, %c0_i32_0 : i32, i32, i32
  }
  func.func @transform_2(%arg0: i32) -> (i32, i32, i32) {
    %c0_i32 = arith.constant 0 : i32
    %c0_i32_0 = arith.constant 0 : i32
    %c0_i32_1 = arith.constant 0 : i32
    return %arg0, %c0_i32, %c0_i32_0 : i32, i32, i32
  }
  func.func @transform_3(%arg0: i32) -> (i32, i32) {
    %c0_i32 = arith.constant 0 : i32
    %c0_i32_0 = arith.constant 0 : i32
    %c0_i32_1 = arith.constant 0 : i32
    return %c0_i32, %c0_i32_0 : i32, i32
  }
  func.func @transform_4(%arg0: i32) -> (i32, i32) {
    %c0_i32 = arith.constant 0 : i32
    %c0_i32_0 = arith.constant 0 : i32
    %c0_i32_1 = arith.constant 0 : i32
    return %c0_i32, %c0_i32_0 : i32, i32
  }
  func.func @transform_5(%arg0: i32) -> (i32, i32) {
    %c0_i32 = arith.constant 0 : i32
    %c0_i32_0 = arith.constant 0 : i32
    %c0_i32_1 = arith.constant 0 : i32
    return %c0_i32, %c0_i32_0 : i32, i32
  }
  func.func @transform_6(%arg0: i32) -> (i32, i32) {
    %c0_i32 = arith.constant 0 : i32
    %c0_i32_0 = arith.constant 0 : i32
    %c0_i32_1 = arith.constant 0 : i32
    return %c0_i32, %c0_i32_0 : i32, i32
  }
  func.func @transform_7(%arg0: i32) -> (i32, i32) {
    %c0_i32 = arith.constant 0 : i32
    %c0_i32_0 = arith.constant 0 : i32
    %c0_i32_1 = arith.constant 0 : i32
    return %c0_i32, %c0_i32_0 : i32, i32
  }
  func.func @transform_8(%arg0: i32) -> (i32, i32) {
    %c0_i32 = arith.constant 0 : i32
    %c0_i32_0 = arith.constant 0 : i32
    %c0_i32_1 = arith.constant 0 : i32
    return %c0_i32, %c0_i32_0 : i32, i32
  }
  func.func @transform_9(%arg0: i32) -> (i32, i32) {
    %c0_i32 = arith.constant 0 : i32
    %c0_i32_0 = arith.constant 0 : i32
    %c0_i32_1 = arith.constant 0 : i32
    return %c0_i32, %c0_i32_0 : i32, i32
  }
  func.func @transform_10(%arg0: i32) -> (i32, i32) {
    %c0_i32 = arith.constant 0 : i32
    %c0_i32_0 = arith.constant 0 : i32
    %c0_i32_1 = arith.constant 0 : i32
    return %c0_i32, %c0_i32_0 : i32, i32
  }
  func.func @transform_11(%arg0: i32) -> (i32, i32) {
    %c0_i32 = arith.constant 0 : i32
    %c0_i32_0 = arith.constant 0 : i32
    %c0_i32_1 = arith.constant 0 : i32
    return %c0_i32, %c0_i32_0 : i32, i32
  }
  func.func @transform_12(%arg0: i32) -> (i32, i32) {
    %c0_i32 = arith.constant 0 : i32
    %c0_i32_0 = arith.constant 0 : i32
    %c0_i32_1 = arith.constant 0 : i32
    return %c0_i32, %c0_i32_0 : i32, i32
  }
  func.func @transform_13(%arg0: i32) -> (i32, i32) {
    %c0_i32 = arith.constant 0 : i32
    %c0_i32_0 = arith.constant 0 : i32
    %c0_i32_1 = arith.constant 0 : i32
    return %c0_i32, %c0_i32_0 : i32, i32
  }
  func.func @transform_14(%arg0: i32) -> (i32, i32) {
    %c0_i32 = arith.constant 0 : i32
    %c0_i32_0 = arith.constant 0 : i32
    %c0_i32_1 = arith.constant 0 : i32
    return %c0_i32, %c0_i32_0 : i32, i32
  }
  func.func @transform_15(%arg0: i32) -> (i32, i32, i32) {
    %c0_i32 = arith.constant 0 : i32
    %c0_i32_0 = arith.constant 0 : i32
    %c0_i32_1 = arith.constant 0 : i32
    %c0_i32_2 = arith.constant 0 : i32
    return %c0_i32, %c0_i32_0, %c0_i32_1 : i32, i32, i32
  }
  func.func @transform_16(%arg0: i32) -> (i32, i32, i32) {
    %c0_i32 = arith.constant 0 : i32
    %c0_i32_0 = arith.constant 0 : i32
    %c0_i32_1 = arith.constant 0 : i32
    %c0_i32_2 = arith.constant 0 : i32
    return %c0_i32, %c0_i32_0, %c0_i32_1 : i32, i32, i32
  }
  func.func @transform_17(%arg0: i32) -> (i32, i32) {
    %c0_i32 = arith.constant 0 : i32
    %c0_i32_0 = arith.constant 0 : i32
    %c0_i32_1 = arith.constant 0 : i32
    return %c0_i32, %c0_i32_0 : i32, i32
  }
  func.func @transform_18(%arg0: i32) -> (i32, i32) {
    %c0_i32 = arith.constant 0 : i32
    %c0_i32_0 = arith.constant 0 : i32
    %c0_i32_1 = arith.constant 0 : i32
    return %c0_i32, %c0_i32_0 : i32, i32
  }
  func.func @transform_19(%arg0: i32) -> (i32, i32) {
    %c0_i32 = arith.constant 0 : i32
    %c0_i32_0 = arith.constant 0 : i32
    %c0_i32_1 = arith.constant 0 : i32
    return %c0_i32, %c0_i32_0 : i32, i32
  }
  func.func @transform_20(%arg0: i32) -> (i32, i32) {
    %c0_i32 = arith.constant 0 : i32
    %c0_i32_0 = arith.constant 0 : i32
    %c0_i32_1 = arith.constant 0 : i32
    return %c0_i32, %c0_i32_0 : i32, i32
  }
  func.func @transform_21(%arg0: i32) -> (i32, i32, i32) {
    %c0_i32 = arith.constant 0 : i32
    %c0_i32_0 = arith.constant 0 : i32
    %c0_i32_1 = arith.constant 0 : i32
    return %arg0, %c0_i32, %c0_i32_0 : i32, i32, i32
  }
}

</mosaic_0001>

<llo_original>
// kernel: decoder_block_pallas.1
$region0: #{decoder_block_pallas.1}
  #allocation0 [shape = 'u32[]', space=smem, size = 0x4, offset = 0x4, fixed_abs, tag = 'smem constant byte address 0x4 - core index']
  #allocation1 [shape = 'u32[144,128]{1,0:T(1,128)}', space=vmem, size = 0x12000, scoped, tag = 'internal scratch']
  %s0 = inlined_call_operand.vmem [shape: f32[2,8,32], index: 0, kind: input, shape index: {}]
  %s1 = inlined_call_operand.vmem [shape: f32[2,8,32], index: 1, kind: input, shape index: {}]
  %s2 = inlined_call_operand.vmem [shape: f32[2,8,32], index: 2, kind: input, shape index: {}]
  %s3 = inlined_call_operand.vmem [shape: f32[32,64], index: 3, kind: input, shape index: {}]
  %s4 = inlined_call_operand.vmem [shape: f32[1,64], index: 4, kind: input, shape index: {}]
  %s5 = inlined_call_operand.vmem [shape: f32[32,32], index: 5, kind: input, shape index: {}]
  %s6 = inlined_call_operand.vmem [shape: f32[1,32], index: 6, kind: input, shape index: {}]
  %s7 = inlined_call_operand.vmem [shape: f32[32,32], index: 7, kind: input, shape index: {}]
  %s8 = inlined_call_operand.vmem [shape: f32[1,32], index: 8, kind: input, shape index: {}]
  %s9 = inlined_call_operand.vmem [shape: f32[32,64], index: 9, kind: input, shape index: {}]
  %s10 = inlined_call_operand.vmem [shape: f32[1,64], index: 10, kind: input, shape index: {}]
  %s11 = inlined_call_operand.vmem [shape: f32[32,32], index: 11, kind: input, shape index: {}]
  %s12 = inlined_call_operand.vmem [shape: f32[1,32], index: 12, kind: input, shape index: {}]
  %s13 = inlined_call_operand.vmem [shape: f32[32,32], index: 13, kind: input, shape index: {}]
  %s14 = inlined_call_operand.vmem [shape: f32[1,32], index: 14, kind: input, shape index: {}]
  %s15 = inlined_call_operand.vmem [shape: f32[6,1,32], index: 15, kind: input, shape index: {}]
  %s16 = inlined_call_operand.vmem [shape: f32[6,1,32], index: 16, kind: input, shape index: {}]
  %s17 = inlined_call_operand.vmem [shape: f32[32,64], index: 17, kind: input, shape index: {}]
  %s18 = inlined_call_operand.vmem [shape: f32[1,64], index: 18, kind: input, shape index: {}]
  %s19 = inlined_call_operand.vmem [shape: f32[64,32], index: 19, kind: input, shape index: {}]
  %s20 = inlined_call_operand.vmem [shape: f32[1,32], index: 20, kind: input, shape index: {}]
  %s21 = inlined_call_operand.hbm [shape: f32[2,8,32], index: 21, kind: output, shape index: {}]
  %s22 = sld [smem:[#allocation0]]
  $region117: #{decoder_block_pallas.1} parent=0
    _
  %s24 = ssub.s32 1, %s22
  %s25 = scalar_select 0, %s24, %s22
  $region1: #{decoder_block_pallas.1} parent=0
    #allocation2 [shape = 'u8[8192]{0}', space=vmem, size = 0x2000, scoped, tag = 'output window, operand 0']
    #allocation3 [shape = 's32[2]{0}', space=sflag, size = 0x8, scoped, tag = 'scoped memory for decoder_block_pallas.1']
    %26 = vsyncpa [#allocation3], 0
    %s27 = scalar_lea.sflag [#allocation3], 1
    %28 = vsyncpa %s27, 0
    loop: start=0, step=1, limit=4
    $region2: #{decoder_block_pallas.1} parent=1 // loop_pre_header
      _
    $region3: #{decoder_block_pallas.1} parent=1 // loop_header
      %s30 = sphi 0, %s34
      %p31 = scmp.ge.s32.totalorder %s30, 4
      %s40 = sphi 0, %s42
      %s43 = sphi 0, %s40
      %s44 = sphi 0, %s43
      %s60 = sphi 0, %s44
      %s66 = sphi 0, %s68
      %s69 = sphi 0, %s66
      %s70 = sphi 0, %s69
      %s86 = sphi 0, %s70
      %s92 = sphi 0, %s94
      %s95 = sphi 0, %s92
      %s96 = sphi 0, %s95
      %s112 = sphi 0, %s96
      %s116 = sphi 0, %s116
      %s118 = sphi 0, %s116
      %s119 = sphi 0, %s118
      %s133 = sphi 0, %s119
      %s137 = sphi 0, %s137
      %s139 = sphi 0, %s137
      %s140 = sphi 0, %s139
      %s154 = sphi 0, %s140
      %s158 = sphi 0, %s158
      %s160 = sphi 0, %s158
      %s161 = sphi 0, %s160
      %s175 = sphi 0, %s161
      %s179 = sphi 0, %s179
      %s181 = sphi 0, %s179
      %s182 = sphi 0, %s181
      %s196 = sphi 0, %s182
      %s200 = sphi 0, %s200
      %s202 = sphi 0, %s200
      %s203 = sphi 0, %s202
      %s217 = sphi 0, %s203
      %s221 = sphi 0, %s221
      %s223 = sphi 0, %s221
      %s224 = sphi 0, %s223
      %s238 = sphi 0, %s224
      %s242 = sphi 0, %s242
      %s244 = sphi 0, %s242
      %s245 = sphi 0, %s244
      %s259 = sphi 0, %s245
      %s263 = sphi 0, %s263
      %s265 = sphi 0, %s263
      %s266 = sphi 0, %s265
      %s280 = sphi 0, %s266
      %s284 = sphi 0, %s284
      %s286 = sphi 0, %s284
      %s287 = sphi 0, %s286
      %s301 = sphi 0, %s287
      %s305 = sphi 0, %s305
      %s307 = sphi 0, %s305
      %s308 = sphi 0, %s307
      %s322 = sphi 0, %s308
      %s326 = sphi 0, %s326
      %s328 = sphi 0, %s326
      %s329 = sphi 0, %s328
      %s343 = sphi 0, %s329
      %s347 = sphi 0, %s347
      %s349 = sphi 0, %s347
      %s350 = sphi 0, %s349
      %s364 = sphi 0, %s350
      %s368 = sphi 0, %s368
      %s370 = sphi 0, %s368
      %s371 = sphi 0, %s370
      %s385 = sphi 0, %s371
      %s389 = sphi 0, %s389
      %s391 = sphi 0, %s389
      %s392 = sphi 0, %s391
      %s406 = sphi 0, %s392
      %s410 = sphi 0, %s410
      %s412 = sphi 0, %s410
      %s413 = sphi 0, %s412
      %s427 = sphi 0, %s413
      %s431 = sphi 0, %s431
      %s433 = sphi 0, %s431
      %s434 = sphi 0, %s433
      %s448 = sphi 0, %s434
      %s452 = sphi 0, %s452
      %s454 = sphi 0, %s452
      %s455 = sphi 0, %s454
      %s469 = sphi 0, %s455
      %s473 = sphi 0, %s473
      %s475 = sphi 0, %s473
      %s476 = sphi 0, %s475
      %s490 = sphi 0, %s476
      %s496 = sphi 0, %s498
      %s499 = sphi 0, %s496
      %s500 = sphi 0, %s499
      %s516 = sphi 0, %s500
    $region4: #{decoder_block_pallas.1} parent=1 // loop_header_branch
      %33 = sbr.rel (%p31) target = $region8
    $region5: #{decoder_block_pallas.1} parent=1 // loop_body
      %s35 = ssub.s32 %s30, 1
      %s36 = ssub.s32 %s30, 2
      %s37 = sadd.s32 %s30, 1
      %s38 = ssub.s32 %s30, %s37
      %p39 = scmp.eq.s32.totalorder %s38, 0
      %s41 = sadd.s32 %s40, 1
      %s42 = scalar_select %p39, %s40, %s41
      %p45 = pneg %p39
      %p46 = scmp.eq.s32.totalorder %s30, 1
      %p47 = por %p45, %p46
      %p48 = scmp.ne.s32.totalorder %s40, %s43
      %p49 = scmp.eq.s32.totalorder %s30, 0
      %p50 = por %p48, %p49
      %p51 = scmp.ne.s32.totalorder %s40, %s43
      %p52 = scmp.eq.s32.totalorder %s35, 1
      %p53 = por %p51, %p52
      %p54 = scmp.ne.s32.totalorder %s43, %s44
      %p55 = scmp.eq.s32.totalorder %s35, 0
      %p56 = por %p54, %p55
      %p57 = scmp.ne.s32.totalorder %s43, %s44
      %p58 = scmp.eq.s32.totalorder %s36, 1
      %p59 = por %p57, %p58
      %p61 = scmp.ne.s32.totalorder %s44, %s60
      %p62 = scmp.eq.s32.totalorder %s36, 0
      %p63 = por %p61, %p62
      %s64 = ssub.s32 %s30, %s37
      %p65 = scmp.eq.s32.totalorder %s64, 0
      %s67 = sadd.s32 %s66, 1
      %s68 = scalar_select %p65, %s66, %s67
      %p71 = pneg %p65
      %p72 = scmp.eq.s32.totalorder %s30, 1
      %p73 = por %p71, %p72
      %p74 = scmp.ne.s32.totalorder %s66, %s69
      %p75 = scmp.eq.s32.totalorder %s30, 0
      %p76 = por %p74, %p75
      %p77 = scmp.ne.s32.totalorder %s66, %s69
      %p78 = scmp.eq.s32.totalorder %s35, 1
      %p79 = por %p77, %p78
      %p80 = scmp.ne.s32.totalorder %s69, %s70
      %p81 = scmp.eq.s32.totalorder %s35, 0
      %p82 = por %p80, %p81
      %p83 = scmp.ne.s32.totalorder %s69, %s70
      %p84 = scmp.eq.s32.totalorder %s36, 1
      %p85 = por %p83, %p84
      %p87 = scmp.ne.s32.totalorder %s70, %s86
      %p88 = scmp.eq.s32.totalorder %s36, 0
      %p89 = por %p87, %p88
      %s90 = ssub.s32 %s30, %s37
      %p91 = scmp.eq.s32.totalorder %s90, 0
      %s93 = sadd.s32 %s92, 1
      %s94 = scalar_select %p91, %s92, %s93
      %p97 = pneg %p91
      %p98 = scmp.eq.s32.totalorder %s30, 1
      %p99 = por %p97, %p98
      %p100 = scmp.ne.s32.totalorder %s92, %s95
      %p101 = scmp.eq.s32.totalorder %s30, 0
      %p102 = por %p100, %p101
      %p103 = scmp.ne.s32.totalorder %s92, %s95
      %p104 = scmp.eq.s32.totalorder %s35, 1
      %p105 = por %p103, %p104
      %p106 = scmp.ne.s32.totalorder %s95, %s96
      %p107 = scmp.eq.s32.totalorder %s35, 0
      %p108 = por %p106, %p107
      %p109 = scmp.ne.s32.totalorder %s95, %s96
      %p110 = scmp.eq.s32.totalorder %s36, 1
      %p111 = por %p109, %p110
      %p113 = scmp.ne.s32.totalorder %s96, %s112
      %p114 = scmp.eq.s32.totalorder %s36, 0
      %p115 = por %p113, %p114
      %s117 = sadd.s32 %s116, 1
      %p120 = scmp.eq.s32.totalorder %s30, 1
      %p121 = scmp.ne.s32.totalorder %s116, %s118
      %p122 = scmp.eq.s32.totalorder %s30, 0
      %p123 = por %p121, %p122
      %p124 = scmp.ne.s32.totalorder %s116, %s118
      %p125 = scmp.eq.s32.totalorder %s35, 1
      %p126 = por %p124, %p125
      %p127 = scmp.ne.s32.totalorder %s118, %s119
      %p128 = scmp.eq.s32.totalorder %s35, 0
      %p129 = por %p127, %p128
      %p130 = scmp.ne.s32.totalorder %s118, %s119
      %p131 = scmp.eq.s32.totalorder %s36, 1
      %p132 = por %p130, %p131
      %p134 = scmp.ne.s32.totalorder %s119, %s133
      %p135 = scmp.eq.s32.totalorder %s36, 0
      %p136 = por %p134, %p135
      %s138 = sadd.s32 %s137, 1
      %p141 = scmp.eq.s32.totalorder %s30, 1
      %p142 = scmp.ne.s32.totalorder %s137, %s139
      %p143 = scmp.eq.s32.totalorder %s30, 0
      %p144 = por %p142, %p143
      %p145 = scmp.ne.s32.totalorder %s137, %s139
      %p146 = scmp.eq.s32.totalorder %s35, 1
      %p147 = por %p145, %p146
      %p148 = scmp.ne.s32.totalorder %s139, %s140
      %p149 = scmp.eq.s32.totalorder %s35, 0
      %p150 = por %p148, %p149
      %p151 = scmp.ne.s32.totalorder %s139, %s140
      %p152 = scmp.eq.s32.totalorder %s36, 1
      %p153 = por %p151, %p152
      %p155 = scmp.ne.s32.totalorder %s140, %s154
      %p156 = scmp.eq.s32.totalorder %s36, 0
      %p157 = por %p155, %p156
      %s159 = sadd.s32 %s158, 1
      %p162 = scmp.eq.s32.totalorder %s30, 1
      %p163 = scmp.ne.s32.totalorder %s158, %s160
      %p164 = scmp.eq.s32.totalorder %s30, 0
      %p165 = por %p163, %p164
      %p166 = scmp.ne.s32.totalorder %s158, %s160
      %p167 = scmp.eq.s32.totalorder %s35, 1
      %p168 = por %p166, %p167
      %p169 = scmp.ne.s32.totalorder %s160, %s161
      %p170 = scmp.eq.s32.totalorder %s35, 0
      %p171 = por %p169, %p170
      %p172 = scmp.ne.s32.totalorder %s160, %s161
      %p173 = scmp.eq.s32.totalorder %s36, 1
      %p174 = por %p172, %p173
      %p176 = scmp.ne.s32.totalorder %s161, %s175
      %p177 = scmp.eq.s32.totalorder %s36, 0
      %p178 = por %p176, %p177
      %s180 = sadd.s32 %s179, 1
      %p183 = scmp.eq.s32.totalorder %s30, 1
      %p184 = scmp.ne.s32.totalorder %s179, %s181
      %p185 = scmp.eq.s32.totalorder %s30, 0
      %p186 = por %p184, %p185
      %p187 = scmp.ne.s32.totalorder %s179, %s181
      %p188 = scmp.eq.s32.totalorder %s35, 1
      %p189 = por %p187, %p188
      %p190 = scmp.ne.s32.totalorder %s181, %s182
      %p191 = scmp.eq.s32.totalorder %s35, 0
      %p192 = por %p190, %p191
      %p193 = scmp.ne.s32.totalorder %s181, %s182
      %p194 = scmp.eq.s32.totalorder %s36, 1
      %p195 = por %p193, %p194
      %p197 = scmp.ne.s32.totalorder %s182, %s196
      %p198 = scmp.eq.s32.totalorder %s36, 0
      %p199 = por %p197, %p198
      %s201 = sadd.s32 %s200, 1
      %p204 = scmp.eq.s32.totalorder %s30, 1
      %p205 = scmp.ne.s32.totalorder %s200, %s202
      %p206 = scmp.eq.s32.totalorder %s30, 0
      %p207 = por %p205, %p206
      %p208 = scmp.ne.s32.totalorder %s200, %s202
      %p209 = scmp.eq.s32.totalorder %s35, 1
      %p210 = por %p208, %p209
      %p211 = scmp.ne.s32.totalorder %s202, %s203
      %p212 = scmp.eq.s32.totalorder %s35, 0
      %p213 = por %p211, %p212
      %p214 = scmp.ne.s32.totalorder %s202, %s203
      %p215 = scmp.eq.s32.totalorder %s36, 1
      %p216 = por %p214, %p215
      %p218 = scmp.ne.s32.totalorder %s203, %s217
      %p219 = scmp.eq.s32.totalorder %s36, 0
      %p220 = por %p218, %p219
      %s222 = sadd.s32 %s221, 1
      %p225 = scmp.eq.s32.totalorder %s30, 1
      %p226 = scmp.ne.s32.totalorder %s221, %s223
      %p227 = scmp.eq.s32.totalorder %s30, 0
      %p228 = por %p226, %p227
      %p229 = scmp.ne.s32.totalorder %s221, %s223
      %p230 = scmp.eq.s32.totalorder %s35, 1
      %p231 = por %p229, %p230
      %p232 = scmp.ne.s32.totalorder %s223, %s224
      %p233 = scmp.eq.s32.totalorder %s35, 0
      %p234 = por %p232, %p233
      %p235 = scmp.ne.s32.totalorder %s223, %s224
      %p236 = scmp.eq.s32.totalorder %s36, 1
      %p237 = por %p235, %p236
      %p239 = scmp.ne.s32.totalorder %s224, %s238
      %p240 = scmp.eq.s32.totalorder %s36, 0
      %p241 = por %p239, %p240
      %s243 = sadd.s32 %s242, 1
      %p246 = scmp.eq.s32.totalorder %s30, 1
      %p247 = scmp.ne.s32.totalorder %s242, %s244
      %p248 = scmp.eq.s32.totalorder %s30, 0
      %p249 = por %p247, %p248
      %p250 = scmp.ne.s32.totalorder %s242, %s244
      %p251 = scmp.eq.s32.totalorder %s35, 1
      %p252 = por %p250, %p251
      %p253 = scmp.ne.s32.totalorder %s244, %s245
      %p254 = scmp.eq.s32.totalorder %s35, 0
      %p255 = por %p253, %p254
      %p256 = scmp.ne.s32.totalorder %s244, %s245
      %p257 = scmp.eq.s32.totalorder %s36, 1
      %p258 = por %p256, %p257
      %p260 = scmp.ne.s32.totalorder %s245, %s259
      %p261 = scmp.eq.s32.totalorder %s36, 0
      %p262 = por %p260, %p261
      %s264 = sadd.s32 %s263, 1
      %p267 = scmp.eq.s32.totalorder %s30, 1
      %p268 = scmp.ne.s32.totalorder %s263, %s265
      %p269 = scmp.eq.s32.totalorder %s30, 0
      %p270 = por %p268, %p269
      %p271 = scmp.ne.s32.totalorder %s263, %s265
      %p272 = scmp.eq.s32.totalorder %s35, 1
      %p273 = por %p271, %p272
      %p274 = scmp.ne.s32.totalorder %s265, %s266
      %p275 = scmp.eq.s32.totalorder %s35, 0
      %p276 = por %p274, %p275
      %p277 = scmp.ne.s32.totalorder %s265, %s266
      %p278 = scmp.eq.s32.totalorder %s36, 1
      %p279 = por %p277, %p278
      %p281 = scmp.ne.s32.totalorder %s266, %s280
      %p282 = scmp.eq.s32.totalorder %s36, 0
      %p283 = por %p281, %p282
      %s285 = sadd.s32 %s284, 1
      %p288 = scmp.eq.s32.totalorder %s30, 1
      %p289 = scmp.ne.s32.totalorder %s284, %s286
      %p290 = scmp.eq.s32.totalorder %s30, 0
      %p291 = por %p289, %p290
      %p292 = scmp.ne.s32.totalorder %s284, %s286
      %p293 = scmp.eq.s32.totalorder %s35, 1
      %p294 = por %p292, %p293
      %p295 = scmp.ne.s32.totalorder %s286, %s287
      %p296 = scmp.eq.s32.totalorder %s35, 0
      %p297 = por %p295, %p296
      %p298 = scmp.ne.s32.totalorder %s286, %s287
      %p299 = scmp.eq.s32.totalorder %s36, 1
      %p300 = por %p298, %p299
      %p302 = scmp.ne.s32.totalorder %s287, %s301
      %p303 = scmp.eq.s32.totalorder %s36, 0
      %p304 = por %p302, %p303
      %s306 = sadd.s32 %s305, 1
      %p309 = scmp.eq.s32.totalorder %s30, 1
      %p310 = scmp.ne.s32.totalorder %s305, %s307
      %p311 = scmp.eq.s32.totalorder %s30, 0
      %p312 = por %p310, %p311
      %p313 = scmp.ne.s32.totalorder %s305, %s307
      %p314 = scmp.eq.s32.totalorder %s35, 1
      %p315 = por %p313, %p314
      %p316 = scmp.ne.s32.totalorder %s307, %s308
      %p317 = scmp.eq.s32.totalorder %s35, 0
      %p318 = por %p316, %p317
      %p319 = scmp.ne.s32.totalorder %s307, %s308
      %p320 = scmp.eq.s32.totalorder %s36, 1
      %p321 = por %p319, %p320
      %p323 = scmp.ne.s32.totalorder %s308, %s322
      %p324 = scmp.eq.s32.totalorder %s36, 0
      %p325 = por %p323, %p324
      %s327 = sadd.s32 %s326, 1
      %p330 = scmp.eq.s32.totalorder %s30, 1
      %p331 = scmp.ne.s32.totalorder %s326, %s328
      %p332 = scmp.eq.s32.totalorder %s30, 0
      %p333 = por %p331, %p332
      %p334 = scmp.ne.s32.totalorder %s326, %s328
      %p335 = scmp.eq.s32.totalorder %s35, 1
      %p336 = por %p334, %p335
      %p337 = scmp.ne.s32.totalorder %s328, %s329
      %p338 = scmp.eq.s32.totalorder %s35, 0
      %p339 = por %p337, %p338
      %p340 = scmp.ne.s32.totalorder %s328, %s329
      %p341 = scmp.eq.s32.totalorder %s36, 1
      %p342 = por %p340, %p341
      %p344 = scmp.ne.s32.totalorder %s329, %s343
      %p345 = scmp.eq.s32.totalorder %s36, 0
      %p346 = por %p344, %p345
      %s348 = sadd.s32 %s347, 1
      %p351 = scmp.eq.s32.totalorder %s30, 1
      %p352 = scmp.ne.s32.totalorder %s347, %s349
      %p353 = scmp.eq.s32.totalorder %s30, 0
      %p354 = por %p352, %p353
      %p355 = scmp.ne.s32.totalorder %s347, %s349
      %p356 = scmp.eq.s32.totalorder %s35, 1
      %p357 = por %p355, %p356
      %p358 = scmp.ne.s32.totalorder %s349, %s350
      %p359 = scmp.eq.s32.totalorder %s35, 0
      %p360 = por %p358, %p359
      %p361 = scmp.ne.s32.totalorder %s349, %s350
      %p362 = scmp.eq.s32.totalorder %s36, 1
      %p363 = por %p361, %p362
      %p365 = scmp.ne.s32.totalorder %s350, %s364
      %p366 = scmp.eq.s32.totalorder %s36, 0
      %p367 = por %p365, %p366
      %s369 = sadd.s32 %s368, 1
      %p372 = scmp.eq.s32.totalorder %s30, 1
      %p373 = scmp.ne.s32.totalorder %s368, %s370
      %p374 = scmp.eq.s32.totalorder %s30, 0
      %p375 = por %p373, %p374
      %p376 = scmp.ne.s32.totalorder %s368, %s370
      %p377 = scmp.eq.s32.totalorder %s35, 1
      %p378 = por %p376, %p377
      %p379 = scmp.ne.s32.totalorder %s370, %s371
      %p380 = scmp.eq.s32.totalorder %s35, 0
      %p381 = por %p379, %p380
      %p382 = scmp.ne.s32.totalorder %s370, %s371
      %p383 = scmp.eq.s32.totalorder %s36, 1
      %p384 = por %p382, %p383
      %p386 = scmp.ne.s32.totalorder %s371, %s385
      %p387 = scmp.eq.s32.totalorder %s36, 0
      %p388 = por %p386, %p387
      %s390 = sadd.s32 %s389, 1
      %p393 = scmp.eq.s32.totalorder %s30, 1
      %p394 = scmp.ne.s32.totalorder %s389, %s391
      %p395 = scmp.eq.s32.totalorder %s30, 0
      %p396 = por %p394, %p395
      %p397 = scmp.ne.s32.totalorder %s389, %s391
      %p398 = scmp.eq.s32.totalorder %s35, 1
      %p399 = por %p397, %p398
      %p400 = scmp.ne.s32.totalorder %s391, %s392
      %p401 = scmp.eq.s32.totalorder %s35, 0
      %p402 = por %p400, %p401
      %p403 = scmp.ne.s32.totalorder %s391, %s392
      %p404 = scmp.eq.s32.totalorder %s36, 1
      %p405 = por %p403, %p404
      %p407 = scmp.ne.s32.totalorder %s392, %s406
      %p408 = scmp.eq.s32.totalorder %s36, 0
      %p409 = por %p407, %p408
      %s411 = sadd.s32 %s410, 1
      %p414 = scmp.eq.s32.totalorder %s30, 1
      %p415 = scmp.ne.s32.totalorder %s410, %s412
      %p416 = scmp.eq.s32.totalorder %s30, 0
      %p417 = por %p415, %p416
      %p418 = scmp.ne.s32.totalorder %s410, %s412
      %p419 = scmp.eq.s32.totalorder %s35, 1
      %p420 = por %p418, %p419
      %p421 = scmp.ne.s32.totalorder %s412, %s413
      %p422 = scmp.eq.s32.totalorder %s35, 0
      %p423 = por %p421, %p422
      %p424 = scmp.ne.s32.totalorder %s412, %s413
      %p425 = scmp.eq.s32.totalorder %s36, 1
      %p426 = por %p424, %p425
      %p428 = scmp.ne.s32.totalorder %s413, %s427
      %p429 = scmp.eq.s32.totalorder %s36, 0
      %p430 = por %p428, %p429
      %s432 = sadd.s32 %s431, 1
      %p435 = scmp.eq.s32.totalorder %s30, 1
      %p436 = scmp.ne.s32.totalorder %s431, %s433
      %p437 = scmp.eq.s32.totalorder %s30, 0
      %p438 = por %p436, %p437
      %p439 = scmp.ne.s32.totalorder %s431, %s433
      %p440 = scmp.eq.s32.totalorder %s35, 1
      %p441 = por %p439, %p440
      %p442 = scmp.ne.s32.totalorder %s433, %s434
      %p443 = scmp.eq.s32.totalorder %s35, 0
      %p444 = por %p442, %p443
      %p445 = scmp.ne.s32.totalorder %s433, %s434
      %p446 = scmp.eq.s32.totalorder %s36, 1
      %p447 = por %p445, %p446
      %p449 = scmp.ne.s32.totalorder %s434, %s448
      %p450 = scmp.eq.s32.totalorder %s36, 0
      %p451 = por %p449, %p450
      %s453 = sadd.s32 %s452, 1
      %p456 = scmp.eq.s32.totalorder %s30, 1
      %p457 = scmp.ne.s32.totalorder %s452, %s454
      %p458 = scmp.eq.s32.totalorder %s30, 0
      %p459 = por %p457, %p458
      %p460 = scmp.ne.s32.totalorder %s452, %s454
      %p461 = scmp.eq.s32.totalorder %s35, 1
      %p462 = por %p460, %p461
      %p463 = scmp.ne.s32.totalorder %s454, %s455
      %p464 = scmp.eq.s32.totalorder %s35, 0
      %p465 = por %p463, %p464
      %p466 = scmp.ne.s32.totalorder %s454, %s455
      %p467 = scmp.eq.s32.totalorder %s36, 1
      %p468 = por %p466, %p467
      %p470 = scmp.ne.s32.totalorder %s455, %s469
      %p471 = scmp.eq.s32.totalorder %s36, 0
      %p472 = por %p470, %p471
      %s474 = sadd.s32 %s473, 1
      %p477 = scmp.eq.s32.totalorder %s30, 1
      %p478 = scmp.ne.s32.totalorder %s473, %s475
      %p479 = scmp.eq.s32.totalorder %s30, 0
      %p480 = por %p478, %p479
      %p481 = scmp.ne.s32.totalorder %s473, %s475
      %p482 = scmp.eq.s32.totalorder %s35, 1
      %p483 = por %p481, %p482
      %p484 = scmp.ne.s32.totalorder %s475, %s476
      %p485 = scmp.eq.s32.totalorder %s35, 0
      %p486 = por %p484, %p485
      %p487 = scmp.ne.s32.totalorder %s475, %s476
      %p488 = scmp.eq.s32.totalorder %s36, 1
      %p489 = por %p487, %p488
      %p491 = scmp.ne.s32.totalorder %s476, %s490
      %p492 = scmp.eq.s32.totalorder %s36, 0
      %p493 = por %p491, %p492
      %s494 = ssub.s32 %s30, %s37
      %p495 = scmp.eq.s32.totalorder %s494, 0
      %s497 = sadd.s32 %s496, 1
      %s498 = scalar_select %p495, %s496, %s497
      %p501 = pneg %p495
      %p502 = scmp.eq.s32.totalorder %s30, 1
      %p503 = por %p501, %p502
      %p504 = scmp.ne.s32.totalorder %s496, %s499
      %p505 = scmp.eq.s32.totalorder %s30, 0
      %p506 = por %p504, %p505
      %p507 = scmp.ne.s32.totalorder %s496, %s499
      %p508 = scmp.eq.s32.totalorder %s35, 1
      %p509 = por %p507, %p508
      %p510 = scmp.ne.s32.totalorder %s499, %s500
      %p511 = scmp.eq.s32.totalorder %s35, 0
      %p512 = por %p510, %p511
      %p513 = scmp.ne.s32.totalorder %s499, %s500
      %p514 = scmp.eq.s32.totalorder %s36, 1
      %p515 = por %p513, %p514
      %p517 = scmp.ne.s32.totalorder %s500, %s516
      %p518 = scmp.eq.s32.totalorder %s36, 0
      %p519 = por %p517, %p518
      %p520 = scmp.le.s32.totalorder 1, %s30
      %p521 = scmp.lt.s32.totalorder %s30, 3
      %p522 = pnand %p520, %p521
      %p523 = pneg %p522
      // Predicated region
      $region9: #{decoder_block_pallas.1} parent=5 // pred_check
        _
      $region10: #{decoder_block_pallas.1} parent=5 // pred_check_branch
        %525 = sbr.rel (%p522) target = $region12
      $region11: #{decoder_block_pallas.1} parent=5 // pred_region
        %s526 = ssub.s32 %s30, 1
        // Predicated region
        $region13: #{decoder_block_pallas.1} parent=11 // pred_check
          %p527 = pneg %p129
        $region14: #{decoder_block_pallas.1} parent=11 // pred_check_branch
          %529 = sbr.rel (%p527) target = $region16
        $region15: #{decoder_block_pallas.1} parent=11 // pred_region
          _
        $region16: #{decoder_block_pallas.1} parent=11 // pred_fallthru
          _
        // Predicated region
        $region17: #{decoder_block_pallas.1} parent=11 // pred_check
          %p530 = pneg %p150
        $region18: #{decoder_block_pallas.1} parent=11 // pred_check_branch
          %532 = sbr.rel (%p530) target = $region20
        $region19: #{decoder_block_pallas.1} parent=11 // pred_region
          _
        $region20: #{decoder_block_pallas.1} parent=11 // pred_fallthru
          _
        // Predicated region
        $region21: #{decoder_block_pallas.1} parent=11 // pred_check
          %p533 = pneg %p171
        $region22: #{decoder_block_pallas.1} parent=11 // pred_check_branch
          %535 = sbr.rel (%p533) target = $region24
        $region23: #{decoder_block_pallas.1} parent=11 // pred_region
          _
        $region24: #{decoder_block_pallas.1} parent=11 // pred_fallthru
          _
        // Predicated region
        $region25: #{decoder_block_pallas.1} parent=11 // pred_check
          %p536 = pneg %p192
        $region26: #{decoder_block_pallas.1} parent=11 // pred_check_branch
          %538 = sbr.rel (%p536) target = $region28
        $region27: #{decoder_block_pallas.1} parent=11 // pred_region
          _
        $region28: #{decoder_block_pallas.1} parent=11 // pred_fallthru
          _
        // Predicated region
        $region29: #{decoder_block_pallas.1} parent=11 // pred_check
          %p539 = pneg %p213
        $region30: #{decoder_block_pallas.1} parent=11 // pred_check_branch
          %541 = sbr.rel (%p539) target = $region32
        $region31: #{decoder_block_pallas.1} parent=11 // pred_region
          _
        $region32: #{decoder_block_pallas.1} parent=11 // pred_fallthru
          _
        // Predicated region
        $region33: #{decoder_block_pallas.1} parent=11 // pred_check
          %p542 = pneg %p234
        $region34: #{decoder_block_pallas.1} parent=11 // pred_check_branch
          %544 = sbr.rel (%p542) target = $region36
        $region35: #{decoder_block_pallas.1} parent=11 // pred_region
          _
        $region36: #{decoder_block_pallas.1} parent=11 // pred_fallthru
          _
        // Predicated region
        $region37: #{decoder_block_pallas.1} parent=11 // pred_check
          %p545 = pneg %p255
        $region38: #{decoder_block_pallas.1} parent=11 // pred_check_branch
          %547 = sbr.rel (%p545) target = $region40
        $region39: #{decoder_block_pallas.1} parent=11 // pred_region
          _
        $region40: #{decoder_block_pallas.1} parent=11 // pred_fallthru
          _
        // Predicated region
        $region41: #{decoder_block_pallas.1} parent=11 // pred_check
          %p548 = pneg %p276
        $region42: #{decoder_block_pallas.1} parent=11 // pred_check_branch
          %550 = sbr.rel (%p548) target = $region44
        $region43: #{decoder_block_pallas.1} parent=11 // pred_region
          _
        $region44: #{decoder_block_pallas.1} parent=11 // pred_fallthru
          _
        // Predicated region
        $region45: #{decoder_block_pallas.1} parent=11 // pred_check
          %p551 = pneg %p297
        $region46: #{decoder_block_pallas.1} parent=11 // pred_check_branch
          %553 = sbr.rel (%p551) target = $region48
        $region47: #{decoder_block_pallas.1} parent=11 // pred_region
          _
        $region48: #{decoder_block_pallas.1} parent=11 // pred_fallthru
          _
        // Predicated region
        $region49: #{decoder_block_pallas.1} parent=11 // pred_check
          %p554 = pneg %p318
        $region50: #{decoder_block_pallas.1} parent=11 // pred_check_branch
          %556 = sbr.rel (%p554) target = $region52
        $region51: #{decoder_block_pallas.1} parent=11 // pred_region
          _
        $region52: #{decoder_block_pallas.1} parent=11 // pred_fallthru
          _
        // Predicated region
        $region53: #{decoder_block_pallas.1} parent=11 // pred_check
          %p557 = pneg %p339
        $region54: #{decoder_block_pallas.1} parent=11 // pred_check_branch
          %559 = sbr.rel (%p557) target = $region56
        $region55: #{decoder_block_pallas.1} parent=11 // pred_region
          _
        $region56: #{decoder_block_pallas.1} parent=11 // pred_fallthru
          _
        // Predicated region
        $region57: #{decoder_block_pallas.1} parent=11 // pred_check
          %p560 = pneg %p360
        $region58: #{decoder_block_pallas.1} parent=11 // pred_check_branch
          %562 = sbr.rel (%p560) target = $region60
        $region59: #{decoder_block_pallas.1} parent=11 // pred_region
          _
        $region60: #{decoder_block_pallas.1} parent=11 // pred_fallthru
          _
        // Predicated region
        $region61: #{decoder_block_pallas.1} parent=11 // pred_check
          %p563 = pneg %p381
        $region62: #{decoder_block_pallas.1} parent=11 // pred_check_branch
          %565 = sbr.rel (%p563) target = $region64
        $region63: #{decoder_block_pallas.1} parent=11 // pred_region
          _
        $region64: #{decoder_block_pallas.1} parent=11 // pred_fallthru
          _
        // Predicated region
        $region65: #{decoder_block_pallas.1} parent=11 // pred_check
          %p566 = pneg %p402
        $region66: #{decoder_block_pallas.1} parent=11 // pred_check_branch
          %568 = sbr.rel (%p566) target = $region68
        $region67: #{decoder_block_pallas.1} parent=11 // pred_region
          _
        $region68: #{decoder_block_pallas.1} parent=11 // pred_fallthru
          _
        // Predicated region
        $region69: #{decoder_block_pallas.1} parent=11 // pred_check
          %p569 = pneg %p423
        $region70: #{decoder_block_pallas.1} parent=11 // pred_check_branch
          %571 = sbr.rel (%p569) target = $region72
        $region71: #{decoder_block_pallas.1} parent=11 // pred_region
          _
        $region72: #{decoder_block_pallas.1} parent=11 // pred_fallthru
          _
        // Predicated region
        $region73: #{decoder_block_pallas.1} parent=11 // pred_check
          %p572 = pneg %p444
        $region74: #{decoder_block_pallas.1} parent=11 // pred_check_branch
          %574 = sbr.rel (%p572) target = $region76
        $region75: #{decoder_block_pallas.1} parent=11 // pred_region
          _
        $region76: #{decoder_block_pallas.1} parent=11 // pred_fallthru
          _
        // Predicated region
        $region77: #{decoder_block_pallas.1} parent=11 // pred_check
          %p575 = pneg %p465
        $region78: #{decoder_block_pallas.1} parent=11 // pred_check_branch
          %577 = sbr.rel (%p575) target = $region80
        $region79: #{decoder_block_pallas.1} parent=11 // pred_region
          _
        $region80: #{decoder_block_pallas.1} parent=11 // pred_fallthru
          _
        // Predicated region
        $region81: #{decoder_block_pallas.1} parent=11 // pred_check
          %p578 = pneg %p486
        $region82: #{decoder_block_pallas.1} parent=11 // pred_check_branch
          %580 = sbr.rel (%p578) target = $region84
        $region83: #{decoder_block_pallas.1} parent=11 // pred_region
          _
        $region84: #{decoder_block_pallas.1} parent=11 // pred_fallthru
          _
      $region12: #{decoder_block_pallas.1} parent=5 // pred_fallthru
        _
      %p581 = scmp.lt.s32.totalorder %s30, 2
      // Predicated region
      $region85: #{decoder_block_pallas.1} parent=5 // pred_check
        %p582 = pneg %p581
      $region86: #{decoder_block_pallas.1} parent=5 // pred_check_branch
        %584 = sbr.rel (%p582) target = $region88
      $region87: #{decoder_block_pallas.1} parent=5 // pred_region
        // Predicated region
        $region89: #{decoder_block_pallas.1} parent=87 // pred_check
          %p585 = pneg %p50
        $region90: #{decoder_block_pallas.1} parent=87 // pred_check_branch
          %587 = sbr.rel (%p585) target = $region92
        $region91: #{decoder_block_pallas.1} parent=87 // pred_region
          %p588 = scmp.lt.s32.totalorder %s30, 1
          %s589 = scalar_select %p588, %s30, 1
          %s590 = smul.addr %s589, 8
          %s591 = scalar_lea.vmem %s0, %s590
        $region92: #{decoder_block_pallas.1} parent=87 // pred_fallthru
          _
        // Predicated region
        $region93: #{decoder_block_pallas.1} parent=87 // pred_check
          %p592 = pneg %p76
        $region94: #{decoder_block_pallas.1} parent=87 // pred_check_branch
          %594 = sbr.rel (%p592) target = $region96
        $region95: #{decoder_block_pallas.1} parent=87 // pred_region
          %p595 = scmp.lt.s32.totalorder %s30, 1
          %s596 = scalar_select %p595, %s30, 1
          %s597 = smul.addr %s596, 8
          %s598 = scalar_lea.vmem %s1, %s597
        $region96: #{decoder_block_pallas.1} parent=87 // pred_fallthru
          _
        // Predicated region
        $region97: #{decoder_block_pallas.1} parent=87 // pred_check
          %p599 = pneg %p102
        $region98: #{decoder_block_pallas.1} parent=87 // pred_check_branch
          %601 = sbr.rel (%p599) target = $region100
        $region99: #{decoder_block_pallas.1} parent=87 // pred_region
          %p602 = scmp.lt.s32.totalorder %s30, 1
          %s603 = scalar_select %p602, %s30, 1
          %s604 = smul.addr %s603, 8
          %s605 = scalar_lea.vmem %s2, %s604
        $region100: #{decoder_block_pallas.1} parent=87 // pred_fallthru
          _
      $region88: #{decoder_block_pallas.1} parent=5 // pred_fallthru
        _
      %p606 = scmp.le.s32.totalorder 1, %s30
      %p607 = scmp.lt.s32.totalorder %s30, 3
      %p608 = pnand %p606, %p607
      %p609 = pneg %p608
      // Predicated region
      $region101: #{decoder_block_pallas.1} parent=5 // pred_check
        _
      $region102: #{decoder_block_pallas.1} parent=5 // pred_check_branch
        %611 = sbr.rel (%p608) target = $region104
      $region103: #{decoder_block_pallas.1} parent=5 // pred_region
        %s612 = ssub.s32 %s30, 1
        %p613 = scmp.lt.s32.totalorder %s35, 1
        %s614 = scalar_select %p613, %s35, 1
        %s615 = smul.addr %s614, 8
        %s616 = scalar_lea.vmem %s0, %s615
        %p617 = pneg %p56
        %p618 = pneg %p53
        %p619 = scmp.lt.s32.totalorder %s35, 1
        %s620 = scalar_select %p619, %s35, 1
        %s621 = smul.addr %s620, 8
        %s622 = scalar_lea.vmem %s1, %s621
        %p623 = pneg %p82
        %p624 = pneg %p79
        %p625 = scmp.lt.s32.totalorder %s35, 1
        %s626 = scalar_select %p625, %s35, 1
        %s627 = smul.addr %s626, 8
        %s628 = scalar_lea.vmem %s2, %s627
        %p629 = pneg %p108
        %p630 = pneg %p105
        %p631 = pneg %p129
        %p632 = pneg %p126
        %p633 = pneg %p150
        %p634 = pneg %p147
        %p635 = pneg %p171
        %p636 = pneg %p168
        %p637 = pneg %p192
        %p638 = pneg %p189
        %p639 = pneg %p213
        %p640 = pneg %p210
        %p641 = pneg %p234
        %p642 = pneg %p231
        %p643 = pneg %p255
        %p644 = pneg %p252
        %p645 = pneg %p276
        %p646 = pneg %p273
        %p647 = pneg %p297
        %p648 = pneg %p294
        %p649 = pneg %p318
        %p650 = pneg %p315
        %p651 = pneg %p339
        %p652 = pneg %p336
        %p653 = pneg %p360
        %p654 = pneg %p357
        %p655 = pneg %p381
        %p656 = pneg %p378
        %p657 = pneg %p402
        %p658 = pneg %p399
        %p659 = pneg %p423
        %p660 = pneg %p420
        %p661 = pneg %p444
        %p662 = pneg %p441
        %p663 = pneg %p465
        %p664 = pneg %p462
        %p665 = pneg %p486
        %p666 = pneg %p483
        %p667 = pneg %p512
        %p668 = pneg %p509
        %s669 = sand.u32 %s499, 1
        %s670 = scalar_lea.sflag [#allocation3], %s669
        %s671 = sand.u32 %s499, 1
        %s672 = smul.addr %s671, 8
        %s673 = scalar_lea.vmem [#allocation2], %s672
        %p674 = scmp.lt.s32.totalorder %s35, 1
        %s675 = scalar_select %p674, %s35, 1
        %s676 = smul.addr %s675, 8
        %s677 = scalar_lea.vmem %s0, %s676
        %p678 = scmp.lt.s32.totalorder %s35, 1
        %s679 = scalar_select %p678, %s35, 1
        %s680 = smul.addr %s679, 8
        %s681 = scalar_lea.vmem %s1, %s680
        %p682 = scmp.lt.s32.totalorder %s35, 1
        %s683 = scalar_select %p682, %s35, 1
        %s684 = smul.addr %s683, 8
        %s685 = scalar_lea.vmem %s2, %s684
        %v686 = vld [vmem:[%s677] sm:$0xff]
        %v687 = vld [vmem:[%s681] sm:$0xff]
        %v688 = vld [vmem:[%s685] sm:$0xff]
        %v689 = vld [vmem:[%s3] sm:$0xff]
        %v690 = vld [vmem:[%s3 + $0x8] sm:$0xff]
        %v691 = vld [vmem:[%s3 + $0x10] sm:$0xff]
        %v692 = vld [vmem:[%s3 + $0x18] sm:$0xff]
        %v693 = vld [vmem:[%s4] sm:$0x1]
        %v695 = vlaneseq
        %v696 = vshrl.u32 %v695, 7
        %v697 = vsub.s32 0, %v696
        %v698 = vrot.slane %v693, %v697
        %vm700 = vcmask 261120
        %v702 = vsel %vm700, %v687, 0
        %704 = vmatprep.subr.mxu0 0.0
        %705 = vmatpush1.msra.mxu0 0.0
        %706 = vmatprep.subr.mxu0 0.0
        %707 = vmatpush1.msra.mxu0 0.0
        %708 = vmatprep.subr.mxu0 0.0
        %709 = vmatpush1.msra.mxu0 0.0
        %710 = vmatprep.subr.mxu0 0.0
        %711 = vmatpush1.msra.mxu0 0.0
        %712 = vmatprep.subr.mxu0 0.0
        %713 = vmatpush1.msra.mxu0 0.0
        %714 = vmatprep.subr.mxu0 0.0
        %715 = vmatpush1.msra.mxu0 0.0
        %716 = vmatprep.subr.mxu0 0.0
        %717 = vmatpush1.msra.mxu0 0.0
        %718 = vmatprep.subr.mxu0 0.0
        %719 = vmatpush1.msra.mxu0 0.0
        %720 = vmatprep.subr.mxu0 0.0
        %721 = vmatpush1.msra.mxu0 0.0
        %722 = vmatprep.subr.mxu0 0.0
        %723 = vmatpush1.msra.mxu0 0.0
        %724 = vmatprep.subr.mxu0 0.0
        %725 = vmatpush1.msra.mxu0 0.0
        %726 = vmatprep.subr.mxu0 0.0
        %727 = vmatpush1.msra.mxu0 0.0
        %728 = vmatprep.subr.mxu0 0.0
        %729 = vmatpush1.msra.mxu0 %v692
        %730 = vmatprep.subr.mxu0 0.0
        %731 = vmatpush1.msra.mxu0 %v691
        %732 = vmatprep.subr.mxu0 0.0
        %733 = vmatpush1.msra.mxu0 %v690
        %734 = vmatprep.subr.mxu0 0.0
        %735 = vmatpush1.msra.mxu0 %v689
        %736 = vmatprep.subr.mxu0 0.0
        %737 = vmatpush2.msra.mxu0 0.0
        %738 = vmatprep.subr.mxu0 0.0
        %739 = vmatpush2.msra.mxu0 0.0
        %740 = vmatprep.subr.mxu0 0.0
        %741 = vmatpush2.msra.mxu0 0.0
        %742 = vmatprep.subr.mxu0 0.0
        %743 = vmatpush2.msra.mxu0 0.0
        %744 = vmatprep.subr.mxu0 0.0
        %745 = vmatpush2.msra.mxu0 0.0
        %746 = vmatprep.subr.mxu0 0.0
        %747 = vmatpush2.msra.mxu0 0.0
        %748 = vmatprep.subr.mxu0 0.0
        %749 = vmatpush2.msra.mxu0 0.0
        %750 = vmatprep.subr.mxu0 0.0
        %751 = vmatpush2.msra.mxu0 0.0
        %752 = vmatprep.subr.mxu0 0.0
        %753 = vmatpush2.msra.mxu0 0.0
        %754 = vmatprep.subr.mxu0 0.0
        %755 = vmatpush2.msra.mxu0 0.0
        %756 = vmatprep.subr.mxu0 0.0
        %757 = vmatpush2.msra.mxu0 0.0
        %758 = vmatprep.subr.mxu0 0.0
        %759 = vmatpush2.msra.mxu0 0.0
        %760 = vmatprep.subr.mxu0 0.0
        %761 = vmatpush2.msra.mxu0 0.0
        %762 = vmatprep.subr.mxu0 0.0
        %763 = vmatpush2.msra.mxu0 0.0
        %764 = vmatprep.subr.mxu0 0.0
        %765 = vmatpush2.msra.mxu0 0.0
        %766 = vmatprep.subr.mxu0 0.0
        %767 = vmatpush2.msra.mxu0 0.0
        %768 = vmatprep.mubr.f32.mxu0 0.0
        %769 = vmatmul.mubr.f32.gmra.mxu0 %v702
        %v770 = vpop.f32.mrf.mxu0
        %v771 = vadd.f32 %v698, %v770
        %v772 = vpop.f32.mrf.mxu0
        %773 = vdwg.mxu0
        %v774 = vld [vmem:[%s5] sm:$0xff]
        %v775 = vld [vmem:[%s5 + $0x8] sm:$0xff]
        %v776 = vld [vmem:[%s5 + $0x10] sm:$0xff]
        %v777 = vld [vmem:[%s5 + $0x18] sm:$0xff]
        %v778 = vld [vmem:[%s6] sm:$0x1]
        %v780 = vlaneseq
        %v781 = vshrl.u32 %v780, 7
        %v782 = vsub.s32 0, %v781
        %v783 = vrot.slane %v778, %v782
        %v786 = vsel %vm700, %v686, 0
        %788 = vmatprep.subr.mxu0 0.0
        %789 = vmatpush1.msra.mxu0 0.0
        %790 = vmatprep.subr.mxu0 0.0
        %791 = vmatpush1.msra.mxu0 0.0
        %792 = vmatprep.subr.mxu0 0.0
        %793 = vmatpush1.msra.mxu0 0.0
        %794 = vmatprep.subr.mxu0 0.0
        %795 = vmatpush1.msra.mxu0 0.0
        %796 = vmatprep.subr.mxu0 0.0
        %797 = vmatpush1.msra.mxu0 0.0
        %798 = vmatprep.subr.mxu0 0.0
        %799 = vmatpush1.msra.mxu0 0.0
        %800 = vmatprep.subr.mxu0 0.0
        %801 = vmatpush1.msra.mxu0 0.0
        %802 = vmatprep.subr.mxu0 0.0
        %803 = vmatpush1.msra.mxu0 0.0
        %804 = vmatprep.subr.mxu0 0.0
        %805 = vmatpush1.msra.mxu0 0.0
        %806 = vmatprep.subr.mxu0 0.0
        %807 = vmatpush1.msra.mxu0 0.0
        %808 = vmatprep.subr.mxu0 0.0
        %809 = vmatpush1.msra.mxu0 0.0
        %810 = vmatprep.subr.mxu0 0.0
        %811 = vmatpush1.msra.mxu0 0.0
        %812 = vmatprep.subr.mxu0 0.0
        %813 = vmatpush1.msra.mxu0 %v777
        %814 = vmatprep.subr.mxu0 0.0
        %815 = vmatpush1.msra.mxu0 %v776
        %816 = vmatprep.subr.mxu0 0.0
        %817 = vmatpush1.msra.mxu0 %v775
        %818 = vmatprep.subr.mxu0 0.0
        %819 = vmatpush1.msra.mxu0 %v774
        %820 = vmatprep.subr.mxu0 0.0
        %821 = vmatpush2.msra.mxu0 0.0
        %822 = vmatprep.subr.mxu0 0.0
        %823 = vmatpush2.msra.mxu0 0.0
        %824 = vmatprep.subr.mxu0 0.0
        %825 = vmatpush2.msra.mxu0 0.0
        %826 = vmatprep.subr.mxu0 0.0
        %827 = vmatpush2.msra.mxu0 0.0
        %828 = vmatprep.subr.mxu0 0.0
        %829 = vmatpush2.msra.mxu0 0.0
        %830 = vmatprep.subr.mxu0 0.0
        %831 = vmatpush2.msra.mxu0 0.0
        %832 = vmatprep.subr.mxu0 0.0
        %833 = vmatpush2.msra.mxu0 0.0
        %834 = vmatprep.subr.mxu0 0.0
        %835 = vmatpush2.msra.mxu0 0.0
        %836 = vmatprep.subr.mxu0 0.0
        %837 = vmatpush2.msra.mxu0 0.0
        %838 = vmatprep.subr.mxu0 0.0
        %839 = vmatpush2.msra.mxu0 0.0
        %840 = vmatprep.subr.mxu0 0.0
        %841 = vmatpush2.msra.mxu0 0.0
        %842 = vmatprep.subr.mxu0 0.0
        %843 = vmatpush2.msra.mxu0 0.0
        %844 = vmatprep.subr.mxu0 0.0
        %845 = vmatpush2.msra.mxu0 0.0
        %846 = vmatprep.subr.mxu0 0.0
        %847 = vmatpush2.msra.mxu0 0.0
        %848 = vmatprep.subr.mxu0 0.0
        %849 = vmatpush2.msra.mxu0 0.0
        %850 = vmatprep.subr.mxu0 0.0
        %851 = vmatpush2.msra.mxu0 0.0
        %852 = vmatprep.mubr.f32.mxu0 0.0
        %853 = vmatmul.mubr.f32.gmra.mxu0 %v786
        %v854 = vpop.f32.mrf.mxu0
        %v855 = vadd.f32 %v783, %v854
        %v856 = vpop.f32.mrf.mxu0
        %857 = vdwg.mxu0
        %v858 = vld [vmem:[%s7] sm:$0xff]
        %v859 = vld [vmem:[%s7 + $0x8] sm:$0xff]
        %v860 = vld [vmem:[%s7 + $0x10] sm:$0xff]
        %v861 = vld [vmem:[%s7 + $0x18] sm:$0xff]
        %vm862 = vcmask 64512
        %v864 = vsel %vm862, %v771, 0
        %v867 = vsel %vm862, %v855, 0
        %869 = vmatprep.subr.mxu0 0.0
        %870 = vmatpush1.xpose.msra.mxu0 0.0
        %871 = vmatprep.subr.mxu0 0.0
        %872 = vmatpush1.xpose.msra.mxu0 0.0
        %873 = vmatprep.subr.mxu0 0.0
        %874 = vmatpush1.xpose.msra.mxu0 0.0
        %875 = vmatprep.subr.mxu0 0.0
        %876 = vmatpush1.xpose.msra.mxu0 0.0
        %877 = vmatprep.subr.mxu0 0.0
        %878 = vmatpush1.xpose.msra.mxu0 0.0
        %879 = vmatprep.subr.mxu0 0.0
        %880 = vmatpush1.xpose.msra.mxu0 0.0
        %881 = vmatprep.subr.mxu0 0.0
        %882 = vmatpush1.xpose.msra.mxu0 0.0
        %883 = vmatprep.subr.mxu0 0.0
        %884 = vmatpush1.xpose.msra.mxu0 0.0
        %885 = vmatprep.subr.mxu0 0.0
        %886 = vmatpush1.xpose.msra.mxu0 0.0
        %887 = vmatprep.subr.mxu0 0.0
        %888 = vmatpush1.xpose.msra.mxu0 0.0
        %889 = vmatprep.subr.mxu0 0.0
        %890 = vmatpush1.xpose.msra.mxu0 0.0
        %891 = vmatprep.subr.mxu0 0.0
        %892 = vmatpush1.xpose.msra.mxu0 0.0
        %893 = vmatprep.subr.mxu0 0.0
        %894 = vmatpush1.xpose.msra.mxu0 0.0
        %895 = vmatprep.subr.mxu0 0.0
        %896 = vmatpush1.xpose.msra.mxu0 0.0
        %897 = vmatprep.subr.mxu0 0.0
        %898 = vmatpush1.xpose.msra.mxu0 0.0
        %899 = vmatprep.subr.mxu0 0.0
        %900 = vmatpush1.xpose.msra.mxu0 %v867
        %901 = vmatprep.subr.mxu0 0.0
        %902 = vmatpush2.xpose.msra.mxu0 0.0
        %903 = vmatprep.subr.mxu0 0.0
        %904 = vmatpush2.xpose.msra.mxu0 0.0
        %905 = vmatprep.subr.mxu0 0.0
        %906 = vmatpush2.xpose.msra.mxu0 0.0
        %907 = vmatprep.subr.mxu0 0.0
        %908 = vmatpush2.xpose.msra.mxu0 0.0
        %909 = vmatprep.subr.mxu0 0.0
        %910 = vmatpush2.xpose.msra.mxu0 0.0
        %911 = vmatprep.subr.mxu0 0.0
        %912 = vmatpush2.xpose.msra.mxu0 0.0
        %913 = vmatprep.subr.mxu0 0.0
        %914 = vmatpush2.xpose.msra.mxu0 0.0
        %915 = vmatprep.subr.mxu0 0.0
        %916 = vmatpush2.xpose.msra.mxu0 0.0
        %917 = vmatprep.subr.mxu0 0.0
        %918 = vmatpush2.xpose.msra.mxu0 0.0
        %919 = vmatprep.subr.mxu0 0.0
        %920 = vmatpush2.xpose.msra.mxu0 0.0
        %921 = vmatprep.subr.mxu0 0.0
        %922 = vmatpush2.xpose.msra.mxu0 0.0
        %923 = vmatprep.subr.mxu0 0.0
        %924 = vmatpush2.xpose.msra.mxu0 0.0
        %925 = vmatprep.subr.mxu0 0.0
        %926 = vmatpush2.xpose.msra.mxu0 0.0
        %927 = vmatprep.subr.mxu0 0.0
        %928 = vmatpush2.xpose.msra.mxu0 0.0
        %929 = vmatprep.subr.mxu0 0.0
        %930 = vmatpush2.xpose.msra.mxu0 0.0
        %931 = vmatprep.subr.mxu0 0.0
        %932 = vmatpush2.xpose.msra.mxu0 0.0
        %933 = vmatprep.mubr.f32.mxu0 0.0
        %934 = vmatmul.mubr.f32.gmra.mxu0 %v864
        %v935 = vpop.f32.mrf.mxu0
        %v936 = vadd.f32 0.0, %v935
        %v937 = vpop.f32.mrf.mxu0
        %938 = vdwg.mxu0
        %v939 = vmul.f32 %v936, 0.35355338
        %940 = vrot.lane.b32.xlu0 %v771, 96
        %v941 = vpop.permute.xlu0 %940
        %v944 = vsel %vm862, %v939, 0
        %946 = vmatprep.subr.mxu0 0.0
        %947 = vmatpush1.msra.mxu0 0.0
        %948 = vmatprep.subr.mxu0 0.0
        %949 = vmatpush1.msra.mxu0 0.0
        %950 = vmatprep.subr.mxu0 0.0
        %951 = vmatpush1.msra.mxu0 0.0
        %952 = vmatprep.subr.mxu0 0.0
        %953 = vmatpush1.msra.mxu0 0.0
        %954 = vmatprep.subr.mxu0 0.0
        %955 = vmatpush1.msra.mxu0 0.0
        %956 = vmatprep.subr.mxu0 0.0
        %957 = vmatpush1.msra.mxu0 0.0
        %958 = vmatprep.subr.mxu0 0.0
        %959 = vmatpush1.msra.mxu0 0.0
        %960 = vmatprep.subr.mxu0 0.0
        %961 = vmatpush1.msra.mxu0 0.0
        %962 = vmatprep.subr.mxu0 0.0
        %963 = vmatpush1.msra.mxu0 0.0
        %964 = vmatprep.subr.mxu0 0.0
        %965 = vmatpush1.msra.mxu0 0.0
        %966 = vmatprep.subr.mxu0 0.0
        %967 = vmatpush1.msra.mxu0 0.0
        %968 = vmatprep.subr.mxu0 0.0
        %969 = vmatpush1.msra.mxu0 0.0
        %970 = vmatprep.subr.mxu0 0.0
        %971 = vmatpush1.msra.mxu0 0.0
        %972 = vmatprep.subr.mxu0 0.0
        %973 = vmatpush1.msra.mxu0 0.0
        %974 = vmatprep.subr.mxu0 0.0
        %975 = vmatpush1.msra.mxu0 0.0
        %976 = vmatprep.subr.mxu0 0.0
        %977 = vmatpush1.msra.mxu0 %v941
        %978 = vmatprep.subr.mxu0 0.0
        %979 = vmatpush2.msra.mxu0 0.0
        %980 = vmatprep.subr.mxu0 0.0
        %981 = vmatpush2.msra.mxu0 0.0
        %982 = vmatprep.subr.mxu0 0.0
        %983 = vmatpush2.msra.mxu0 0.0
        %984 = vmatprep.subr.mxu0 0.0
        %985 = vmatpush2.msra.mxu0 0.0
        %986 = vmatprep.subr.mxu0 0.0
        %987 = vmatpush2.msra.mxu0 0.0
        %988 = vmatprep.subr.mxu0 0.0
        %989 = vmatpush2.msra.mxu0 0.0
        %990 = vmatprep.subr.mxu0 0.0
        %991 = vmatpush2.msra.mxu0 0.0
        %992 = vmatprep.subr.mxu0 0.0
        %993 = vmatpush2.msra.mxu0 0.0
        %994 = vmatprep.subr.mxu0 0.0
        %995 = vmatpush2.msra.mxu0 0.0
        %996 = vmatprep.subr.mxu0 0.0
        %997 = vmatpush2.msra.mxu0 0.0
        %998 = vmatprep.subr.mxu0 0.0
        %999 = vmatpush2.msra.mxu0 0.0
        %1000 = vmatprep.subr.mxu0 0.0
        %1001 = vmatpush2.msra.mxu0 0.0
        %1002 = vmatprep.subr.mxu0 0.0
        %1003 = vmatpush2.msra.mxu0 0.0
        %1004 = vmatprep.subr.mxu0 0.0
        %1005 = vmatpush2.msra.mxu0 0.0
        %1006 = vmatprep.subr.mxu0 0.0
        %1007 = vmatpush2.msra.mxu0 0.0
        %1008 = vmatprep.subr.mxu0 0.0
        %1009 = vmatpush2.msra.mxu0 0.0
        %1010 = vmatprep.mubr.f32.mxu0 0.0
        %1011 = vmatmul.mubr.f32.gmra.mxu0 %v944
        %v1012 = vpop.f32.mrf.mxu0
        %v1013 = vadd.f32 0.0, %v1012
        %v1014 = vpop.f32.mrf.mxu0
        %1015 = vdwg.mxu0
        %v1016 = vsel %vm862, %v1013, -inf
        %1017 = vmax.xlane.f32.xlu0 %v1016
        %v1018 = vpop.xlane.xlu0 %1017
        %v1019 = vsub.f32 %v1013, %v1018
        %v1020 = vmul.f32 %v1019, 1.442695
        %v1021 = vpow.pop %v1020
        %v1022 = vsel %vm862, %v1021, 0.0
        %1023 = vadd.xlane.f32.xlu0 %v1022
        %v1024 = vpop.xlane.xlu0 %1023
        %v1025 = vrcp.pop %v1024
        %v1026 = vmul.f32 %v1021, %v1025
        %1027 = vrot.lane.b32.xlu0 %v771, 120
        %v1028 = vpop.permute.xlu0 %1027
        %1029 = vrot.lane.b32.xlu0 %v855, 120
        %v1030 = vpop.permute.xlu0 %1029
        %v1031 = vsel %vm862, %v1028, 0
        %v1033 = vsel %vm862, %v1030, 0
        %1035 = vmatprep.subr.mxu0 0.0
        %1036 = vmatpush1.xpose.msra.mxu0 0.0
        %1037 = vmatprep.subr.mxu0 0.0
        %1038 = vmatpush1.xpose.msra.mxu0 0.0
        %1039 = vmatprep.subr.mxu0 0.0
        %1040 = vmatpush1.xpose.msra.mxu0 0.0
        %1041 = vmatprep.subr.mxu0 0.0
        %1042 = vmatpush1.xpose.msra.mxu0 0.0
        %1043 = vmatprep.subr.mxu0 0.0
        %1044 = vmatpush1.xpose.msra.mxu0 0.0
        %1045 = vmatprep.subr.mxu0 0.0
        %1046 = vmatpush1.xpose.msra.mxu0 0.0
        %1047 = vmatprep.subr.mxu0 0.0
        %1048 = vmatpush1.xpose.msra.mxu0 0.0
        %1049 = vmatprep.subr.mxu0 0.0
        %1050 = vmatpush1.xpose.msra.mxu0 0.0
        %1051 = vmatprep.subr.mxu0 0.0
        %1052 = vmatpush1.xpose.msra.mxu0 0.0
        %1053 = vmatprep.subr.mxu0 0.0
        %1054 = vmatpush1.xpose.msra.mxu0 0.0
        %1055 = vmatprep.subr.mxu0 0.0
        %1056 = vmatpush1.xpose.msra.mxu0 0.0
        %1057 = vmatprep.subr.mxu0 0.0
        %1058 = vmatpush1.xpose.msra.mxu0 0.0
        %1059 = vmatprep.subr.mxu0 0.0
        %1060 = vmatpush1.xpose.msra.mxu0 0.0
        %1061 = vmatprep.subr.mxu0 0.0
        %1062 = vmatpush1.xpose.msra.mxu0 0.0
        %1063 = vmatprep.subr.mxu0 0.0
        %1064 = vmatpush1.xpose.msra.mxu0 0.0
        %1065 = vmatprep.subr.mxu0 0.0
        %1066 = vmatpush1.xpose.msra.mxu0 %v1033
        %1067 = vmatprep.subr.mxu0 0.0
        %1068 = vmatpush2.xpose.msra.mxu0 0.0
        %1069 = vmatprep.subr.mxu0 0.0
        %1070 = vmatpush2.xpose.msra.mxu0 0.0
        %1071 = vmatprep.subr.mxu0 0.0
        %1072 = vmatpush2.xpose.msra.mxu0 0.0
        %1073 = vmatprep.subr.mxu0 0.0
        %1074 = vmatpush2.xpose.msra.mxu0 0.0
        %1075 = vmatprep.subr.mxu0 0.0
        %1076 = vmatpush2.xpose.msra.mxu0 0.0
        %1077 = vmatprep.subr.mxu0 0.0
        %1078 = vmatpush2.xpose.msra.mxu0 0.0
        %1079 = vmatprep.subr.mxu0 0.0
        %1080 = vmatpush2.xpose.msra.mxu0 0.0
        %1081 = vmatprep.subr.mxu0 0.0
        %1082 = vmatpush2.xpose.msra.mxu0 0.0
        %1083 = vmatprep.subr.mxu0 0.0
        %1084 = vmatpush2.xpose.msra.mxu0 0.0
        %1085 = vmatprep.subr.mxu0 0.0
        %1086 = vmatpush2.xpose.msra.mxu0 0.0
        %1087 = vmatprep.subr.mxu0 0.0
        %1088 = vmatpush2.xpose.msra.mxu0 0.0
        %1089 = vmatprep.subr.mxu0 0.0
        %1090 = vmatpush2.xpose.msra.mxu0 0.0
        %1091 = vmatprep.subr.mxu0 0.0
        %1092 = vmatpush2.xpose.msra.mxu0 0.0
        %1093 = vmatprep.subr.mxu0 0.0
        %1094 = vmatpush2.xpose.msra.mxu0 0.0
        %1095 = vmatprep.subr.mxu0 0.0
        %1096 = vmatpush2.xpose.msra.mxu0 0.0
        %1097 = vmatprep.subr.mxu0 0.0
        %1098 = vmatpush2.xpose.msra.mxu0 0.0
        %1099 = vmatprep.mubr.f32.mxu0 0.0
        %1100 = vmatmul.mubr.f32.gmra.mxu0 %v1031
        %v1101 = vpop.f32.mrf.mxu0
        %v1102 = vadd.f32 0.0, %v1101
        %v1103 = vpop.f32.mrf.mxu0
        %1104 = vdwg.mxu0
        %v1105 = vmul.f32 %v1102, 0.35355338
        %1106 = vrot.lane.b32.xlu0 %v771, 88
        %v1107 = vpop.permute.xlu0 %1106
        %v1110 = vsel %vm862, %v1105, 0
        %1112 = vmatprep.subr.mxu0 0.0
        %1113 = vmatpush1.msra.mxu0 0.0
        %1114 = vmatprep.subr.mxu0 0.0
        %1115 = vmatpush1.msra.mxu0 0.0
        %1116 = vmatprep.subr.mxu0 0.0
        %1117 = vmatpush1.msra.mxu0 0.0
        %1118 = vmatprep.subr.mxu0 0.0
        %1119 = vmatpush1.msra.mxu0 0.0
        %1120 = vmatprep.subr.mxu0 0.0
        %1121 = vmatpush1.msra.mxu0 0.0
        %1122 = vmatprep.subr.mxu0 0.0
        %1123 = vmatpush1.msra.mxu0 0.0
        %1124 = vmatprep.subr.mxu0 0.0
        %1125 = vmatpush1.msra.mxu0 0.0
        %1126 = vmatprep.subr.mxu0 0.0
        %1127 = vmatpush1.msra.mxu0 0.0
        %1128 = vmatprep.subr.mxu0 0.0
        %1129 = vmatpush1.msra.mxu0 0.0
        %1130 = vmatprep.subr.mxu0 0.0
        %1131 = vmatpush1.msra.mxu0 0.0
        %1132 = vmatprep.subr.mxu0 0.0
        %1133 = vmatpush1.msra.mxu0 0.0
        %1134 = vmatprep.subr.mxu0 0.0
        %1135 = vmatpush1.msra.mxu0 0.0
        %1136 = vmatprep.subr.mxu0 0.0
        %1137 = vmatpush1.msra.mxu0 0.0
        %1138 = vmatprep.subr.mxu0 0.0
        %1139 = vmatpush1.msra.mxu0 0.0
        %1140 = vmatprep.subr.mxu0 0.0
        %1141 = vmatpush1.msra.mxu0 0.0
        %1142 = vmatprep.subr.mxu0 0.0
        %1143 = vmatpush1.msra.mxu0 %v1107
        %1144 = vmatprep.subr.mxu0 0.0
        %1145 = vmatpush2.msra.mxu0 0.0
        %1146 = vmatprep.subr.mxu0 0.0
        %1147 = vmatpush2.msra.mxu0 0.0
        %1148 = vmatprep.subr.mxu0 0.0
        %1149 = vmatpush2.msra.mxu0 0.0
        %1150 = vmatprep.subr.mxu0 0.0
        %1151 = vmatpush2.msra.mxu0 0.0
        %1152 = vmatprep.subr.mxu0 0.0
        %1153 = vmatpush2.msra.mxu0 0.0
        %1154 = vmatprep.subr.mxu0 0.0
        %1155 = vmatpush2.msra.mxu0 0.0
        %1156 = vmatprep.subr.mxu0 0.0
        %1157 = vmatpush2.msra.mxu0 0.0
        %1158 = vmatprep.subr.mxu0 0.0
        %1159 = vmatpush2.msra.mxu0 0.0
        %1160 = vmatprep.subr.mxu0 0.0
        %1161 = vmatpush2.msra.mxu0 0.0
        %1162 = vmatprep.subr.mxu0 0.0
        %1163 = vmatpush2.msra.mxu0 0.0
        %1164 = vmatprep.subr.mxu0 0.0
        %1165 = vmatpush2.msra.mxu0 0.0
        %1166 = vmatprep.subr.mxu0 0.0
        %1167 = vmatpush2.msra.mxu0 0.0
        %1168 = vmatprep.subr.mxu0 0.0
        %1169 = vmatpush2.msra.mxu0 0.0
        %1170 = vmatprep.subr.mxu0 0.0
        %1171 = vmatpush2.msra.mxu0 0.0
        %1172 = vmatprep.subr.mxu0 0.0
        %1173 = vmatpush2.msra.mxu0 0.0
        %1174 = vmatprep.subr.mxu0 0.0
        %1175 = vmatpush2.msra.mxu0 0.0
        %1176 = vmatprep.mubr.f32.mxu0 0.0
        %1177 = vmatmul.mubr.f32.gmra.mxu0 %v1110
        %v1178 = vpop.f32.mrf.mxu0
        %v1179 = vadd.f32 0.0, %v1178
        %v1180 = vpop.f32.mrf.mxu0
        %1181 = vdwg.mxu0
        %v1182 = vsel %vm862, %v1179, -inf
        %1183 = vmax.xlane.f32.xlu0 %v1182
        %v1184 = vpop.xlane.xlu0 %1183
        %v1185 = vsub.f32 %v1179, %v1184
        %v1186 = vmul.f32 %v1185, 1.442695
        %v1187 = vpow.pop %v1186
        %v1188 = vsel %vm862, %v1187, 0.0
        %1189 = vadd.xlane.f32.xlu0 %v1188
        %v1190 = vpop.xlane.xlu0 %1189
        %v1191 = vrcp.pop %v1190
        %v1192 = vmul.f32 %v1187, %v1191
        %v1194 = vsel %vm862, %v1192, 0
        %1196 = vmatprep.subr.mxu0 0.0
        %1197 = vmatpush1.msra.mxu0 0.0
        %1198 = vmatprep.subr.mxu0 0.0
        %1199 = vmatpush1.msra.mxu0 0.0
        %1200 = vmatprep.subr.mxu0 0.0
        %1201 = vmatpush1.msra.mxu0 0.0
        %1202 = vmatprep.subr.mxu0 0.0
        %1203 = vmatpush1.msra.mxu0 0.0
        %1204 = vmatprep.subr.mxu0 0.0
        %1205 = vmatpush1.msra.mxu0 0.0
        %1206 = vmatprep.subr.mxu0 0.0
        %1207 = vmatpush1.msra.mxu0 0.0
        %1208 = vmatprep.subr.mxu0 0.0
        %1209 = vmatpush1.msra.mxu0 0.0
        %1210 = vmatprep.subr.mxu0 0.0
        %1211 = vmatpush1.msra.mxu0 0.0
        %1212 = vmatprep.subr.mxu0 0.0
        %1213 = vmatpush1.msra.mxu0 0.0
        %1214 = vmatprep.subr.mxu0 0.0
        %1215 = vmatpush1.msra.mxu0 0.0
        %1216 = vmatprep.subr.mxu0 0.0
        %1217 = vmatpush1.msra.mxu0 0.0
        %1218 = vmatprep.subr.mxu0 0.0
        %1219 = vmatpush1.msra.mxu0 0.0
        %1220 = vmatprep.subr.mxu0 0.0
        %1221 = vmatpush1.msra.mxu0 0.0
        %1222 = vmatprep.subr.mxu0 0.0
        %1223 = vmatpush1.msra.mxu0 0.0
        %1224 = vmatprep.subr.mxu0 0.0
        %1225 = vmatpush1.msra.mxu0 0.0
        %1226 = vmatprep.subr.mxu0 0.0
        %1227 = vmatpush1.msra.mxu0 %v859
        %1228 = vmatprep.subr.mxu0 0.0
        %1229 = vmatpush2.msra.mxu0 0.0
        %1230 = vmatprep.subr.mxu0 0.0
        %1231 = vmatpush2.msra.mxu0 0.0
        %1232 = vmatprep.subr.mxu0 0.0
        %1233 = vmatpush2.msra.mxu0 0.0
        %1234 = vmatprep.subr.mxu0 0.0
        %1235 = vmatpush2.msra.mxu0 0.0
        %1236 = vmatprep.subr.mxu0 0.0
        %1237 = vmatpush2.msra.mxu0 0.0
        %1238 = vmatprep.subr.mxu0 0.0
        %1239 = vmatpush2.msra.mxu0 0.0
        %1240 = vmatprep.subr.mxu0 0.0
        %1241 = vmatpush2.msra.mxu0 0.0
        %1242 = vmatprep.subr.mxu0 0.0
        %1243 = vmatpush2.msra.mxu0 0.0
        %1244 = vmatprep.subr.mxu0 0.0
        %1245 = vmatpush2.msra.mxu0 0.0
        %1246 = vmatprep.subr.mxu0 0.0
        %1247 = vmatpush2.msra.mxu0 0.0
        %1248 = vmatprep.subr.mxu0 0.0
        %1249 = vmatpush2.msra.mxu0 0.0
        %1250 = vmatprep.subr.mxu0 0.0
        %1251 = vmatpush2.msra.mxu0 0.0
        %1252 = vmatprep.subr.mxu0 0.0
        %1253 = vmatpush2.msra.mxu0 0.0
        %1254 = vmatprep.subr.mxu0 0.0
        %1255 = vmatpush2.msra.mxu0 0.0
        %1256 = vmatprep.subr.mxu0 0.0
        %1257 = vmatpush2.msra.mxu0 0.0
        %1258 = vmatprep.subr.mxu0 0.0
        %1259 = vmatpush2.msra.mxu0 0.0
        %1260 = vmatprep.mubr.f32.mxu0 0.0
        %1261 = vmatmul.mubr.f32.gmra.mxu0 %v1194
        %v1262 = vpop.f32.mrf.mxu0
        %v1263 = vadd.f32 0.0, %v1262
        %v1264 = vpop.f32.mrf.mxu0
        %1265 = vdwg.mxu0
        %v1267 = vsel %vm862, %v1026, 0
        %1269 = vmatprep.subr.mxu0 0.0
        %1270 = vmatpush1.msra.mxu0 0.0
        %1271 = vmatprep.subr.mxu0 0.0
        %1272 = vmatpush1.msra.mxu0 0.0
        %1273 = vmatprep.subr.mxu0 0.0
        %1274 = vmatpush1.msra.mxu0 0.0
        %1275 = vmatprep.subr.mxu0 0.0
        %1276 = vmatpush1.msra.mxu0 0.0
        %1277 = vmatprep.subr.mxu0 0.0
        %1278 = vmatpush1.msra.mxu0 0.0
        %1279 = vmatprep.subr.mxu0 0.0
        %1280 = vmatpush1.msra.mxu0 0.0
        %1281 = vmatprep.subr.mxu0 0.0
        %1282 = vmatpush1.msra.mxu0 0.0
        %1283 = vmatprep.subr.mxu0 0.0
        %1284 = vmatpush1.msra.mxu0 0.0
        %1285 = vmatprep.subr.mxu0 0.0
        %1286 = vmatpush1.msra.mxu0 0.0
        %1287 = vmatprep.subr.mxu0 0.0
        %1288 = vmatpush1.msra.mxu0 0.0
        %1289 = vmatprep.subr.mxu0 0.0
        %1290 = vmatpush1.msra.mxu0 0.0
        %1291 = vmatprep.subr.mxu0 0.0
        %1292 = vmatpush1.msra.mxu0 0.0
        %1293 = vmatprep.subr.mxu0 0.0
        %1294 = vmatpush1.msra.mxu0 0.0
        %1295 = vmatprep.subr.mxu0 0.0
        %1296 = vmatpush1.msra.mxu0 0.0
        %1297 = vmatprep.subr.mxu0 0.0
        %1298 = vmatpush1.msra.mxu0 0.0
        %1299 = vmatprep.subr.mxu0 0.0
        %1300 = vmatpush1.msra.mxu0 %v858
        %1301 = vmatprep.subr.mxu0 0.0
        %1302 = vmatpush2.msra.mxu0 0.0
        %1303 = vmatprep.subr.mxu0 0.0
        %1304 = vmatpush2.msra.mxu0 0.0
        %1305 = vmatprep.subr.mxu0 0.0
        %1306 = vmatpush2.msra.mxu0 0.0
        %1307 = vmatprep.subr.mxu0 0.0
        %1308 = vmatpush2.msra.mxu0 0.0
        %1309 = vmatprep.subr.mxu0 0.0
        %1310 = vmatpush2.msra.mxu0 0.0
        %1311 = vmatprep.subr.mxu0 0.0
        %1312 = vmatpush2.msra.mxu0 0.0
        %1313 = vmatprep.subr.mxu0 0.0
        %1314 = vmatpush2.msra.mxu0 0.0
        %1315 = vmatprep.subr.mxu0 0.0
        %1316 = vmatpush2.msra.mxu0 0.0
        %1317 = vmatprep.subr.mxu0 0.0
        %1318 = vmatpush2.msra.mxu0 0.0
        %1319 = vmatprep.subr.mxu0 0.0
        %1320 = vmatpush2.msra.mxu0 0.0
        %1321 = vmatprep.subr.mxu0 0.0
        %1322 = vmatpush2.msra.mxu0 0.0
        %1323 = vmatprep.subr.mxu0 0.0
        %1324 = vmatpush2.msra.mxu0 0.0
        %1325 = vmatprep.subr.mxu0 0.0
        %1326 = vmatpush2.msra.mxu0 0.0
        %1327 = vmatprep.subr.mxu0 0.0
        %1328 = vmatpush2.msra.mxu0 0.0
        %1329 = vmatprep.subr.mxu0 0.0
        %1330 = vmatpush2.msra.mxu0 0.0
        %1331 = vmatprep.subr.mxu0 0.0
        %1332 = vmatpush2.msra.mxu0 0.0
        %1333 = vmatprep.mubr.f32.mxu0 0.0
        %1334 = vmatmul.mubr.f32.gmra.mxu0 %v1267
        %v1335 = vpop.f32.mrf.mxu0
        %v1336 = vadd.f32 %v1263, %v1335
        %v1337 = vpop.f32.mrf.mxu0
        %1338 = vdwg.mxu0
        %1339 = vrot.lane.b32.xlu0 %v771, 112
        %v1340 = vpop.permute.xlu0 %1339
        %1341 = vrot.lane.b32.xlu0 %v855, 112
        %v1342 = vpop.permute.xlu0 %1341
        %v1343 = vsel %vm862, %v1340, 0
        %v1345 = vsel %vm862, %v1342, 0
        %1347 = vmatprep.subr.mxu0 0.0
        %1348 = vmatpush1.xpose.msra.mxu0 0.0
        %1349 = vmatprep.subr.mxu0 0.0
        %1350 = vmatpush1.xpose.msra.mxu0 0.0
        %1351 = vmatprep.subr.mxu0 0.0
        %1352 = vmatpush1.xpose.msra.mxu0 0.0
        %1353 = vmatprep.subr.mxu0 0.0
        %1354 = vmatpush1.xpose.msra.mxu0 0.0
        %1355 = vmatprep.subr.mxu0 0.0
        %1356 = vmatpush1.xpose.msra.mxu0 0.0
        %1357 = vmatprep.subr.mxu0 0.0
        %1358 = vmatpush1.xpose.msra.mxu0 0.0
        %1359 = vmatprep.subr.mxu0 0.0
        %1360 = vmatpush1.xpose.msra.mxu0 0.0
        %1361 = vmatprep.subr.mxu0 0.0
        %1362 = vmatpush1.xpose.msra.mxu0 0.0
        %1363 = vmatprep.subr.mxu0 0.0
        %1364 = vmatpush1.xpose.msra.mxu0 0.0
        %1365 = vmatprep.subr.mxu0 0.0
        %1366 = vmatpush1.xpose.msra.mxu0 0.0
        %1367 = vmatprep.subr.mxu0 0.0
        %1368 = vmatpush1.xpose.msra.mxu0 0.0
        %1369 = vmatprep.subr.mxu0 0.0
        %1370 = vmatpush1.xpose.msra.mxu0 0.0
        %1371 = vmatprep.subr.mxu0 0.0
        %1372 = vmatpush1.xpose.msra.mxu0 0.0
        %1373 = vmatprep.subr.mxu0 0.0
        %1374 = vmatpush1.xpose.msra.mxu0 0.0
        %1375 = vmatprep.subr.mxu0 0.0
        %1376 = vmatpush1.xpose.msra.mxu0 0.0
        %1377 = vmatprep.subr.mxu0 0.0
        %1378 = vmatpush1.xpose.msra.mxu0 %v1345
        %1379 = vmatprep.subr.mxu0 0.0
        %1380 = vmatpush2.xpose.msra.mxu0 0.0
        %1381 = vmatprep.subr.mxu0 0.0
        %1382 = vmatpush2.xpose.msra.mxu0 0.0
        %1383 = vmatprep.subr.mxu0 0.0
        %1384 = vmatpush2.xpose.msra.mxu0 0.0
        %1385 = vmatprep.subr.mxu0 0.0
        %1386 = vmatpush2.xpose.msra.mxu0 0.0
        %1387 = vmatprep.subr.mxu0 0.0
        %1388 = vmatpush2.xpose.msra.mxu0 0.0
        %1389 = vmatprep.subr.mxu0 0.0
        %1390 = vmatpush2.xpose.msra.mxu0 0.0
        %1391 = vmatprep.subr.mxu0 0.0
        %1392 = vmatpush2.xpose.msra.mxu0 0.0
        %1393 = vmatprep.subr.mxu0 0.0
        %1394 = vmatpush2.xpose.msra.mxu0 0.0
        %1395 = vmatprep.subr.mxu0 0.0
        %1396 = vmatpush2.xpose.msra.mxu0 0.0
        %1397 = vmatprep.subr.mxu0 0.0
        %1398 = vmatpush2.xpose.msra.mxu0 0.0
        %1399 = vmatprep.subr.mxu0 0.0
        %1400 = vmatpush2.xpose.msra.mxu0 0.0
        %1401 = vmatprep.subr.mxu0 0.0
        %1402 = vmatpush2.xpose.msra.mxu0 0.0
        %1403 = vmatprep.subr.mxu0 0.0
        %1404 = vmatpush2.xpose.msra.mxu0 0.0
        %1405 = vmatprep.subr.mxu0 0.0
        %1406 = vmatpush2.xpose.msra.mxu0 0.0
        %1407 = vmatprep.subr.mxu0 0.0
        %1408 = vmatpush2.xpose.msra.mxu0 0.0
        %1409 = vmatprep.subr.mxu0 0.0
        %1410 = vmatpush2.xpose.msra.mxu0 0.0
        %1411 = vmatprep.mubr.f32.mxu0 0.0
        %1412 = vmatmul.mubr.f32.gmra.mxu0 %v1343
        %v1413 = vpop.f32.mrf.mxu0
        %v1414 = vadd.f32 0.0, %v1413
        %v1415 = vpop.f32.mrf.mxu0
        %1416 = vdwg.mxu0
        %v1417 = vmul.f32 %v1414, 0.35355338
        %1418 = vrot.lane.b32.xlu0 %v771, 80
        %v1419 = vpop.permute.xlu0 %1418
        %v1422 = vsel %vm862, %v1417, 0
        %1424 = vmatprep.subr.mxu0 0.0
        %1425 = vmatpush1.msra.mxu0 0.0
        %1426 = vmatprep.subr.mxu0 0.0
        %1427 = vmatpush1.msra.mxu0 0.0
        %1428 = vmatprep.subr.mxu0 0.0
        %1429 = vmatpush1.msra.mxu0 0.0
        %1430 = vmatprep.subr.mxu0 0.0
        %1431 = vmatpush1.msra.mxu0 0.0
        %1432 = vmatprep.subr.mxu0 0.0
        %1433 = vmatpush1.msra.mxu0 0.0
        %1434 = vmatprep.subr.mxu0 0.0
        %1435 = vmatpush1.msra.mxu0 0.0
        %1436 = vmatprep.subr.mxu0 0.0
        %1437 = vmatpush1.msra.mxu0 0.0
        %1438 = vmatprep.subr.mxu0 0.0
        %1439 = vmatpush1.msra.mxu0 0.0
        %1440 = vmatprep.subr.mxu0 0.0
        %1441 = vmatpush1.msra.mxu0 0.0
        %1442 = vmatprep.subr.mxu0 0.0
        %1443 = vmatpush1.msra.mxu0 0.0
        %1444 = vmatprep.subr.mxu0 0.0
        %1445 = vmatpush1.msra.mxu0 0.0
        %1446 = vmatprep.subr.mxu0 0.0
        %1447 = vmatpush1.msra.mxu0 0.0
        %1448 = vmatprep.subr.mxu0 0.0
        %1449 = vmatpush1.msra.mxu0 0.0
        %1450 = vmatprep.subr.mxu0 0.0
        %1451 = vmatpush1.msra.mxu0 0.0
        %1452 = vmatprep.subr.mxu0 0.0
        %1453 = vmatpush1.msra.mxu0 0.0
        %1454 = vmatprep.subr.mxu0 0.0
        %1455 = vmatpush1.msra.mxu0 %v1419
        %1456 = vmatprep.subr.mxu0 0.0
        %1457 = vmatpush2.msra.mxu0 0.0
        %1458 = vmatprep.subr.mxu0 0.0
        %1459 = vmatpush2.msra.mxu0 0.0
        %1460 = vmatprep.subr.mxu0 0.0
        %1461 = vmatpush2.msra.mxu0 0.0
        %1462 = vmatprep.subr.mxu0 0.0
        %1463 = vmatpush2.msra.mxu0 0.0
        %1464 = vmatprep.subr.mxu0 0.0
        %1465 = vmatpush2.msra.mxu0 0.0
        %1466 = vmatprep.subr.mxu0 0.0
        %1467 = vmatpush2.msra.mxu0 0.0
        %1468 = vmatprep.subr.mxu0 0.0
        %1469 = vmatpush2.msra.mxu0 0.0
        %1470 = vmatprep.subr.mxu0 0.0
        %1471 = vmatpush2.msra.mxu0 0.0
        %1472 = vmatprep.subr.mxu0 0.0
        %1473 = vmatpush2.msra.mxu0 0.0
        %1474 = vmatprep.subr.mxu0 0.0
        %1475 = vmatpush2.msra.mxu0 0.0
        %1476 = vmatprep.subr.mxu0 0.0
        %1477 = vmatpush2.msra.mxu0 0.0
        %1478 = vmatprep.subr.mxu0 0.0
        %1479 = vmatpush2.msra.mxu0 0.0
        %1480 = vmatprep.subr.mxu0 0.0
        %1481 = vmatpush2.msra.mxu0 0.0
        %1482 = vmatprep.subr.mxu0 0.0
        %1483 = vmatpush2.msra.mxu0 0.0
        %1484 = vmatprep.subr.mxu0 0.0
        %1485 = vmatpush2.msra.mxu0 0.0
        %1486 = vmatprep.subr.mxu0 0.0
        %1487 = vmatpush2.msra.mxu0 0.0
        %1488 = vmatprep.mubr.f32.mxu0 0.0
        %1489 = vmatmul.mubr.f32.gmra.mxu0 %v1422
        %v1490 = vpop.f32.mrf.mxu0
        %v1491 = vadd.f32 0.0, %v1490
        %v1492 = vpop.f32.mrf.mxu0
        %1493 = vdwg.mxu0
        %v1494 = vsel %vm862, %v1491, -inf
        %1495 = vmax.xlane.f32.xlu0 %v1494
        %v1496 = vpop.xlane.xlu0 %1495
        %v1497 = vsub.f32 %v1491, %v1496
        %v1498 = vmul.f32 %v1497, 1.442695
        %v1499 = vpow.pop %v1498
        %v1500 = vsel %vm862, %v1499, 0.0
        %1501 = vadd.xlane.f32.xlu0 %v1500
        %v1502 = vpop.xlane.xlu0 %1501
        %v1503 = vrcp.pop %v1502
        %v1504 = vmul.f32 %v1499, %v1503
        %v1506 = vsel %vm862, %v1504, 0
        %1508 = vmatprep.subr.mxu0 0.0
        %1509 = vmatpush1.msra.mxu0 0.0
        %1510 = vmatprep.subr.mxu0 0.0
        %1511 = vmatpush1.msra.mxu0 0.0
        %1512 = vmatprep.subr.mxu0 0.0
        %1513 = vmatpush1.msra.mxu0 0.0
        %1514 = vmatprep.subr.mxu0 0.0
        %1515 = vmatpush1.msra.mxu0 0.0
        %1516 = vmatprep.subr.mxu0 0.0
        %1517 = vmatpush1.msra.mxu0 0.0
        %1518 = vmatprep.subr.mxu0 0.0
        %1519 = vmatpush1.msra.mxu0 0.0
        %1520 = vmatprep.subr.mxu0 0.0
        %1521 = vmatpush1.msra.mxu0 0.0
        %1522 = vmatprep.subr.mxu0 0.0
        %1523 = vmatpush1.msra.mxu0 0.0
        %1524 = vmatprep.subr.mxu0 0.0
        %1525 = vmatpush1.msra.mxu0 0.0
        %1526 = vmatprep.subr.mxu0 0.0
        %1527 = vmatpush1.msra.mxu0 0.0
        %1528 = vmatprep.subr.mxu0 0.0
        %1529 = vmatpush1.msra.mxu0 0.0
        %1530 = vmatprep.subr.mxu0 0.0
        %1531 = vmatpush1.msra.mxu0 0.0
        %1532 = vmatprep.subr.mxu0 0.0
        %1533 = vmatpush1.msra.mxu0 0.0
        %1534 = vmatprep.subr.mxu0 0.0
        %1535 = vmatpush1.msra.mxu0 0.0
        %1536 = vmatprep.subr.mxu0 0.0
        %1537 = vmatpush1.msra.mxu0 0.0
        %1538 = vmatprep.subr.mxu0 0.0
        %1539 = vmatpush1.msra.mxu0 %v860
        %1540 = vmatprep.subr.mxu0 0.0
        %1541 = vmatpush2.msra.mxu0 0.0
        %1542 = vmatprep.subr.mxu0 0.0
        %1543 = vmatpush2.msra.mxu0 0.0
        %1544 = vmatprep.subr.mxu0 0.0
        %1545 = vmatpush2.msra.mxu0 0.0
        %1546 = vmatprep.subr.mxu0 0.0
        %1547 = vmatpush2.msra.mxu0 0.0
        %1548 = vmatprep.subr.mxu0 0.0
        %1549 = vmatpush2.msra.mxu0 0.0
        %1550 = vmatprep.subr.mxu0 0.0
        %1551 = vmatpush2.msra.mxu0 0.0
        %1552 = vmatprep.subr.mxu0 0.0
        %1553 = vmatpush2.msra.mxu0 0.0
        %1554 = vmatprep.subr.mxu0 0.0
        %1555 = vmatpush2.msra.mxu0 0.0
        %1556 = vmatprep.subr.mxu0 0.0
        %1557 = vmatpush2.msra.mxu0 0.0
        %1558 = vmatprep.subr.mxu0 0.0
        %1559 = vmatpush2.msra.mxu0 0.0
        %1560 = vmatprep.subr.mxu0 0.0
        %1561 = vmatpush2.msra.mxu0 0.0
        %1562 = vmatprep.subr.mxu0 0.0
        %1563 = vmatpush2.msra.mxu0 0.0
        %1564 = vmatprep.subr.mxu0 0.0
        %1565 = vmatpush2.msra.mxu0 0.0
        %1566 = vmatprep.subr.mxu0 0.0
        %1567 = vmatpush2.msra.mxu0 0.0
        %1568 = vmatprep.subr.mxu0 0.0
        %1569 = vmatpush2.msra.mxu0 0.0
        %1570 = vmatprep.subr.mxu0 0.0
        %1571 = vmatpush2.msra.mxu0 0.0
        %1572 = vmatprep.mubr.f32.mxu0 0.0
        %1573 = vmatmul.mubr.f32.gmra.mxu0 %v1506
        %v1574 = vpop.f32.mrf.mxu0
        %v1575 = vadd.f32 0.0, %v1574
        %v1576 = vpop.f32.mrf.mxu0
        %1577 = vdwg.mxu0
        %v1578 = vadd.f32 %v1336, %v1575
        %1579 = vrot.lane.b32.xlu0 %v771, 104
        %v1580 = vpop.permute.xlu0 %1579
        %1581 = vrot.lane.b32.xlu0 %v855, 104
        %v1582 = vpop.permute.xlu0 %1581
        %v1583 = vsel %vm862, %v1580, 0
        %v1585 = vsel %vm862, %v1582, 0
        %1587 = vmatprep.subr.mxu0 0.0
        %1588 = vmatpush1.xpose.msra.mxu0 0.0
        %1589 = vmatprep.subr.mxu0 0.0
        %1590 = vmatpush1.xpose.msra.mxu0 0.0
        %1591 = vmatprep.subr.mxu0 0.0
        %1592 = vmatpush1.xpose.msra.mxu0 0.0
        %1593 = vmatprep.subr.mxu0 0.0
        %1594 = vmatpush1.xpose.msra.mxu0 0.0
        %1595 = vmatprep.subr.mxu0 0.0
        %1596 = vmatpush1.xpose.msra.mxu0 0.0
        %1597 = vmatprep.subr.mxu0 0.0
        %1598 = vmatpush1.xpose.msra.mxu0 0.0
        %1599 = vmatprep.subr.mxu0 0.0
        %1600 = vmatpush1.xpose.msra.mxu0 0.0
        %1601 = vmatprep.subr.mxu0 0.0
        %1602 = vmatpush1.xpose.msra.mxu0 0.0
        %1603 = vmatprep.subr.mxu0 0.0
        %1604 = vmatpush1.xpose.msra.mxu0 0.0
        %1605 = vmatprep.subr.mxu0 0.0
        %1606 = vmatpush1.xpose.msra.mxu0 0.0
        %1607 = vmatprep.subr.mxu0 0.0
        %1608 = vmatpush1.xpose.msra.mxu0 0.0
        %1609 = vmatprep.subr.mxu0 0.0
        %1610 = vmatpush1.xpose.msra.mxu0 0.0
        %1611 = vmatprep.subr.mxu0 0.0
        %1612 = vmatpush1.xpose.msra.mxu0 0.0
        %1613 = vmatprep.subr.mxu0 0.0
        %1614 = vmatpush1.xpose.msra.mxu0 0.0
        %1615 = vmatprep.subr.mxu0 0.0
        %1616 = vmatpush1.xpose.msra.mxu0 0.0
        %1617 = vmatprep.subr.mxu0 0.0
        %1618 = vmatpush1.xpose.msra.mxu0 %v1585
        %1619 = vmatprep.subr.mxu0 0.0
        %1620 = vmatpush2.xpose.msra.mxu0 0.0
        %1621 = vmatprep.subr.mxu0 0.0
        %1622 = vmatpush2.xpose.msra.mxu0 0.0
        %1623 = vmatprep.subr.mxu0 0.0
        %1624 = vmatpush2.xpose.msra.mxu0 0.0
        %1625 = vmatprep.subr.mxu0 0.0
        %1626 = vmatpush2.xpose.msra.mxu0 0.0
        %1627 = vmatprep.subr.mxu0 0.0
        %1628 = vmatpush2.xpose.msra.mxu0 0.0
        %1629 = vmatprep.subr.mxu0 0.0
        %1630 = vmatpush2.xpose.msra.mxu0 0.0
        %1631 = vmatprep.subr.mxu0 0.0
        %1632 = vmatpush2.xpose.msra.mxu0 0.0
        %1633 = vmatprep.subr.mxu0 0.0
        %1634 = vmatpush2.xpose.msra.mxu0 0.0
        %1635 = vmatprep.subr.mxu0 0.0
        %1636 = vmatpush2.xpose.msra.mxu0 0.0
        %1637 = vmatprep.subr.mxu0 0.0
        %1638 = vmatpush2.xpose.msra.mxu0 0.0
        %1639 = vmatprep.subr.mxu0 0.0
        %1640 = vmatpush2.xpose.msra.mxu0 0.0
        %1641 = vmatprep.subr.mxu0 0.0
        %1642 = vmatpush2.xpose.msra.mxu0 0.0
        %1643 = vmatprep.subr.mxu0 0.0
        %1644 = vmatpush2.xpose.msra.mxu0 0.0
        %1645 = vmatprep.subr.mxu0 0.0
        %1646 = vmatpush2.xpose.msra.mxu0 0.0
        %1647 = vmatprep.subr.mxu0 0.0
        %1648 = vmatpush2.xpose.msra.mxu0 0.0
        %1649 = vmatprep.subr.mxu0 0.0
        %1650 = vmatpush2.xpose.msra.mxu0 0.0
        %1651 = vmatprep.mubr.f32.mxu0 0.0
        %1652 = vmatmul.mubr.f32.gmra.mxu0 %v1583
        %v1653 = vpop.f32.mrf.mxu0
        %v1654 = vadd.f32 0.0, %v1653
        %v1655 = vpop.f32.mrf.mxu0
        %1656 = vdwg.mxu0
        %v1657 = vmul.f32 %v1654, 0.35355338
        %1658 = vrot.lane.b32.xlu0 %v771, 72
        %v1659 = vpop.permute.xlu0 %1658
        %v1662 = vsel %vm862, %v1657, 0
        %1664 = vmatprep.subr.mxu0 0.0
        %1665 = vmatpush1.msra.mxu0 0.0
        %1666 = vmatprep.subr.mxu0 0.0
        %1667 = vmatpush1.msra.mxu0 0.0
        %1668 = vmatprep.subr.mxu0 0.0
        %1669 = vmatpush1.msra.mxu0 0.0
        %1670 = vmatprep.subr.mxu0 0.0
        %1671 = vmatpush1.msra.mxu0 0.0
        %1672 = vmatprep.subr.mxu0 0.0
        %1673 = vmatpush1.msra.mxu0 0.0
        %1674 = vmatprep.subr.mxu0 0.0
        %1675 = vmatpush1.msra.mxu0 0.0
        %1676 = vmatprep.subr.mxu0 0.0
        %1677 = vmatpush1.msra.mxu0 0.0
        %1678 = vmatprep.subr.mxu0 0.0
        %1679 = vmatpush1.msra.mxu0 0.0
        %1680 = vmatprep.subr.mxu0 0.0
        %1681 = vmatpush1.msra.mxu0 0.0
        %1682 = vmatprep.subr.mxu0 0.0
        %1683 = vmatpush1.msra.mxu0 0.0
        %1684 = vmatprep.subr.mxu0 0.0
        %1685 = vmatpush1.msra.mxu0 0.0
        %1686 = vmatprep.subr.mxu0 0.0
        %1687 = vmatpush1.msra.mxu0 0.0
        %1688 = vmatprep.subr.mxu0 0.0
        %1689 = vmatpush1.msra.mxu0 0.0
        %1690 = vmatprep.subr.mxu0 0.0
        %1691 = vmatpush1.msra.mxu0 0.0
        %1692 = vmatprep.subr.mxu0 0.0
        %1693 = vmatpush1.msra.mxu0 0.0
        %1694 = vmatprep.subr.mxu0 0.0
        %1695 = vmatpush1.msra.mxu0 %v1659
        %1696 = vmatprep.subr.mxu0 0.0
        %1697 = vmatpush2.msra.mxu0 0.0
        %1698 = vmatprep.subr.mxu0 0.0
        %1699 = vmatpush2.msra.mxu0 0.0
        %1700 = vmatprep.subr.mxu0 0.0
        %1701 = vmatpush2.msra.mxu0 0.0
        %1702 = vmatprep.subr.mxu0 0.0
        %1703 = vmatpush2.msra.mxu0 0.0
        %1704 = vmatprep.subr.mxu0 0.0
        %1705 = vmatpush2.msra.mxu0 0.0
        %1706 = vmatprep.subr.mxu0 0.0
        %1707 = vmatpush2.msra.mxu0 0.0
        %1708 = vmatprep.subr.mxu0 0.0
        %1709 = vmatpush2.msra.mxu0 0.0
        %1710 = vmatprep.subr.mxu0 0.0
        %1711 = vmatpush2.msra.mxu0 0.0
        %1712 = vmatprep.subr.mxu0 0.0
        %1713 = vmatpush2.msra.mxu0 0.0
        %1714 = vmatprep.subr.mxu0 0.0
        %1715 = vmatpush2.msra.mxu0 0.0
        %1716 = vmatprep.subr.mxu0 0.0
        %1717 = vmatpush2.msra.mxu0 0.0
        %1718 = vmatprep.subr.mxu0 0.0
        %1719 = vmatpush2.msra.mxu0 0.0
        %1720 = vmatprep.subr.mxu0 0.0
        %1721 = vmatpush2.msra.mxu0 0.0
        %1722 = vmatprep.subr.mxu0 0.0
        %1723 = vmatpush2.msra.mxu0 0.0
        %1724 = vmatprep.subr.mxu0 0.0
        %1725 = vmatpush2.msra.mxu0 0.0
        %1726 = vmatprep.subr.mxu0 0.0
        %1727 = vmatpush2.msra.mxu0 0.0
        %1728 = vmatprep.mubr.f32.mxu0 0.0
        %1729 = vmatmul.mubr.f32.gmra.mxu0 %v1662
        %v1730 = vpop.f32.mrf.mxu0
        %v1731 = vadd.f32 0.0, %v1730
        %v1732 = vpop.f32.mrf.mxu0
        %1733 = vdwg.mxu0
        %v1734 = vsel %vm862, %v1731, -inf
        %1735 = vmax.xlane.f32.xlu0 %v1734
        %v1736 = vpop.xlane.xlu0 %1735
        %v1737 = vsub.f32 %v1731, %v1736
        %v1738 = vmul.f32 %v1737, 1.442695
        %v1739 = vpow.pop %v1738
        %v1740 = vsel %vm862, %v1739, 0.0
        %1741 = vadd.xlane.f32.xlu0 %v1740
        %v1742 = vpop.xlane.xlu0 %1741
        %v1743 = vrcp.pop %v1742
        %v1744 = vmul.f32 %v1739, %v1743
        %v1746 = vsel %vm862, %v1744, 0
        %1748 = vmatprep.subr.mxu0 0.0
        %1749 = vmatpush1.msra.mxu0 0.0
        %1750 = vmatprep.subr.mxu0 0.0
        %1751 = vmatpush1.msra.mxu0 0.0
        %1752 = vmatprep.subr.mxu0 0.0
        %1753 = vmatpush1.msra.mxu0 0.0
        %1754 = vmatprep.subr.mxu0 0.0
        %1755 = vmatpush1.msra.mxu0 0.0
        %1756 = vmatprep.subr.mxu0 0.0
        %1757 = vmatpush1.msra.mxu0 0.0
        %1758 = vmatprep.subr.mxu0 0.0
        %1759 = vmatpush1.msra.mxu0 0.0
        %1760 = vmatprep.subr.mxu0 0.0
        %1761 = vmatpush1.msra.mxu0 0.0
        %1762 = vmatprep.subr.mxu0 0.0
        %1763 = vmatpush1.msra.mxu0 0.0
        %1764 = vmatprep.subr.mxu0 0.0
        %1765 = vmatpush1.msra.mxu0 0.0
        %1766 = vmatprep.subr.mxu0 0.0
        %1767 = vmatpush1.msra.mxu0 0.0
        %1768 = vmatprep.subr.mxu0 0.0
        %1769 = vmatpush1.msra.mxu0 0.0
        %1770 = vmatprep.subr.mxu0 0.0
        %1771 = vmatpush1.msra.mxu0 0.0
        %1772 = vmatprep.subr.mxu0 0.0
        %1773 = vmatpush1.msra.mxu0 0.0
        %1774 = vmatprep.subr.mxu0 0.0
        %1775 = vmatpush1.msra.mxu0 0.0
        %1776 = vmatprep.subr.mxu0 0.0
        %1777 = vmatpush1.msra.mxu0 0.0
        %1778 = vmatprep.subr.mxu0 0.0
        %1779 = vmatpush1.msra.mxu0 %v861
        %1780 = vmatprep.subr.mxu0 0.0
        %1781 = vmatpush2.msra.mxu0 0.0
        %1782 = vmatprep.subr.mxu0 0.0
        %1783 = vmatpush2.msra.mxu0 0.0
        %1784 = vmatprep.subr.mxu0 0.0
        %1785 = vmatpush2.msra.mxu0 0.0
        %1786 = vmatprep.subr.mxu0 0.0
        %1787 = vmatpush2.msra.mxu0 0.0
        %1788 = vmatprep.subr.mxu0 0.0
        %1789 = vmatpush2.msra.mxu0 0.0
        %1790 = vmatprep.subr.mxu0 0.0
        %1791 = vmatpush2.msra.mxu0 0.0
        %1792 = vmatprep.subr.mxu0 0.0
        %1793 = vmatpush2.msra.mxu0 0.0
        %1794 = vmatprep.subr.mxu0 0.0
        %1795 = vmatpush2.msra.mxu0 0.0
        %1796 = vmatprep.subr.mxu0 0.0
        %1797 = vmatpush2.msra.mxu0 0.0
        %1798 = vmatprep.subr.mxu0 0.0
        %1799 = vmatpush2.msra.mxu0 0.0
        %1800 = vmatprep.subr.mxu0 0.0
        %1801 = vmatpush2.msra.mxu0 0.0
        %1802 = vmatprep.subr.mxu0 0.0
        %1803 = vmatpush2.msra.mxu0 0.0
        %1804 = vmatprep.subr.mxu0 0.0
        %1805 = vmatpush2.msra.mxu0 0.0
        %1806 = vmatprep.subr.mxu0 0.0
        %1807 = vmatpush2.msra.mxu0 0.0
        %1808 = vmatprep.subr.mxu0 0.0
        %1809 = vmatpush2.msra.mxu0 0.0
        %1810 = vmatprep.subr.mxu0 0.0
        %1811 = vmatpush2.msra.mxu0 0.0
        %1812 = vmatprep.mubr.f32.mxu0 0.0
        %1813 = vmatmul.mubr.f32.gmra.mxu0 %v1746
        %v1814 = vpop.f32.mrf.mxu0
        %v1815 = vadd.f32 0.0, %v1814
        %v1816 = vpop.f32.mrf.mxu0
        %1817 = vdwg.mxu0
        %v1818 = vadd.f32 %v1578, %v1815
        %v1819 = vld [vmem:[%s8] sm:$0x1]
        %v1821 = vlaneseq
        %v1822 = vshrl.u32 %v1821, 7
        %v1823 = vsub.s32 0, %v1822
        %v1824 = vrot.slane %v1819, %v1823
        %v1826 = vadd.f32 %v1818, %v1824
        %v1827 = vld [vmem:[%s15] sm:$0x1]
        %v1828 = vld [vmem:[%s16] sm:$0x1]
        %v1829 = vsel %vm700, %v1826, 0.0
        %1830 = vadd.xlane.f32.xlu0 %v1829
        %v1831 = vpop.xlane.xlu0 %1830
        %v1832 = vrcp.pop 32.0
        %v1833 = vmul.f32 %v1831, %v1832
        %v1834 = vsub.f32 %v1826, %v1833
        %v1835 = vmul.f32 %v1834, %v1834
        %v1836 = vsel %vm700, %v1835, 0.0
        %1837 = vadd.xlane.f32.xlu0 %v1836
        %v1838 = vpop.xlane.xlu0 %1837
        %v1839 = vmul.f32 %v1838, %v1832
        %v1840 = vadd.f32 %v1839, 1e-05
        %v1841 = vrsqrt.pop %v1840
        %v1842 = vmul.f32 %v1834, %v1841
        %v1844 = vlaneseq
        %v1845 = vshrl.u32 %v1844, 7
        %v1846 = vsub.s32 0, %v1845
        %v1847 = vrot.slane %v1827, %v1846
        %v1849 = vmul.f32 %v1842, %v1847
        %v1851 = vlaneseq
        %v1852 = vshrl.u32 %v1851, 7
        %v1853 = vsub.s32 0, %v1852
        %v1854 = vrot.slane %v1828, %v1853
        %v1856 = vadd.f32 %v1849, %v1854
        %v1857 = vadd.f32 %v1826, %v1856
        %s1858 = scalar_lea.vmem %s15, 1
        %v1859 = vld [vmem:[%s1858] sm:$0x1]
        %s1860 = scalar_lea.vmem %s16, 1
        %v1861 = vld [vmem:[%s1860] sm:$0x1]
        %v1862 = vsel %vm700, %v686, 0.0
        %1863 = vadd.xlane.f32.xlu0 %v1862
        %v1864 = vpop.xlane.xlu0 %1863
        %v1865 = vmul.f32 %v1864, %v1832
        %v1866 = vsub.f32 %v686, %v1865
        %v1867 = vmul.f32 %v1866, %v1866
        %v1868 = vsel %vm700, %v1867, 0.0
        %1869 = vadd.xlane.f32.xlu0 %v1868
        %v1870 = vpop.xlane.xlu0 %1869
        %v1871 = vmul.f32 %v1870, %v1832
        %v1872 = vadd.f32 %v1871, 1e-05
        %v1873 = vrsqrt.pop %v1872
        %v1874 = vmul.f32 %v1866, %v1873
        %v1876 = vlaneseq
        %v1877 = vshrl.u32 %v1876, 7
        %v1878 = vsub.s32 0, %v1877
        %v1879 = vrot.slane %v1859, %v1878
        %v1881 = vmul.f32 %v1874, %v1879
        %v1883 = vlaneseq
        %v1884 = vshrl.u32 %v1883, 7
        %v1885 = vsub.s32 0, %v1884
        %v1886 = vrot.slane %v1861, %v1885
        %v1888 = vadd.f32 %v1881, %v1886
        %v1889 = vadd.f32 %v686, %v1888
        %v1890 = vadd.f32 %v1857, %v1889
        %v1891 = vld [vmem:[%s9] sm:$0xff]
        %v1892 = vld [vmem:[%s9 + $0x8] sm:$0xff]
        %v1893 = vld [vmem:[%s9 + $0x10] sm:$0xff]
        %v1894 = vld [vmem:[%s9 + $0x18] sm:$0xff]
        %v1895 = vld [vmem:[%s10] sm:$0x1]
        %v1897 = vlaneseq
        %v1898 = vshrl.u32 %v1897, 7
        %v1899 = vsub.s32 0, %v1898
        %v1900 = vrot.slane %v1895, %v1899
        %v1903 = vsel %vm700, %v688, 0
        %1905 = vmatprep.subr.mxu0 0.0
        %1906 = vmatpush1.msra.mxu0 0.0
        %1907 = vmatprep.subr.mxu0 0.0
        %1908 = vmatpush1.msra.mxu0 0.0
        %1909 = vmatprep.subr.mxu0 0.0
        %1910 = vmatpush1.msra.mxu0 0.0
        %1911 = vmatprep.subr.mxu0 0.0
        %1912 = vmatpush1.msra.mxu0 0.0
        %1913 = vmatprep.subr.mxu0 0.0
        %1914 = vmatpush1.msra.mxu0 0.0
        %1915 = vmatprep.subr.mxu0 0.0
        %1916 = vmatpush1.msra.mxu0 0.0
        %1917 = vmatprep.subr.mxu0 0.0
        %1918 = vmatpush1.msra.mxu0 0.0
        %1919 = vmatprep.subr.mxu0 0.0
        %1920 = vmatpush1.msra.mxu0 0.0
        %1921 = vmatprep.subr.mxu0 0.0
        %1922 = vmatpush1.msra.mxu0 0.0
        %1923 = vmatprep.subr.mxu0 0.0
        %1924 = vmatpush1.msra.mxu0 0.0
        %1925 = vmatprep.subr.mxu0 0.0
        %1926 = vmatpush1.msra.mxu0 0.0
        %1927 = vmatprep.subr.mxu0 0.0
        %1928 = vmatpush1.msra.mxu0 0.0
        %1929 = vmatprep.subr.mxu0 0.0
        %1930 = vmatpush1.msra.mxu0 %v1894
        %1931 = vmatprep.subr.mxu0 0.0
        %1932 = vmatpush1.msra.mxu0 %v1893
        %1933 = vmatprep.subr.mxu0 0.0
        %1934 = vmatpush1.msra.mxu0 %v1892
        %1935 = vmatprep.subr.mxu0 0.0
        %1936 = vmatpush1.msra.mxu0 %v1891
        %1937 = vmatprep.subr.mxu0 0.0
        %1938 = vmatpush2.msra.mxu0 0.0
        %1939 = vmatprep.subr.mxu0 0.0
        %1940 = vmatpush2.msra.mxu0 0.0
        %1941 = vmatprep.subr.mxu0 0.0
        %1942 = vmatpush2.msra.mxu0 0.0
        %1943 = vmatprep.subr.mxu0 0.0
        %1944 = vmatpush2.msra.mxu0 0.0
        %1945 = vmatprep.subr.mxu0 0.0
        %1946 = vmatpush2.msra.mxu0 0.0
        %1947 = vmatprep.subr.mxu0 0.0
        %1948 = vmatpush2.msra.mxu0 0.0
        %1949 = vmatprep.subr.mxu0 0.0
        %1950 = vmatpush2.msra.mxu0 0.0
        %1951 = vmatprep.subr.mxu0 0.0
        %1952 = vmatpush2.msra.mxu0 0.0
        %1953 = vmatprep.subr.mxu0 0.0
        %1954 = vmatpush2.msra.mxu0 0.0
        %1955 = vmatprep.subr.mxu0 0.0
        %1956 = vmatpush2.msra.mxu0 0.0
        %1957 = vmatprep.subr.mxu0 0.0
        %1958 = vmatpush2.msra.mxu0 0.0
        %1959 = vmatprep.subr.mxu0 0.0
        %1960 = vmatpush2.msra.mxu0 0.0
        %1961 = vmatprep.subr.mxu0 0.0
        %1962 = vmatpush2.msra.mxu0 0.0
        %1963 = vmatprep.subr.mxu0 0.0
        %1964 = vmatpush2.msra.mxu0 0.0
        %1965 = vmatprep.subr.mxu0 0.0
        %1966 = vmatpush2.msra.mxu0 0.0
        %1967 = vmatprep.subr.mxu0 0.0
        %1968 = vmatpush2.msra.mxu0 0.0
        %1969 = vmatprep.mubr.f32.mxu0 0.0
        %1970 = vmatmul.mubr.f32.gmra.mxu0 %v1903
        %v1971 = vpop.f32.mrf.mxu0
        %v1972 = vadd.f32 %v1900, %v1971
        %v1973 = vpop.f32.mrf.mxu0
        %1974 = vdwg.mxu0
        %v1975 = vld [vmem:[%s11] sm:$0xff]
        %v1976 = vld [vmem:[%s11 + $0x8] sm:$0xff]
        %v1977 = vld [vmem:[%s11 + $0x10] sm:$0xff]
        %v1978 = vld [vmem:[%s11 + $0x18] sm:$0xff]
        %v1979 = vld [vmem:[%s12] sm:$0x1]
        %v1981 = vlaneseq
        %v1982 = vshrl.u32 %v1981, 7
        %v1983 = vsub.s32 0, %v1982
        %v1984 = vrot.slane %v1979, %v1983
        %v1987 = vsel %vm700, %v1890, 0
        %1989 = vmatprep.subr.mxu0 0.0
        %1990 = vmatpush1.msra.mxu0 0.0
        %1991 = vmatprep.subr.mxu0 0.0
        %1992 = vmatpush1.msra.mxu0 0.0
        %1993 = vmatprep.subr.mxu0 0.0
        %1994 = vmatpush1.msra.mxu0 0.0
        %1995 = vmatprep.subr.mxu0 0.0
        %1996 = vmatpush1.msra.mxu0 0.0
        %1997 = vmatprep.subr.mxu0 0.0
        %1998 = vmatpush1.msra.mxu0 0.0
        %1999 = vmatprep.subr.mxu0 0.0
        %2000 = vmatpush1.msra.mxu0 0.0
        %2001 = vmatprep.subr.mxu0 0.0
        %2002 = vmatpush1.msra.mxu0 0.0
        %2003 = vmatprep.subr.mxu0 0.0
        %2004 = vmatpush1.msra.mxu0 0.0
        %2005 = vmatprep.subr.mxu0 0.0
        %2006 = vmatpush1.msra.mxu0 0.0
        %2007 = vmatprep.subr.mxu0 0.0
        %2008 = vmatpush1.msra.mxu0 0.0
        %2009 = vmatprep.subr.mxu0 0.0
        %2010 = vmatpush1.msra.mxu0 0.0
        %2011 = vmatprep.subr.mxu0 0.0
        %2012 = vmatpush1.msra.mxu0 0.0
        %2013 = vmatprep.subr.mxu0 0.0
        %2014 = vmatpush1.msra.mxu0 %v1978
        %2015 = vmatprep.subr.mxu0 0.0
        %2016 = vmatpush1.msra.mxu0 %v1977
        %2017 = vmatprep.subr.mxu0 0.0
        %2018 = vmatpush1.msra.mxu0 %v1976
        %2019 = vmatprep.subr.mxu0 0.0
        %2020 = vmatpush1.msra.mxu0 %v1975
        %2021 = vmatprep.subr.mxu0 0.0
        %2022 = vmatpush2.msra.mxu0 0.0
        %2023 = vmatprep.subr.mxu0 0.0
        %2024 = vmatpush2.msra.mxu0 0.0
        %2025 = vmatprep.subr.mxu0 0.0
        %2026 = vmatpush2.msra.mxu0 0.0
        %2027 = vmatprep.subr.mxu0 0.0
        %2028 = vmatpush2.msra.mxu0 0.0
        %2029 = vmatprep.subr.mxu0 0.0
        %2030 = vmatpush2.msra.mxu0 0.0
        %2031 = vmatprep.subr.mxu0 0.0
        %2032 = vmatpush2.msra.mxu0 0.0
        %2033 = vmatprep.subr.mxu0 0.0
        %2034 = vmatpush2.msra.mxu0 0.0
        %2035 = vmatprep.subr.mxu0 0.0
        %2036 = vmatpush2.msra.mxu0 0.0
        %2037 = vmatprep.subr.mxu0 0.0
        %2038 = vmatpush2.msra.mxu0 0.0
        %2039 = vmatprep.subr.mxu0 0.0
        %2040 = vmatpush2.msra.mxu0 0.0
        %2041 = vmatprep.subr.mxu0 0.0
        %2042 = vmatpush2.msra.mxu0 0.0
        %2043 = vmatprep.subr.mxu0 0.0
        %2044 = vmatpush2.msra.mxu0 0.0
        %2045 = vmatprep.subr.mxu0 0.0
        %2046 = vmatpush2.msra.mxu0 0.0
        %2047 = vmatprep.subr.mxu0 0.0
        %2048 = vmatpush2.msra.mxu0 0.0
        %2049 = vmatprep.subr.mxu0 0.0
        %2050 = vmatpush2.msra.mxu0 0.0
        %2051 = vmatprep.subr.mxu0 0.0
        %2052 = vmatpush2.msra.mxu0 0.0
        %2053 = vmatprep.mubr.f32.mxu0 0.0
        %2054 = vmatmul.mubr.f32.gmra.mxu0 %v1987
        %v2055 = vpop.f32.mrf.mxu0
        %v2056 = vadd.f32 %v1984, %v2055
        %v2057 = vpop.f32.mrf.mxu0
        %2058 = vdwg.mxu0
        %v2059 = vld [vmem:[%s13] sm:$0xff]
        %v2060 = vld [vmem:[%s13 + $0x8] sm:$0xff]
        %v2061 = vld [vmem:[%s13 + $0x10] sm:$0xff]
        %v2062 = vld [vmem:[%s13 + $0x18] sm:$0xff]
        %v2064 = vsel %vm862, %v1972, 0
        %v2067 = vsel %vm862, %v2056, 0
        %2069 = vmatprep.subr.mxu0 0.0
        %2070 = vmatpush1.xpose.msra.mxu0 0.0
        %2071 = vmatprep.subr.mxu0 0.0
        %2072 = vmatpush1.xpose.msra.mxu0 0.0
        %2073 = vmatprep.subr.mxu0 0.0
        %2074 = vmatpush1.xpose.msra.mxu0 0.0
        %2075 = vmatprep.subr.mxu0 0.0
        %2076 = vmatpush1.xpose.msra.mxu0 0.0
        %2077 = vmatprep.subr.mxu0 0.0
        %2078 = vmatpush1.xpose.msra.mxu0 0.0
        %2079 = vmatprep.subr.mxu0 0.0
        %2080 = vmatpush1.xpose.msra.mxu0 0.0
        %2081 = vmatprep.subr.mxu0 0.0
        %2082 = vmatpush1.xpose.msra.mxu0 0.0
        %2083 = vmatprep.subr.mxu0 0.0
        %2084 = vmatpush1.xpose.msra.mxu0 0.0
        %2085 = vmatprep.subr.mxu0 0.0
        %2086 = vmatpush1.xpose.msra.mxu0 0.0
        %2087 = vmatprep.subr.mxu0 0.0
        %2088 = vmatpush1.xpose.msra.mxu0 0.0
        %2089 = vmatprep.subr.mxu0 0.0
        %2090 = vmatpush1.xpose.msra.mxu0 0.0
        %2091 = vmatprep.subr.mxu0 0.0
        %2092 = vmatpush1.xpose.msra.mxu0 0.0
        %2093 = vmatprep.subr.mxu0 0.0
        %2094 = vmatpush1.xpose.msra.mxu0 0.0
        %2095 = vmatprep.subr.mxu0 0.0
        %2096 = vmatpush1.xpose.msra.mxu0 0.0
        %2097 = vmatprep.subr.mxu0 0.0
        %2098 = vmatpush1.xpose.msra.mxu0 0.0
        %2099 = vmatprep.subr.mxu0 0.0
        %2100 = vmatpush1.xpose.msra.mxu0 %v2067
        %2101 = vmatprep.subr.mxu0 0.0
        %2102 = vmatpush2.xpose.msra.mxu0 0.0
        %2103 = vmatprep.subr.mxu0 0.0
        %2104 = vmatpush2.xpose.msra.mxu0 0.0
        %2105 = vmatprep.subr.mxu0 0.0
        %2106 = vmatpush2.xpose.msra.mxu0 0.0
        %2107 = vmatprep.subr.mxu0 0.0
        %2108 = vmatpush2.xpose.msra.mxu0 0.0
        %2109 = vmatprep.subr.mxu0 0.0
        %2110 = vmatpush2.xpose.msra.mxu0 0.0
        %2111 = vmatprep.subr.mxu0 0.0
        %2112 = vmatpush2.xpose.msra.mxu0 0.0
        %2113 = vmatprep.subr.mxu0 0.0
        %2114 = vmatpush2.xpose.msra.mxu0 0.0
        %2115 = vmatprep.subr.mxu0 0.0
        %2116 = vmatpush2.xpose.msra.mxu0 0.0
        %2117 = vmatprep.subr.mxu0 0.0
        %2118 = vmatpush2.xpose.msra.mxu0 0.0
        %2119 = vmatprep.subr.mxu0 0.0
        %2120 = vmatpush2.xpose.msra.mxu0 0.0
        %2121 = vmatprep.subr.mxu0 0.0
        %2122 = vmatpush2.xpose.msra.mxu0 0.0
        %2123 = vmatprep.subr.mxu0 0.0
        %2124 = vmatpush2.xpose.msra.mxu0 0.0
        %2125 = vmatprep.subr.mxu0 0.0
        %2126 = vmatpush2.xpose.msra.mxu0 0.0
        %2127 = vmatprep.subr.mxu0 0.0
        %2128 = vmatpush2.xpose.msra.mxu0 0.0
        %2129 = vmatprep.subr.mxu0 0.0
        %2130 = vmatpush2.xpose.msra.mxu0 0.0
        %2131 = vmatprep.subr.mxu0 0.0
        %2132 = vmatpush2.xpose.msra.mxu0 0.0
        %2133 = vmatprep.mubr.f32.mxu0 0.0
        %2134 = vmatmul.mubr.f32.gmra.mxu0 %v2064
        %v2135 = vpop.f32.mrf.mxu0
        %v2136 = vadd.f32 0.0, %v2135
        %v2137 = vpop.f32.mrf.mxu0
        %2138 = vdwg.mxu0
        %v2139 = vmul.f32 %v2136, 0.35355338
        %2140 = vrot.lane.b32.xlu0 %v1972, 96
        %v2141 = vpop.permute.xlu0 %2140
        %v2144 = vsel %vm862, %v2139, 0
        %2146 = vmatprep.subr.mxu0 0.0
        %2147 = vmatpush1.msra.mxu0 0.0
        %2148 = vmatprep.subr.mxu0 0.0
        %2149 = vmatpush1.msra.mxu0 0.0
        %2150 = vmatprep.subr.mxu0 0.0
        %2151 = vmatpush1.msra.mxu0 0.0
        %2152 = vmatprep.subr.mxu0 0.0
        %2153 = vmatpush1.msra.mxu0 0.0
        %2154 = vmatprep.subr.mxu0 0.0
        %2155 = vmatpush1.msra.mxu0 0.0
        %2156 = vmatprep.subr.mxu0 0.0
        %2157 = vmatpush1.msra.mxu0 0.0
        %2158 = vmatprep.subr.mxu0 0.0
        %2159 = vmatpush1.msra.mxu0 0.0
        %2160 = vmatprep.subr.mxu0 0.0
        %2161 = vmatpush1.msra.mxu0 0.0
        %2162 = vmatprep.subr.mxu0 0.0
        %2163 = vmatpush1.msra.mxu0 0.0
        %2164 = vmatprep.subr.mxu0 0.0
        %2165 = vmatpush1.msra.mxu0 0.0
        %2166 = vmatprep.subr.mxu0 0.0
        %2167 = vmatpush1.msra.mxu0 0.0
        %2168 = vmatprep.subr.mxu0 0.0
        %2169 = vmatpush1.msra.mxu0 0.0
        %2170 = vmatprep.subr.mxu0 0.0
        %2171 = vmatpush1.msra.mxu0 0.0
        %2172 = vmatprep.subr.mxu0 0.0
        %2173 = vmatpush1.msra.mxu0 0.0
        %2174 = vmatprep.subr.mxu0 0.0
        %2175 = vmatpush1.msra.mxu0 0.0
        %2176 = vmatprep.subr.mxu0 0.0
        %2177 = vmatpush1.msra.mxu0 %v2141
        %2178 = vmatprep.subr.mxu0 0.0
        %2179 = vmatpush2.msra.mxu0 0.0
        %2180 = vmatprep.subr.mxu0 0.0
        %2181 = vmatpush2.msra.mxu0 0.0
        %2182 = vmatprep.subr.mxu0 0.0
        %2183 = vmatpush2.msra.mxu0 0.0
        %2184 = vmatprep.subr.mxu0 0.0
        %2185 = vmatpush2.msra.mxu0 0.0
        %2186 = vmatprep.subr.mxu0 0.0
        %2187 = vmatpush2.msra.mxu0 0.0
        %2188 = vmatprep.subr.mxu0 0.0
        %2189 = vmatpush2.msra.mxu0 0.0
        %2190 = vmatprep.subr.mxu0 0.0
        %2191 = vmatpush2.msra.mxu0 0.0
        %2192 = vmatprep.subr.mxu0 0.0
        %2193 = vmatpush2.msra.mxu0 0.0
        %2194 = vmatprep.subr.mxu0 0.0
        %2195 = vmatpush2.msra.mxu0 0.0
        %2196 = vmatprep.subr.mxu0 0.0
        %2197 = vmatpush2.msra.mxu0 0.0
        %2198 = vmatprep.subr.mxu0 0.0
        %2199 = vmatpush2.msra.mxu0 0.0
        %2200 = vmatprep.subr.mxu0 0.0
        %2201 = vmatpush2.msra.mxu0 0.0
        %2202 = vmatprep.subr.mxu0 0.0
        %2203 = vmatpush2.msra.mxu0 0.0
        %2204 = vmatprep.subr.mxu0 0.0
        %2205 = vmatpush2.msra.mxu0 0.0
        %2206 = vmatprep.subr.mxu0 0.0
        %2207 = vmatpush2.msra.mxu0 0.0
        %2208 = vmatprep.subr.mxu0 0.0
        %2209 = vmatpush2.msra.mxu0 0.0
        %2210 = vmatprep.mubr.f32.mxu0 0.0
        %2211 = vmatmul.mubr.f32.gmra.mxu0 %v2144
        %v2212 = vpop.f32.mrf.mxu0
        %v2213 = vadd.f32 0.0, %v2212
        %v2214 = vpop.f32.mrf.mxu0
        %2215 = vdwg.mxu0
        %v2216 = vsel %vm862, %v2213, -inf
        %2217 = vmax.xlane.f32.xlu0 %v2216
        %v2218 = vpop.xlane.xlu0 %2217
        %v2219 = vsub.f32 %v2213, %v2218
        %v2220 = vmul.f32 %v2219, 1.442695
        %v2221 = vpow.pop %v2220
        %v2222 = vsel %vm862, %v2221, 0.0
        %2223 = vadd.xlane.f32.xlu0 %v2222
        %v2224 = vpop.xlane.xlu0 %2223
        %v2225 = vrcp.pop %v2224
        %v2226 = vmul.f32 %v2221, %v2225
        %2227 = vrot.lane.b32.xlu0 %v1972, 120
        %v2228 = vpop.permute.xlu0 %2227
        %2229 = vrot.lane.b32.xlu0 %v2056, 120
        %v2230 = vpop.permute.xlu0 %2229
        %v2231 = vsel %vm862, %v2228, 0
        %v2233 = vsel %vm862, %v2230, 0
        %2235 = vmatprep.subr.mxu0 0.0
        %2236 = vmatpush1.xpose.msra.mxu0 0.0
        %2237 = vmatprep.subr.mxu0 0.0
        %2238 = vmatpush1.xpose.msra.mxu0 0.0
        %2239 = vmatprep.subr.mxu0 0.0
        %2240 = vmatpush1.xpose.msra.mxu0 0.0
        %2241 = vmatprep.subr.mxu0 0.0
        %2242 = vmatpush1.xpose.msra.mxu0 0.0
        %2243 = vmatprep.subr.mxu0 0.0
        %2244 = vmatpush1.xpose.msra.mxu0 0.0
        %2245 = vmatprep.subr.mxu0 0.0
        %2246 = vmatpush1.xpose.msra.mxu0 0.0
        %2247 = vmatprep.subr.mxu0 0.0
        %2248 = vmatpush1.xpose.msra.mxu0 0.0
        %2249 = vmatprep.subr.mxu0 0.0
        %2250 = vmatpush1.xpose.msra.mxu0 0.0
        %2251 = vmatprep.subr.mxu0 0.0
        %2252 = vmatpush1.xpose.msra.mxu0 0.0
        %2253 = vmatprep.subr.mxu0 0.0
        %2254 = vmatpush1.xpose.msra.mxu0 0.0
        %2255 = vmatprep.subr.mxu0 0.0
        %2256 = vmatpush1.xpose.msra.mxu0 0.0
        %2257 = vmatprep.subr.mxu0 0.0
        %2258 = vmatpush1.xpose.msra.mxu0 0.0
        %2259 = vmatprep.subr.mxu0 0.0
        %2260 = vmatpush1.xpose.msra.mxu0 0.0
        %2261 = vmatprep.subr.mxu0 0.0
        %2262 = vmatpush1.xpose.msra.mxu0 0.0
        %2263 = vmatprep.subr.mxu0 0.0
        %2264 = vmatpush1.xpose.msra.mxu0 0.0
        %2265 = vmatprep.subr.mxu0 0.0
        %2266 = vmatpush1.xpose.msra.mxu0 %v2233
        %2267 = vmatprep.subr.mxu0 0.0
        %2268 = vmatpush2.xpose.msra.mxu0 0.0
        %2269 = vmatprep.subr.mxu0 0.0
        %2270 = vmatpush2.xpose.msra.mxu0 0.0
        %2271 = vmatprep.subr.mxu0 0.0
        %2272 = vmatpush2.xpose.msra.mxu0 0.0
        %2273 = vmatprep.subr.mxu0 0.0
        %2274 = vmatpush2.xpose.msra.mxu0 0.0
        %2275 = vmatprep.subr.mxu0 0.0
        %2276 = vmatpush2.xpose.msra.mxu0 0.0
        %2277 = vmatprep.subr.mxu0 0.0
        %2278 = vmatpush2.xpose.msra.mxu0 0.0
        %2279 = vmatprep.subr.mxu0 0.0
        %2280 = vmatpush2.xpose.msra.mxu0 0.0
        %2281 = vmatprep.subr.mxu0 0.0
        %2282 = vmatpush2.xpose.msra.mxu0 0.0
        %2283 = vmatprep.subr.mxu0 0.0
        %2284 = vmatpush2.xpose.msra.mxu0 0.0
        %2285 = vmatprep.subr.mxu0 0.0
        %2286 = vmatpush2.xpose.msra.mxu0 0.0
        %2287 = vmatprep.subr.mxu0 0.0
        %2288 = vmatpush2.xpose.msra.mxu0 0.0
        %2289 = vmatprep.subr.mxu0 0.0
        %2290 = vmatpush2.xpose.msra.mxu0 0.0
        %2291 = vmatprep.subr.mxu0 0.0
        %2292 = vmatpush2.xpose.msra.mxu0 0.0
        %2293 = vmatprep.subr.mxu0 0.0
        %2294 = vmatpush2.xpose.msra.mxu0 0.0
        %2295 = vmatprep.subr.mxu0 0.0
        %2296 = vmatpush2.xpose.msra.mxu0 0.0
        %2297 = vmatprep.subr.mxu0 0.0
        %2298 = vmatpush2.xpose.msra.mxu0 0.0
        %2299 = vmatprep.mubr.f32.mxu0 0.0
        %2300 = vmatmul.mubr.f32.gmra.mxu0 %v2231
        %v2301 = vpop.f32.mrf.mxu0
        %v2302 = vadd.f32 0.0, %v2301
        %v2303 = vpop.f32.mrf.mxu0
        %2304 = vdwg.mxu0
        %v2305 = vmul.f32 %v2302, 0.35355338
        %2306 = vrot.lane.b32.xlu0 %v1972, 88
        %v2307 = vpop.permute.xlu0 %2306
        %v2310 = vsel %vm862, %v2305, 0
        %2312 = vmatprep.subr.mxu0 0.0
        %2313 = vmatpush1.msra.mxu0 0.0
        %2314 = vmatprep.subr.mxu0 0.0
        %2315 = vmatpush1.msra.mxu0 0.0
        %2316 = vmatprep.subr.mxu0 0.0
        %2317 = vmatpush1.msra.mxu0 0.0
        %2318 = vmatprep.subr.mxu0 0.0
        %2319 = vmatpush1.msra.mxu0 0.0
        %2320 = vmatprep.subr.mxu0 0.0
        %2321 = vmatpush1.msra.mxu0 0.0
        %2322 = vmatprep.subr.mxu0 0.0
        %2323 = vmatpush1.msra.mxu0 0.0
        %2324 = vmatprep.subr.mxu0 0.0
        %2325 = vmatpush1.msra.mxu0 0.0
        %2326 = vmatprep.subr.mxu0 0.0
        %2327 = vmatpush1.msra.mxu0 0.0
        %2328 = vmatprep.subr.mxu0 0.0
        %2329 = vmatpush1.msra.mxu0 0.0
        %2330 = vmatprep.subr.mxu0 0.0
        %2331 = vmatpush1.msra.mxu0 0.0
        %2332 = vmatprep.subr.mxu0 0.0
        %2333 = vmatpush1.msra.mxu0 0.0
        %2334 = vmatprep.subr.mxu0 0.0
        %2335 = vmatpush1.msra.mxu0 0.0
        %2336 = vmatprep.subr.mxu0 0.0
        %2337 = vmatpush1.msra.mxu0 0.0
        %2338 = vmatprep.subr.mxu0 0.0
        %2339 = vmatpush1.msra.mxu0 0.0
        %2340 = vmatprep.subr.mxu0 0.0
        %2341 = vmatpush1.msra.mxu0 0.0
        %2342 = vmatprep.subr.mxu0 0.0
        %2343 = vmatpush1.msra.mxu0 %v2307
        %2344 = vmatprep.subr.mxu0 0.0
        %2345 = vmatpush2.msra.mxu0 0.0
        %2346 = vmatprep.subr.mxu0 0.0
        %2347 = vmatpush2.msra.mxu0 0.0
        %2348 = vmatprep.subr.mxu0 0.0
        %2349 = vmatpush2.msra.mxu0 0.0
        %2350 = vmatprep.subr.mxu0 0.0
        %2351 = vmatpush2.msra.mxu0 0.0
        %2352 = vmatprep.subr.mxu0 0.0
        %2353 = vmatpush2.msra.mxu0 0.0
        %2354 = vmatprep.subr.mxu0 0.0
        %2355 = vmatpush2.msra.mxu0 0.0
        %2356 = vmatprep.subr.mxu0 0.0
        %2357 = vmatpush2.msra.mxu0 0.0
        %2358 = vmatprep.subr.mxu0 0.0
        %2359 = vmatpush2.msra.mxu0 0.0
        %2360 = vmatprep.subr.mxu0 0.0
        %2361 = vmatpush2.msra.mxu0 0.0
        %2362 = vmatprep.subr.mxu0 0.0
        %2363 = vmatpush2.msra.mxu0 0.0
        %2364 = vmatprep.subr.mxu0 0.0
        %2365 = vmatpush2.msra.mxu0 0.0
        %2366 = vmatprep.subr.mxu0 0.0
        %2367 = vmatpush2.msra.mxu0 0.0
        %2368 = vmatprep.subr.mxu0 0.0
        %2369 = vmatpush2.msra.mxu0 0.0
        %2370 = vmatprep.subr.mxu0 0.0
        %2371 = vmatpush2.msra.mxu0 0.0
        %2372 = vmatprep.subr.mxu0 0.0
        %2373 = vmatpush2.msra.mxu0 0.0
        %2374 = vmatprep.subr.mxu0 0.0
        %2375 = vmatpush2.msra.mxu0 0.0
        %2376 = vmatprep.mubr.f32.mxu0 0.0
        %2377 = vmatmul.mubr.f32.gmra.mxu0 %v2310
        %v2378 = vpop.f32.mrf.mxu0
        %v2379 = vadd.f32 0.0, %v2378
        %v2380 = vpop.f32.mrf.mxu0
        %2381 = vdwg.mxu0
        %v2382 = vsel %vm862, %v2379, -inf
        %2383 = vmax.xlane.f32.xlu0 %v2382
        %v2384 = vpop.xlane.xlu0 %2383
        %v2385 = vsub.f32 %v2379, %v2384
        %v2386 = vmul.f32 %v2385, 1.442695
        %v2387 = vpow.pop %v2386
        %v2388 = vsel %vm862, %v2387, 0.0
        %2389 = vadd.xlane.f32.xlu0 %v2388
        %v2390 = vpop.xlane.xlu0 %2389
        %v2391 = vrcp.pop %v2390
        %v2392 = vmul.f32 %v2387, %v2391
        %v2394 = vsel %vm862, %v2392, 0
        %2396 = vmatprep.subr.mxu0 0.0
        %2397 = vmatpush1.msra.mxu0 0.0
        %2398 = vmatprep.subr.mxu0 0.0
        %2399 = vmatpush1.msra.mxu0 0.0
        %2400 = vmatprep.subr.mxu0 0.0
        %2401 = vmatpush1.msra.mxu0 0.0
        %2402 = vmatprep.subr.mxu0 0.0
        %2403 = vmatpush1.msra.mxu0 0.0
        %2404 = vmatprep.subr.mxu0 0.0
        %2405 = vmatpush1.msra.mxu0 0.0
        %2406 = vmatprep.subr.mxu0 0.0
        %2407 = vmatpush1.msra.mxu0 0.0
        %2408 = vmatprep.subr.mxu0 0.0
        %2409 = vmatpush1.msra.mxu0 0.0
        %2410 = vmatprep.subr.mxu0 0.0
        %2411 = vmatpush1.msra.mxu0 0.0
        %2412 = vmatprep.subr.mxu0 0.0
        %2413 = vmatpush1.msra.mxu0 0.0
        %2414 = vmatprep.subr.mxu0 0.0
        %2415 = vmatpush1.msra.mxu0 0.0
        %2416 = vmatprep.subr.mxu0 0.0
        %2417 = vmatpush1.msra.mxu0 0.0
        %2418 = vmatprep.subr.mxu0 0.0
        %2419 = vmatpush1.msra.mxu0 0.0
        %2420 = vmatprep.subr.mxu0 0.0
        %2421 = vmatpush1.msra.mxu0 0.0
        %2422 = vmatprep.subr.mxu0 0.0
        %2423 = vmatpush1.msra.mxu0 0.0
        %2424 = vmatprep.subr.mxu0 0.0
        %2425 = vmatpush1.msra.mxu0 0.0
        %2426 = vmatprep.subr.mxu0 0.0
        %2427 = vmatpush1.msra.mxu0 %v2060
        %2428 = vmatprep.subr.mxu0 0.0
        %2429 = vmatpush2.msra.mxu0 0.0
        %2430 = vmatprep.subr.mxu0 0.0
        %2431 = vmatpush2.msra.mxu0 0.0
        %2432 = vmatprep.subr.mxu0 0.0
        %2433 = vmatpush2.msra.mxu0 0.0
        %2434 = vmatprep.subr.mxu0 0.0
        %2435 = vmatpush2.msra.mxu0 0.0
        %2436 = vmatprep.subr.mxu0 0.0
        %2437 = vmatpush2.msra.mxu0 0.0
        %2438 = vmatprep.subr.mxu0 0.0
        %2439 = vmatpush2.msra.mxu0 0.0
        %2440 = vmatprep.subr.mxu0 0.0
        %2441 = vmatpush2.msra.mxu0 0.0
        %2442 = vmatprep.subr.mxu0 0.0
        %2443 = vmatpush2.msra.mxu0 0.0
        %2444 = vmatprep.subr.mxu0 0.0
        %2445 = vmatpush2.msra.mxu0 0.0
        %2446 = vmatprep.subr.mxu0 0.0
        %2447 = vmatpush2.msra.mxu0 0.0
        %2448 = vmatprep.subr.mxu0 0.0
        %2449 = vmatpush2.msra.mxu0 0.0
        %2450 = vmatprep.subr.mxu0 0.0
        %2451 = vmatpush2.msra.mxu0 0.0
        %2452 = vmatprep.subr.mxu0 0.0
        %2453 = vmatpush2.msra.mxu0 0.0
        %2454 = vmatprep.subr.mxu0 0.0
        %2455 = vmatpush2.msra.mxu0 0.0
        %2456 = vmatprep.subr.mxu0 0.0
        %2457 = vmatpush2.msra.mxu0 0.0
        %2458 = vmatprep.subr.mxu0 0.0
        %2459 = vmatpush2.msra.mxu0 0.0
        %2460 = vmatprep.mubr.f32.mxu0 0.0
        %2461 = vmatmul.mubr.f32.gmra.mxu0 %v2394
        %v2462 = vpop.f32.mrf.mxu0
        %v2463 = vadd.f32 0.0, %v2462
        %v2464 = vpop.f32.mrf.mxu0
        %2465 = vdwg.mxu0
        %v2467 = vsel %vm862, %v2226, 0
        %2469 = vmatprep.subr.mxu0 0.0
        %2470 = vmatpush1.msra.mxu0 0.0
        %2471 = vmatprep.subr.mxu0 0.0
        %2472 = vmatpush1.msra.mxu0 0.0
        %2473 = vmatprep.subr.mxu0 0.0
        %2474 = vmatpush1.msra.mxu0 0.0
        %2475 = vmatprep.subr.mxu0 0.0
        %2476 = vmatpush1.msra.mxu0 0.0
        %2477 = vmatprep.subr.mxu0 0.0
        %2478 = vmatpush1.msra.mxu0 0.0
        %2479 = vmatprep.subr.mxu0 0.0
        %2480 = vmatpush1.msra.mxu0 0.0
        %2481 = vmatprep.subr.mxu0 0.0
        %2482 = vmatpush1.msra.mxu0 0.0
        %2483 = vmatprep.subr.mxu0 0.0
        %2484 = vmatpush1.msra.mxu0 0.0
        %2485 = vmatprep.subr.mxu0 0.0
        %2486 = vmatpush1.msra.mxu0 0.0
        %2487 = vmatprep.subr.mxu0 0.0
        %2488 = vmatpush1.msra.mxu0 0.0
        %2489 = vmatprep.subr.mxu0 0.0
        %2490 = vmatpush1.msra.mxu0 0.0
        %2491 = vmatprep.subr.mxu0 0.0
        %2492 = vmatpush1.msra.mxu0 0.0
        %2493 = vmatprep.subr.mxu0 0.0
        %2494 = vmatpush1.msra.mxu0 0.0
        %2495 = vmatprep.subr.mxu0 0.0
        %2496 = vmatpush1.msra.mxu0 0.0
        %2497 = vmatprep.subr.mxu0 0.0
        %2498 = vmatpush1.msra.mxu0 0.0
        %2499 = vmatprep.subr.mxu0 0.0
        %2500 = vmatpush1.msra.mxu0 %v2059
        %2501 = vmatprep.subr.mxu0 0.0
        %2502 = vmatpush2.msra.mxu0 0.0
        %2503 = vmatprep.subr.mxu0 0.0
        %2504 = vmatpush2.msra.mxu0 0.0
        %2505 = vmatprep.subr.mxu0 0.0
        %2506 = vmatpush2.msra.mxu0 0.0
        %2507 = vmatprep.subr.mxu0 0.0
        %2508 = vmatpush2.msra.mxu0 0.0
        %2509 = vmatprep.subr.mxu0 0.0
        %2510 = vmatpush2.msra.mxu0 0.0
        %2511 = vmatprep.subr.mxu0 0.0
        %2512 = vmatpush2.msra.mxu0 0.0
        %2513 = vmatprep.subr.mxu0 0.0
        %2514 = vmatpush2.msra.mxu0 0.0
        %2515 = vmatprep.subr.mxu0 0.0
        %2516 = vmatpush2.msra.mxu0 0.0
        %2517 = vmatprep.subr.mxu0 0.0
        %2518 = vmatpush2.msra.mxu0 0.0
        %2519 = vmatprep.subr.mxu0 0.0
        %2520 = vmatpush2.msra.mxu0 0.0
        %2521 = vmatprep.subr.mxu0 0.0
        %2522 = vmatpush2.msra.mxu0 0.0
        %2523 = vmatprep.subr.mxu0 0.0
        %2524 = vmatpush2.msra.mxu0 0.0
        %2525 = vmatprep.subr.mxu0 0.0
        %2526 = vmatpush2.msra.mxu0 0.0
        %2527 = vmatprep.subr.mxu0 0.0
        %2528 = vmatpush2.msra.mxu0 0.0
        %2529 = vmatprep.subr.mxu0 0.0
        %2530 = vmatpush2.msra.mxu0 0.0
        %2531 = vmatprep.subr.mxu0 0.0
        %2532 = vmatpush2.msra.mxu0 0.0
        %2533 = vmatprep.mubr.f32.mxu0 0.0
        %2534 = vmatmul.mubr.f32.gmra.mxu0 %v2467
        %v2535 = vpop.f32.mrf.mxu0
        %v2536 = vadd.f32 %v2463, %v2535
        %v2537 = vpop.f32.mrf.mxu0
        %2538 = vdwg.mxu0
        %2539 = vrot.lane.b32.xlu0 %v1972, 112
        %v2540 = vpop.permute.xlu0 %2539
        %2541 = vrot.lane.b32.xlu0 %v2056, 112
        %v2542 = vpop.permute.xlu0 %2541
        %v2543 = vsel %vm862, %v2540, 0
        %v2545 = vsel %vm862, %v2542, 0
        %2547 = vmatprep.subr.mxu0 0.0
        %2548 = vmatpush1.xpose.msra.mxu0 0.0
        %2549 = vmatprep.subr.mxu0 0.0
        %2550 = vmatpush1.xpose.msra.mxu0 0.0
        %2551 = vmatprep.subr.mxu0 0.0
        %2552 = vmatpush1.xpose.msra.mxu0 0.0
        %2553 = vmatprep.subr.mxu0 0.0
        %2554 = vmatpush1.xpose.msra.mxu0 0.0
        %2555 = vmatprep.subr.mxu0 0.0
        %2556 = vmatpush1.xpose.msra.mxu0 0.0
        %2557 = vmatprep.subr.mxu0 0.0
        %2558 = vmatpush1.xpose.msra.mxu0 0.0
        %2559 = vmatprep.subr.mxu0 0.0
        %2560 = vmatpush1.xpose.msra.mxu0 0.0
        %2561 = vmatprep.subr.mxu0 0.0
        %2562 = vmatpush1.xpose.msra.mxu0 0.0
        %2563 = vmatprep.subr.mxu0 0.0
        %2564 = vmatpush1.xpose.msra.mxu0 0.0
        %2565 = vmatprep.subr.mxu0 0.0
        %2566 = vmatpush1.xpose.msra.mxu0 0.0
        %2567 = vmatprep.subr.mxu0 0.0
        %2568 = vmatpush1.xpose.msra.mxu0 0.0
        %2569 = vmatprep.subr.mxu0 0.0
        %2570 = vmatpush1.xpose.msra.mxu0 0.0
        %2571 = vmatprep.subr.mxu0 0.0
        %2572 = vmatpush1.xpose.msra.mxu0 0.0
        %2573 = vmatprep.subr.mxu0 0.0
        %2574 = vmatpush1.xpose.msra.mxu0 0.0
        %2575 = vmatprep.subr.mxu0 0.0
        %2576 = vmatpush1.xpose.msra.mxu0 0.0
        %2577 = vmatprep.subr.mxu0 0.0
        %2578 = vmatpush1.xpose.msra.mxu0 %v2545
        %2579 = vmatprep.subr.mxu0 0.0
        %2580 = vmatpush2.xpose.msra.mxu0 0.0
        %2581 = vmatprep.subr.mxu0 0.0
        %2582 = vmatpush2.xpose.msra.mxu0 0.0
        %2583 = vmatprep.subr.mxu0 0.0
        %2584 = vmatpush2.xpose.msra.mxu0 0.0
        %2585 = vmatprep.subr.mxu0 0.0
        %2586 = vmatpush2.xpose.msra.mxu0 0.0
        %2587 = vmatprep.subr.mxu0 0.0
        %2588 = vmatpush2.xpose.msra.mxu0 0.0
        %2589 = vmatprep.subr.mxu0 0.0
        %2590 = vmatpush2.xpose.msra.mxu0 0.0
        %2591 = vmatprep.subr.mxu0 0.0
        %2592 = vmatpush2.xpose.msra.mxu0 0.0
        %2593 = vmatprep.subr.mxu0 0.0
        %2594 = vmatpush2.xpose.msra.mxu0 0.0
        %2595 = vmatprep.subr.mxu0 0.0
        %2596 = vmatpush2.xpose.msra.mxu0 0.0
        %2597 = vmatprep.subr.mxu0 0.0
        %2598 = vmatpush2.xpose.msra.mxu0 0.0
        %2599 = vmatprep.subr.mxu0 0.0
        %2600 = vmatpush2.xpose.msra.mxu0 0.0
        %2601 = vmatprep.subr.mxu0 0.0
        %2602 = vmatpush2.xpose.msra.mxu0 0.0
        %2603 = vmatprep.subr.mxu0 0.0
        %2604 = vmatpush2.xpose.msra.mxu0 0.0
        %2605 = vmatprep.subr.mxu0 0.0
        %2606 = vmatpush2.xpose.msra.mxu0 0.0
        %2607 = vmatprep.subr.mxu0 0.0
        %2608 = vmatpush2.xpose.msra.mxu0 0.0
        %2609 = vmatprep.subr.mxu0 0.0
        %2610 = vmatpush2.xpose.msra.mxu0 0.0
        %2611 = vmatprep.mubr.f32.mxu0 0.0
        %2612 = vmatmul.mubr.f32.gmra.mxu0 %v2543
        %v2613 = vpop.f32.mrf.mxu0
        %v2614 = vadd.f32 0.0, %v2613
        %v2615 = vpop.f32.mrf.mxu0
        %2616 = vdwg.mxu0
        %v2617 = vmul.f32 %v2614, 0.35355338
        %2618 = vrot.lane.b32.xlu0 %v1972, 80
        %v2619 = vpop.permute.xlu0 %2618
        %v2622 = vsel %vm862, %v2617, 0
        %2624 = vmatprep.subr.mxu0 0.0
        %2625 = vmatpush1.msra.mxu0 0.0
        %2626 = vmatprep.subr.mxu0 0.0
        %2627 = vmatpush1.msra.mxu0 0.0
        %2628 = vmatprep.subr.mxu0 0.0
        %2629 = vmatpush1.msra.mxu0 0.0
        %2630 = vmatprep.subr.mxu0 0.0
        %2631 = vmatpush1.msra.mxu0 0.0
        %2632 = vmatprep.subr.mxu0 0.0
        %2633 = vmatpush1.msra.mxu0 0.0
        %2634 = vmatprep.subr.mxu0 0.0
        %2635 = vmatpush1.msra.mxu0 0.0
        %2636 = vmatprep.subr.mxu0 0.0
        %2637 = vmatpush1.msra.mxu0 0.0
        %2638 = vmatprep.subr.mxu0 0.0
        %2639 = vmatpush1.msra.mxu0 0.0
        %2640 = vmatprep.subr.mxu0 0.0
        %2641 = vmatpush1.msra.mxu0 0.0
        %2642 = vmatprep.subr.mxu0 0.0
        %2643 = vmatpush1.msra.mxu0 0.0
        %2644 = vmatprep.subr.mxu0 0.0
        %2645 = vmatpush1.msra.mxu0 0.0
        %2646 = vmatprep.subr.mxu0 0.0
        %2647 = vmatpush1.msra.mxu0 0.0
        %2648 = vmatprep.subr.mxu0 0.0
        %2649 = vmatpush1.msra.mxu0 0.0
        %2650 = vmatprep.subr.mxu0 0.0
        %2651 = vmatpush1.msra.mxu0 0.0
        %2652 = vmatprep.subr.mxu0 0.0
        %2653 = vmatpush1.msra.mxu0 0.0
        %2654 = vmatprep.subr.mxu0 0.0
        %2655 = vmatpush1.msra.mxu0 %v2619
        %2656 = vmatprep.subr.mxu0 0.0
        %2657 = vmatpush2.msra.mxu0 0.0
        %2658 = vmatprep.subr.mxu0 0.0
        %2659 = vmatpush2.msra.mxu0 0.0
        %2660 = vmatprep.subr.mxu0 0.0
        %2661 = vmatpush2.msra.mxu0 0.0
        %2662 = vmatprep.subr.mxu0 0.0
        %2663 = vmatpush2.msra.mxu0 0.0
        %2664 = vmatprep.subr.mxu0 0.0
        %2665 = vmatpush2.msra.mxu0 0.0
        %2666 = vmatprep.subr.mxu0 0.0
        %2667 = vmatpush2.msra.mxu0 0.0
        %2668 = vmatprep.subr.mxu0 0.0
        %2669 = vmatpush2.msra.mxu0 0.0
        %2670 = vmatprep.subr.mxu0 0.0
        %2671 = vmatpush2.msra.mxu0 0.0
        %2672 = vmatprep.subr.mxu0 0.0
        %2673 = vmatpush2.msra.mxu0 0.0
        %2674 = vmatprep.subr.mxu0 0.0
        %2675 = vmatpush2.msra.mxu0 0.0
        %2676 = vmatprep.subr.mxu0 0.0
        %2677 = vmatpush2.msra.mxu0 0.0
        %2678 = vmatprep.subr.mxu0 0.0
        %2679 = vmatpush2.msra.mxu0 0.0
        %2680 = vmatprep.subr.mxu0 0.0
        %2681 = vmatpush2.msra.mxu0 0.0
        %2682 = vmatprep.subr.mxu0 0.0
        %2683 = vmatpush2.msra.mxu0 0.0
        %2684 = vmatprep.subr.mxu0 0.0
        %2685 = vmatpush2.msra.mxu0 0.0
        %2686 = vmatprep.subr.mxu0 0.0
        %2687 = vmatpush2.msra.mxu0 0.0
        %2688 = vmatprep.mubr.f32.mxu0 0.0
        %2689 = vmatmul.mubr.f32.gmra.mxu0 %v2622
        %v2690 = vpop.f32.mrf.mxu0
        %v2691 = vadd.f32 0.0, %v2690
        %v2692 = vpop.f32.mrf.mxu0
        %2693 = vdwg.mxu0
        %v2694 = vsel %vm862, %v2691, -inf
        %2695 = vmax.xlane.f32.xlu0 %v2694
        %v2696 = vpop.xlane.xlu0 %2695
        %v2697 = vsub.f32 %v2691, %v2696
        %v2698 = vmul.f32 %v2697, 1.442695
        %v2699 = vpow.pop %v2698
        %v2700 = vsel %vm862, %v2699, 0.0
        %2701 = vadd.xlane.f32.xlu0 %v2700
        %v2702 = vpop.xlane.xlu0 %2701
        %v2703 = vrcp.pop %v2702
        %v2704 = vmul.f32 %v2699, %v2703
        %v2706 = vsel %vm862, %v2704, 0
        %2708 = vmatprep.subr.mxu0 0.0
        %2709 = vmatpush1.msra.mxu0 0.0
        %2710 = vmatprep.subr.mxu0 0.0
        %2711 = vmatpush1.msra.mxu0 0.0
        %2712 = vmatprep.subr.mxu0 0.0
        %2713 = vmatpush1.msra.mxu0 0.0
        %2714 = vmatprep.subr.mxu0 0.0
        %2715 = vmatpush1.msra.mxu0 0.0
        %2716 = vmatprep.subr.mxu0 0.0
        %2717 = vmatpush1.msra.mxu0 0.0
        %2718 = vmatprep.subr.mxu0 0.0
        %2719 = vmatpush1.msra.mxu0 0.0
        %2720 = vmatprep.subr.mxu0 0.0
        %2721 = vmatpush1.msra.mxu0 0.0
        %2722 = vmatprep.subr.mxu0 0.0
        %2723 = vmatpush1.msra.mxu0 0.0
        %2724 = vmatprep.subr.mxu0 0.0
        %2725 = vmatpush1.msra.mxu0 0.0
        %2726 = vmatprep.subr.mxu0 0.0
        %2727 = vmatpush1.msra.mxu0 0.0
        %2728 = vmatprep.subr.mxu0 0.0
        %2729 = vmatpush1.msra.mxu0 0.0
        %2730 = vmatprep.subr.mxu0 0.0
        %2731 = vmatpush1.msra.mxu0 0.0
        %2732 = vmatprep.subr.mxu0 0.0
        %2733 = vmatpush1.msra.mxu0 0.0
        %2734 = vmatprep.subr.mxu0 0.0
        %2735 = vmatpush1.msra.mxu0 0.0
        %2736 = vmatprep.subr.mxu0 0.0
        %2737 = vmatpush1.msra.mxu0 0.0
        %2738 = vmatprep.subr.mxu0 0.0
        %2739 = vmatpush1.msra.mxu0 %v2061
        %2740 = vmatprep.subr.mxu0 0.0
        %2741 = vmatpush2.msra.mxu0 0.0
        %2742 = vmatprep.subr.mxu0 0.0
        %2743 = vmatpush2.msra.mxu0 0.0
        %2744 = vmatprep.subr.mxu0 0.0
        %2745 = vmatpush2.msra.mxu0 0.0
        %2746 = vmatprep.subr.mxu0 0.0
        %2747 = vmatpush2.msra.mxu0 0.0
        %2748 = vmatprep.subr.mxu0 0.0
        %2749 = vmatpush2.msra.mxu0 0.0
        %2750 = vmatprep.subr.mxu0 0.0
        %2751 = vmatpush2.msra.mxu0 0.0
        %2752 = vmatprep.subr.mxu0 0.0
        %2753 = vmatpush2.msra.mxu0 0.0
        %2754 = vmatprep.subr.mxu0 0.0
        %2755 = vmatpush2.msra.mxu0 0.0
        %2756 = vmatprep.subr.mxu0 0.0
        %2757 = vmatpush2.msra.mxu0 0.0
        %2758 = vmatprep.subr.mxu0 0.0
        %2759 = vmatpush2.msra.mxu0 0.0
        %2760 = vmatprep.subr.mxu0 0.0
        %2761 = vmatpush2.msra.mxu0 0.0
        %2762 = vmatprep.subr.mxu0 0.0
        %2763 = vmatpush2.msra.mxu0 0.0
        %2764 = vmatprep.subr.mxu0 0.0
        %2765 = vmatpush2.msra.mxu0 0.0
        %2766 = vmatprep.subr.mxu0 0.0
        %2767 = vmatpush2.msra.mxu0 0.0
        %2768 = vmatprep.subr.mxu0 0.0
        %2769 = vmatpush2.msra.mxu0 0.0
        %2770 = vmatprep.subr.mxu0 0.0
        %2771 = vmatpush2.msra.mxu0 0.0
        %2772 = vmatprep.mubr.f32.mxu0 0.0
        %2773 = vmatmul.mubr.f32.gmra.mxu0 %v2706
        %v2774 = vpop.f32.mrf.mxu0
        %v2775 = vadd.f32 0.0, %v2774
        %v2776 = vpop.f32.mrf.mxu0
        %2777 = vdwg.mxu0
        %v2778 = vadd.f32 %v2536, %v2775
        %2779 = vrot.lane.b32.xlu0 %v1972, 104
        %v2780 = vpop.permute.xlu0 %2779
        %2781 = vrot.lane.b32.xlu0 %v2056, 104
        %v2782 = vpop.permute.xlu0 %2781
        %v2783 = vsel %vm862, %v2780, 0
        %v2785 = vsel %vm862, %v2782, 0
        %2787 = vmatprep.subr.mxu0 0.0
        %2788 = vmatpush1.xpose.msra.mxu0 0.0
        %2789 = vmatprep.subr.mxu0 0.0
        %2790 = vmatpush1.xpose.msra.mxu0 0.0
        %2791 = vmatprep.subr.mxu0 0.0
        %2792 = vmatpush1.xpose.msra.mxu0 0.0
        %2793 = vmatprep.subr.mxu0 0.0
        %2794 = vmatpush1.xpose.msra.mxu0 0.0
        %2795 = vmatprep.subr.mxu0 0.0
        %2796 = vmatpush1.xpose.msra.mxu0 0.0
        %2797 = vmatprep.subr.mxu0 0.0
        %2798 = vmatpush1.xpose.msra.mxu0 0.0
        %2799 = vmatprep.subr.mxu0 0.0
        %2800 = vmatpush1.xpose.msra.mxu0 0.0
        %2801 = vmatprep.subr.mxu0 0.0
        %2802 = vmatpush1.xpose.msra.mxu0 0.0
        %2803 = vmatprep.subr.mxu0 0.0
        %2804 = vmatpush1.xpose.msra.mxu0 0.0
        %2805 = vmatprep.subr.mxu0 0.0
        %2806 = vmatpush1.xpose.msra.mxu0 0.0
        %2807 = vmatprep.subr.mxu0 0.0
        %2808 = vmatpush1.xpose.msra.mxu0 0.0
        %2809 = vmatprep.subr.mxu0 0.0
        %2810 = vmatpush1.xpose.msra.mxu0 0.0
        %2811 = vmatprep.subr.mxu0 0.0
        %2812 = vmatpush1.xpose.msra.mxu0 0.0
        %2813 = vmatprep.subr.mxu0 0.0
        %2814 = vmatpush1.xpose.msra.mxu0 0.0
        %2815 = vmatprep.subr.mxu0 0.0
        %2816 = vmatpush1.xpose.msra.mxu0 0.0
        %2817 = vmatprep.subr.mxu0 0.0
        %2818 = vmatpush1.xpose.msra.mxu0 %v2785
        %2819 = vmatprep.subr.mxu0 0.0
        %2820 = vmatpush2.xpose.msra.mxu0 0.0
        %2821 = vmatprep.subr.mxu0 0.0
        %2822 = vmatpush2.xpose.msra.mxu0 0.0
        %2823 = vmatprep.subr.mxu0 0.0
        %2824 = vmatpush2.xpose.msra.mxu0 0.0
        %2825 = vmatprep.subr.mxu0 0.0
        %2826 = vmatpush2.xpose.msra.mxu0 0.0
        %2827 = vmatprep.subr.mxu0 0.0
        %2828 = vmatpush2.xpose.msra.mxu0 0.0
        %2829 = vmatprep.subr.mxu0 0.0
        %2830 = vmatpush2.xpose.msra.mxu0 0.0
        %2831 = vmatprep.subr.mxu0 0.0
        %2832 = vmatpush2.xpose.msra.mxu0 0.0
        %2833 = vmatprep.subr.mxu0 0.0
        %2834 = vmatpush2.xpose.msra.mxu0 0.0
        %2835 = vmatprep.subr.mxu0 0.0
        %2836 = vmatpush2.xpose.msra.mxu0 0.0
        %2837 = vmatprep.subr.mxu0 0.0
        %2838 = vmatpush2.xpose.msra.mxu0 0.0
        %2839 = vmatprep.subr.mxu0 0.0
        %2840 = vmatpush2.xpose.msra.mxu0 0.0
        %2841 = vmatprep.subr.mxu0 0.0
        %2842 = vmatpush2.xpose.msra.mxu0 0.0
        %2843 = vmatprep.subr.mxu0 0.0
        %2844 = vmatpush2.xpose.msra.mxu0 0.0
        %2845 = vmatprep.subr.mxu0 0.0
        %2846 = vmatpush2.xpose.msra.mxu0 0.0
        %2847 = vmatprep.subr.mxu0 0.0
        %2848 = vmatpush2.xpose.msra.mxu0 0.0
        %2849 = vmatprep.subr.mxu0 0.0
        %2850 = vmatpush2.xpose.msra.mxu0 0.0
        %2851 = vmatprep.mubr.f32.mxu0 0.0
        %2852 = vmatmul.mubr.f32.gmra.mxu0 %v2783
        %v2853 = vpop.f32.mrf.mxu0
        %v2854 = vadd.f32 0.0, %v2853
        %v2855 = vpop.f32.mrf.mxu0
        %2856 = vdwg.mxu0
        %v2857 = vmul.f32 %v2854, 0.35355338
        %2858 = vrot.lane.b32.xlu0 %v1972, 72
        %v2859 = vpop.permute.xlu0 %2858
        %v2862 = vsel %vm862, %v2857, 0
        %2864 = vmatprep.subr.mxu0 0.0
        %2865 = vmatpush1.msra.mxu0 0.0
        %2866 = vmatprep.subr.mxu0 0.0
        %2867 = vmatpush1.msra.mxu0 0.0
        %2868 = vmatprep.subr.mxu0 0.0
        %2869 = vmatpush1.msra.mxu0 0.0
        %2870 = vmatprep.subr.mxu0 0.0
        %2871 = vmatpush1.msra.mxu0 0.0
        %2872 = vmatprep.subr.mxu0 0.0
        %2873 = vmatpush1.msra.mxu0 0.0
        %2874 = vmatprep.subr.mxu0 0.0
        %2875 = vmatpush1.msra.mxu0 0.0
        %2876 = vmatprep.subr.mxu0 0.0
        %2877 = vmatpush1.msra.mxu0 0.0
        %2878 = vmatprep.subr.mxu0 0.0
        %2879 = vmatpush1.msra.mxu0 0.0
        %2880 = vmatprep.subr.mxu0 0.0
        %2881 = vmatpush1.msra.mxu0 0.0
        %2882 = vmatprep.subr.mxu0 0.0
        %2883 = vmatpush1.msra.mxu0 0.0
        %2884 = vmatprep.subr.mxu0 0.0
        %2885 = vmatpush1.msra.mxu0 0.0
        %2886 = vmatprep.subr.mxu0 0.0
        %2887 = vmatpush1.msra.mxu0 0.0
        %2888 = vmatprep.subr.mxu0 0.0
        %2889 = vmatpush1.msra.mxu0 0.0
        %2890 = vmatprep.subr.mxu0 0.0
        %2891 = vmatpush1.msra.mxu0 0.0
        %2892 = vmatprep.subr.mxu0 0.0
        %2893 = vmatpush1.msra.mxu0 0.0
        %2894 = vmatprep.subr.mxu0 0.0
        %2895 = vmatpush1.msra.mxu0 %v2859
        %2896 = vmatprep.subr.mxu0 0.0
        %2897 = vmatpush2.msra.mxu0 0.0
        %2898 = vmatprep.subr.mxu0 0.0
        %2899 = vmatpush2.msra.mxu0 0.0
        %2900 = vmatprep.subr.mxu0 0.0
        %2901 = vmatpush2.msra.mxu0 0.0
        %2902 = vmatprep.subr.mxu0 0.0
        %2903 = vmatpush2.msra.mxu0 0.0
        %2904 = vmatprep.subr.mxu0 0.0
        %2905 = vmatpush2.msra.mxu0 0.0
        %2906 = vmatprep.subr.mxu0 0.0
        %2907 = vmatpush2.msra.mxu0 0.0
        %2908 = vmatprep.subr.mxu0 0.0
        %2909 = vmatpush2.msra.mxu0 0.0
        %2910 = vmatprep.subr.mxu0 0.0
        %2911 = vmatpush2.msra.mxu0 0.0
        %2912 = vmatprep.subr.mxu0 0.0
        %2913 = vmatpush2.msra.mxu0 0.0
        %2914 = vmatprep.subr.mxu0 0.0
        %2915 = vmatpush2.msra.mxu0 0.0
        %2916 = vmatprep.subr.mxu0 0.0
        %2917 = vmatpush2.msra.mxu0 0.0
        %2918 = vmatprep.subr.mxu0 0.0
        %2919 = vmatpush2.msra.mxu0 0.0
        %2920 = vmatprep.subr.mxu0 0.0
        %2921 = vmatpush2.msra.mxu0 0.0
        %2922 = vmatprep.subr.mxu0 0.0
        %2923 = vmatpush2.msra.mxu0 0.0
        %2924 = vmatprep.subr.mxu0 0.0
        %2925 = vmatpush2.msra.mxu0 0.0
        %2926 = vmatprep.subr.mxu0 0.0
        %2927 = vmatpush2.msra.mxu0 0.0
        %2928 = vmatprep.mubr.f32.mxu0 0.0
        %2929 = vmatmul.mubr.f32.gmra.mxu0 %v2862
        %v2930 = vpop.f32.mrf.mxu0
        %v2931 = vadd.f32 0.0, %v2930
        %v2932 = vpop.f32.mrf.mxu0
        %2933 = vdwg.mxu0
        %v2934 = vsel %vm862, %v2931, -inf
        %2935 = vmax.xlane.f32.xlu0 %v2934
        %v2936 = vpop.xlane.xlu0 %2935
        %v2937 = vsub.f32 %v2931, %v2936
        %v2938 = vmul.f32 %v2937, 1.442695
        %v2939 = vpow.pop %v2938
        %v2940 = vsel %vm862, %v2939, 0.0
        %2941 = vadd.xlane.f32.xlu0 %v2940
        %v2942 = vpop.xlane.xlu0 %2941
        %v2943 = vrcp.pop %v2942
        %v2944 = vmul.f32 %v2939, %v2943
        %v2946 = vsel %vm862, %v2944, 0
        %2948 = vmatprep.subr.mxu0 0.0
        %2949 = vmatpush1.msra.mxu0 0.0
        %2950 = vmatprep.subr.mxu0 0.0
        %2951 = vmatpush1.msra.mxu0 0.0
        %2952 = vmatprep.subr.mxu0 0.0
        %2953 = vmatpush1.msra.mxu0 0.0
        %2954 = vmatprep.subr.mxu0 0.0
        %2955 = vmatpush1.msra.mxu0 0.0
        %2956 = vmatprep.subr.mxu0 0.0
        %2957 = vmatpush1.msra.mxu0 0.0
        %2958 = vmatprep.subr.mxu0 0.0
        %2959 = vmatpush1.msra.mxu0 0.0
        %2960 = vmatprep.subr.mxu0 0.0
        %2961 = vmatpush1.msra.mxu0 0.0
        %2962 = vmatprep.subr.mxu0 0.0
        %2963 = vmatpush1.msra.mxu0 0.0
        %2964 = vmatprep.subr.mxu0 0.0
        %2965 = vmatpush1.msra.mxu0 0.0
        %2966 = vmatprep.subr.mxu0 0.0
        %2967 = vmatpush1.msra.mxu0 0.0
        %2968 = vmatprep.subr.mxu0 0.0
        %2969 = vmatpush1.msra.mxu0 0.0
        %2970 = vmatprep.subr.mxu0 0.0
        %2971 = vmatpush1.msra.mxu0 0.0
        %2972 = vmatprep.subr.mxu0 0.0
        %2973 = vmatpush1.msra.mxu0 0.0
        %2974 = vmatprep.subr.mxu0 0.0
        %2975 = vmatpush1.msra.mxu0 0.0
        %2976 = vmatprep.subr.mxu0 0.0
        %2977 = vmatpush1.msra.mxu0 0.0
        %2978 = vmatprep.subr.mxu0 0.0
        %2979 = vmatpush1.msra.mxu0 %v2062
        %2980 = vmatprep.subr.mxu0 0.0
        %2981 = vmatpush2.msra.mxu0 0.0
        %2982 = vmatprep.subr.mxu0 0.0
        %2983 = vmatpush2.msra.mxu0 0.0
        %2984 = vmatprep.subr.mxu0 0.0
        %2985 = vmatpush2.msra.mxu0 0.0
        %2986 = vmatprep.subr.mxu0 0.0
        %2987 = vmatpush2.msra.mxu0 0.0
        %2988 = vmatprep.subr.mxu0 0.0
        %2989 = vmatpush2.msra.mxu0 0.0
        %2990 = vmatprep.subr.mxu0 0.0
        %2991 = vmatpush2.msra.mxu0 0.0
        %2992 = vmatprep.subr.mxu0 0.0
        %2993 = vmatpush2.msra.mxu0 0.0
        %2994 = vmatprep.subr.mxu0 0.0
        %2995 = vmatpush2.msra.mxu0 0.0
        %2996 = vmatprep.subr.mxu0 0.0
        %2997 = vmatpush2.msra.mxu0 0.0
        %2998 = vmatprep.subr.mxu0 0.0
        %2999 = vmatpush2.msra.mxu0 0.0
        %3000 = vmatprep.subr.mxu0 0.0
        %3001 = vmatpush2.msra.mxu0 0.0
        %3002 = vmatprep.subr.mxu0 0.0
        %3003 = vmatpush2.msra.mxu0 0.0
        %3004 = vmatprep.subr.mxu0 0.0
        %3005 = vmatpush2.msra.mxu0 0.0
        %3006 = vmatprep.subr.mxu0 0.0
        %3007 = vmatpush2.msra.mxu0 0.0
        %3008 = vmatprep.subr.mxu0 0.0
        %3009 = vmatpush2.msra.mxu0 0.0
        %3010 = vmatprep.subr.mxu0 0.0
        %3011 = vmatpush2.msra.mxu0 0.0
        %3012 = vmatprep.mubr.f32.mxu0 0.0
        %3013 = vmatmul.mubr.f32.gmra.mxu0 %v2946
        %v3014 = vpop.f32.mrf.mxu0
        %v3015 = vadd.f32 0.0, %v3014
        %v3016 = vpop.f32.mrf.mxu0
        %3017 = vdwg.mxu0
        %v3018 = vadd.f32 %v2778, %v3015
        %v3019 = vld [vmem:[%s14] sm:$0x1]
        %v3021 = vlaneseq
        %v3022 = vshrl.u32 %v3021, 7
        %v3023 = vsub.s32 0, %v3022
        %v3024 = vrot.slane %v3019, %v3023
        %v3026 = vadd.f32 %v3018, %v3024
        %s3027 = scalar_lea.vmem %s15, 2
        %v3028 = vld [vmem:[%s3027] sm:$0x1]
        %s3029 = scalar_lea.vmem %s16, 2
        %v3030 = vld [vmem:[%s3029] sm:$0x1]
        %v3031 = vsel %vm700, %v1890, 0.0
        %3032 = vadd.xlane.f32.xlu0 %v3031
        %v3033 = vpop.xlane.xlu0 %3032
        %v3034 = vmul.f32 %v3033, %v1832
        %v3035 = vsub.f32 %v1890, %v3034
        %v3036 = vmul.f32 %v3035, %v3035
        %v3037 = vsel %vm700, %v3036, 0.0
        %3038 = vadd.xlane.f32.xlu0 %v3037
        %v3039 = vpop.xlane.xlu0 %3038
        %v3040 = vmul.f32 %v3039, %v1832
        %v3041 = vadd.f32 %v3040, 1e-05
        %v3042 = vrsqrt.pop %v3041
        %v3043 = vmul.f32 %v3035, %v3042
        %v3045 = vlaneseq
        %v3046 = vshrl.u32 %v3045, 7
        %v3047 = vsub.s32 0, %v3046
        %v3048 = vrot.slane %v3028, %v3047
        %v3050 = vmul.f32 %v3043, %v3048
        %v3052 = vlaneseq
        %v3053 = vshrl.u32 %v3052, 7
        %v3054 = vsub.s32 0, %v3053
        %v3055 = vrot.slane %v3030, %v3054
        %v3057 = vadd.f32 %v3050, %v3055
        %v3058 = vadd.f32 %v1890, %v3057
        %s3059 = scalar_lea.vmem %s15, 3
        %v3060 = vld [vmem:[%s3059] sm:$0x1]
        %s3061 = scalar_lea.vmem %s16, 3
        %v3062 = vld [vmem:[%s3061] sm:$0x1]
        %v3063 = vsel %vm700, %v3026, 0.0
        %3064 = vadd.xlane.f32.xlu0 %v3063
        %v3065 = vpop.xlane.xlu0 %3064
        %v3066 = vmul.f32 %v3065, %v1832
        %v3067 = vsub.f32 %v3026, %v3066
        %v3068 = vmul.f32 %v3067, %v3067
        %v3069 = vsel %vm700, %v3068, 0.0
        %3070 = vadd.xlane.f32.xlu0 %v3069
        %v3071 = vpop.xlane.xlu0 %3070
        %v3072 = vmul.f32 %v3071, %v1832
        %v3073 = vadd.f32 %v3072, 1e-05
        %v3074 = vrsqrt.pop %v3073
        %v3075 = vmul.f32 %v3067, %v3074
        %v3077 = vlaneseq
        %v3078 = vshrl.u32 %v3077, 7
        %v3079 = vsub.s32 0, %v3078
        %v3080 = vrot.slane %v3060, %v3079
        %v3082 = vmul.f32 %v3075, %v3080
        %v3084 = vlaneseq
        %v3085 = vshrl.u32 %v3084, 7
        %v3086 = vsub.s32 0, %v3085
        %v3087 = vrot.slane %v3062, %v3086
        %v3089 = vadd.f32 %v3082, %v3087
        %v3090 = vadd.f32 %v3026, %v3089
        %v3091 = vadd.f32 %v3058, %v3090
        %v3092 = vld [vmem:[%s17] sm:$0xff]
        %v3093 = vld [vmem:[%s17 + $0x8] sm:$0xff]
        %v3094 = vld [vmem:[%s17 + $0x10] sm:$0xff]
        %v3095 = vld [vmem:[%s17 + $0x18] sm:$0xff]
        %v3096 = vld [vmem:[%s18] sm:$0x1]
        %v3098 = vlaneseq
        %v3099 = vshrl.u32 %v3098, 7
        %v3100 = vsub.s32 0, %v3099
        %v3101 = vrot.slane %v3096, %v3100
        %v3104 = vsel %vm700, %v3091, 0
        %3106 = vmatprep.subr.mxu0 0.0
        %3107 = vmatpush1.msra.mxu0 0.0
        %3108 = vmatprep.subr.mxu0 0.0
        %3109 = vmatpush1.msra.mxu0 0.0
        %3110 = vmatprep.subr.mxu0 0.0
        %3111 = vmatpush1.msra.mxu0 0.0
        %3112 = vmatprep.subr.mxu0 0.0
        %3113 = vmatpush1.msra.mxu0 0.0
        %3114 = vmatprep.subr.mxu0 0.0
        %3115 = vmatpush1.msra.mxu0 0.0
        %3116 = vmatprep.subr.mxu0 0.0
        %3117 = vmatpush1.msra.mxu0 0.0
        %3118 = vmatprep.subr.mxu0 0.0
        %3119 = vmatpush1.msra.mxu0 0.0
        %3120 = vmatprep.subr.mxu0 0.0
        %3121 = vmatpush1.msra.mxu0 0.0
        %3122 = vmatprep.subr.mxu0 0.0
        %3123 = vmatpush1.msra.mxu0 0.0
        %3124 = vmatprep.subr.mxu0 0.0
        %3125 = vmatpush1.msra.mxu0 0.0
        %3126 = vmatprep.subr.mxu0 0.0
        %3127 = vmatpush1.msra.mxu0 0.0
        %3128 = vmatprep.subr.mxu0 0.0
        %3129 = vmatpush1.msra.mxu0 0.0
        %3130 = vmatprep.subr.mxu0 0.0
        %3131 = vmatpush1.msra.mxu0 %v3095
        %3132 = vmatprep.subr.mxu0 0.0
        %3133 = vmatpush1.msra.mxu0 %v3094
        %3134 = vmatprep.subr.mxu0 0.0
        %3135 = vmatpush1.msra.mxu0 %v3093
        %3136 = vmatprep.subr.mxu0 0.0
        %3137 = vmatpush1.msra.mxu0 %v3092
        %3138 = vmatprep.subr.mxu0 0.0
        %3139 = vmatpush2.msra.mxu0 0.0
        %3140 = vmatprep.subr.mxu0 0.0
        %3141 = vmatpush2.msra.mxu0 0.0
        %3142 = vmatprep.subr.mxu0 0.0
        %3143 = vmatpush2.msra.mxu0 0.0
        %3144 = vmatprep.subr.mxu0 0.0
        %3145 = vmatpush2.msra.mxu0 0.0
        %3146 = vmatprep.subr.mxu0 0.0
        %3147 = vmatpush2.msra.mxu0 0.0
        %3148 = vmatprep.subr.mxu0 0.0
        %3149 = vmatpush2.msra.mxu0 0.0
        %3150 = vmatprep.subr.mxu0 0.0
        %3151 = vmatpush2.msra.mxu0 0.0
        %3152 = vmatprep.subr.mxu0 0.0
        %3153 = vmatpush2.msra.mxu0 0.0
        %3154 = vmatprep.subr.mxu0 0.0
        %3155 = vmatpush2.msra.mxu0 0.0
        %3156 = vmatprep.subr.mxu0 0.0
        %3157 = vmatpush2.msra.mxu0 0.0
        %3158 = vmatprep.subr.mxu0 0.0
        %3159 = vmatpush2.msra.mxu0 0.0
        %3160 = vmatprep.subr.mxu0 0.0
        %3161 = vmatpush2.msra.mxu0 0.0
        %3162 = vmatprep.subr.mxu0 0.0
        %3163 = vmatpush2.msra.mxu0 0.0
        %3164 = vmatprep.subr.mxu0 0.0
        %3165 = vmatpush2.msra.mxu0 0.0
        %3166 = vmatprep.subr.mxu0 0.0
        %3167 = vmatpush2.msra.mxu0 0.0
        %3168 = vmatprep.subr.mxu0 0.0
        %3169 = vmatpush2.msra.mxu0 0.0
        %3170 = vmatprep.mubr.f32.mxu0 0.0
        %3171 = vmatmul.mubr.f32.gmra.mxu0 %v3104
        %v3172 = vpop.f32.mrf.mxu0
        %v3173 = vadd.f32 %v3101, %v3172
        %v3174 = vpop.f32.mrf.mxu0
        %3175 = vdwg.mxu0
        %v3176 = vmax.f32 %v3173, 0.0
        %v3177 = vld [vmem:[%s19] sm:$0xff]
        %v3178 = vld [vmem:[%s19 + $0x8] sm:$0xff]
        %v3179 = vld [vmem:[%s19 + $0x10] sm:$0xff]
        %v3180 = vld [vmem:[%s19 + $0x18] sm:$0xff]
        %v3181 = vld [vmem:[%s19 + $0x20] sm:$0xff]
        %v3182 = vld [vmem:[%s19 + $0x28] sm:$0xff]
        %v3183 = vld [vmem:[%s19 + $0x30] sm:$0xff]
        %v3184 = vld [vmem:[%s19 + $0x38] sm:$0xff]
        %v3185 = vld [vmem:[%s20] sm:$0x1]
        %v3187 = vlaneseq
        %v3188 = vshrl.u32 %v3187, 7
        %v3189 = vsub.s32 0, %v3188
        %v3190 = vrot.slane %v3185, %v3189
        %vm3192 = vcmask 523264
        %v3194 = vsel %vm3192, %v3176, 0
        %3196 = vmatprep.subr.mxu0 0.0
        %3197 = vmatpush1.msra.mxu0 0.0
        %3198 = vmatprep.subr.mxu0 0.0
        %3199 = vmatpush1.msra.mxu0 0.0
        %3200 = vmatprep.subr.mxu0 0.0
        %3201 = vmatpush1.msra.mxu0 0.0
        %3202 = vmatprep.subr.mxu0 0.0
        %3203 = vmatpush1.msra.mxu0 0.0
        %3204 = vmatprep.subr.mxu0 0.0
        %3205 = vmatpush1.msra.mxu0 0.0
        %3206 = vmatprep.subr.mxu0 0.0
        %3207 = vmatpush1.msra.mxu0 0.0
        %3208 = vmatprep.subr.mxu0 0.0
        %3209 = vmatpush1.msra.mxu0 0.0
        %3210 = vmatprep.subr.mxu0 0.0
        %3211 = vmatpush1.msra.mxu0 0.0
        %3212 = vmatprep.subr.mxu0 0.0
        %3213 = vmatpush1.msra.mxu0 %v3184
        %3214 = vmatprep.subr.mxu0 0.0
        %3215 = vmatpush1.msra.mxu0 %v3183
        %3216 = vmatprep.subr.mxu0 0.0
        %3217 = vmatpush1.msra.mxu0 %v3182
        %3218 = vmatprep.subr.mxu0 0.0
        %3219 = vmatpush1.msra.mxu0 %v3181
        %3220 = vmatprep.subr.mxu0 0.0
        %3221 = vmatpush1.msra.mxu0 %v3180
        %3222 = vmatprep.subr.mxu0 0.0
        %3223 = vmatpush1.msra.mxu0 %v3179
        %3224 = vmatprep.subr.mxu0 0.0
        %3225 = vmatpush1.msra.mxu0 %v3178
        %3226 = vmatprep.subr.mxu0 0.0
        %3227 = vmatpush1.msra.mxu0 %v3177
        %3228 = vmatprep.subr.mxu0 0.0
        %3229 = vmatpush2.msra.mxu0 0.0
        %3230 = vmatprep.subr.mxu0 0.0
        %3231 = vmatpush2.msra.mxu0 0.0
        %3232 = vmatprep.subr.mxu0 0.0
        %3233 = vmatpush2.msra.mxu0 0.0
        %3234 = vmatprep.subr.mxu0 0.0
        %3235 = vmatpush2.msra.mxu0 0.0
        %3236 = vmatprep.subr.mxu0 0.0
        %3237 = vmatpush2.msra.mxu0 0.0
        %3238 = vmatprep.subr.mxu0 0.0
        %3239 = vmatpush2.msra.mxu0 0.0
        %3240 = vmatprep.subr.mxu0 0.0
        %3241 = vmatpush2.msra.mxu0 0.0
        %3242 = vmatprep.subr.mxu0 0.0
        %3243 = vmatpush2.msra.mxu0 0.0
        %3244 = vmatprep.subr.mxu0 0.0
        %3245 = vmatpush2.msra.mxu0 0.0
        %3246 = vmatprep.subr.mxu0 0.0
        %3247 = vmatpush2.msra.mxu0 0.0
        %3248 = vmatprep.subr.mxu0 0.0
        %3249 = vmatpush2.msra.mxu0 0.0
        %3250 = vmatprep.subr.mxu0 0.0
        %3251 = vmatpush2.msra.mxu0 0.0
        %3252 = vmatprep.subr.mxu0 0.0
        %3253 = vmatpush2.msra.mxu0 0.0
        %3254 = vmatprep.subr.mxu0 0.0
        %3255 = vmatpush2.msra.mxu0 0.0
        %3256 = vmatprep.subr.mxu0 0.0
        %3257 = vmatpush2.msra.mxu0 0.0
        %3258 = vmatprep.subr.mxu0 0.0
        %3259 = vmatpush2.msra.mxu0 0.0
        %3260 = vmatprep.mubr.f32.mxu0 0.0
        %3261 = vmatmul.mubr.f32.gmra.mxu0 %v3194
        %v3262 = vpop.f32.mrf.mxu0
        %v3263 = vadd.f32 %v3190, %v3262
        %v3264 = vpop.f32.mrf.mxu0
        %3265 = vdwg.mxu0
        %s3266 = scalar_lea.vmem %s15, 4
        %v3267 = vld [vmem:[%s3266] sm:$0x1]
        %s3268 = scalar_lea.vmem %s16, 4
        %v3269 = vld [vmem:[%s3268] sm:$0x1]
        %v3270 = vsel %vm700, %v3091, 0.0
        %3271 = vadd.xlane.f32.xlu0 %v3270
        %v3272 = vpop.xlane.xlu0 %3271
        %v3273 = vmul.f32 %v3272, %v1832
        %v3274 = vsub.f32 %v3091, %v3273
        %v3275 = vmul.f32 %v3274, %v3274
        %v3276 = vsel %vm700, %v3275, 0.0
        %3277 = vadd.xlane.f32.xlu0 %v3276
        %v3278 = vpop.xlane.xlu0 %3277
        %v3279 = vmul.f32 %v3278, %v1832
        %v3280 = vadd.f32 %v3279, 1e-05
        %v3281 = vrsqrt.pop %v3280
        %v3282 = vmul.f32 %v3274, %v3281
        %v3284 = vlaneseq
        %v3285 = vshrl.u32 %v3284, 7
        %v3286 = vsub.s32 0, %v3285
        %v3287 = vrot.slane %v3267, %v3286
        %v3289 = vmul.f32 %v3282, %v3287
        %v3291 = vlaneseq
        %v3292 = vshrl.u32 %v3291, 7
        %v3293 = vsub.s32 0, %v3292
        %v3294 = vrot.slane %v3269, %v3293
        %v3296 = vadd.f32 %v3289, %v3294
        %v3297 = vadd.f32 %v3091, %v3296
        %s3298 = scalar_lea.vmem %s15, 5
        %v3299 = vld [vmem:[%s3298] sm:$0x1]
        %s3300 = scalar_lea.vmem %s16, 5
        %v3301 = vld [vmem:[%s3300] sm:$0x1]
        %v3302 = vsel %vm700, %v3263, 0.0
        %3303 = vadd.xlane.f32.xlu0 %v3302
        %v3304 = vpop.xlane.xlu0 %3303
        %v3305 = vmul.f32 %v3304, %v1832
        %v3306 = vsub.f32 %v3263, %v3305
        %v3307 = vmul.f32 %v3306, %v3306
        %v3308 = vsel %vm700, %v3307, 0.0
        %3309 = vadd.xlane.f32.xlu0 %v3308
        %v3310 = vpop.xlane.xlu0 %3309
        %v3311 = vmul.f32 %v3310, %v1832
        %v3312 = vadd.f32 %v3311, 1e-05
        %v3313 = vrsqrt.pop %v3312
        %v3314 = vmul.f32 %v3306, %v3313
        %v3316 = vlaneseq
        %v3317 = vshrl.u32 %v3316, 7
        %v3318 = vsub.s32 0, %v3317
        %v3319 = vrot.slane %v3299, %v3318
        %v3321 = vmul.f32 %v3314, %v3319
        %v3323 = vlaneseq
        %v3324 = vshrl.u32 %v3323, 7
        %v3325 = vsub.s32 0, %v3324
        %v3326 = vrot.slane %v3301, %v3325
        %v3328 = vadd.f32 %v3321, %v3326
        %v3329 = vadd.f32 %v3263, %v3328
        %v3330 = vadd.f32 %v3297, %v3329
        %3331 = vst.msk [vmem:[%s673] sm:$0xff] %vm700, %v3330
        %s3332 = sand.u32 %s499, 1
        %s3333 = scalar_lea.sflag [#allocation3], %s3332
        %s3334 = sand.u32 %s499, 1
        %s3335 = smul.addr %s3334, 8
        %s3336 = scalar_lea.vmem [#allocation2], %s3335
        // Predicated region
        $region105: #{decoder_block_pallas.1} parent=103 // pred_check
          %p3337 = pneg %p509
        $region106: #{decoder_block_pallas.1} parent=103 // pred_check_branch
          %3339 = sbr.rel (%p3337) target = $region108
        $region107: #{decoder_block_pallas.1} parent=103 // pred_region
          %s3341 = ssub.s32 128, 128
          %3342 = vsyncadd %s3333, %s3341
          %s3343 = smul.addr %s35, 128
          %s3344 = scalar_lea.hbm %s21, %s3343
          %s3346 = sshll.u32 %s3336, 4
          %s3347 = int_to_ptr.vmem [resolvable:$true] %s3346
          %3349 = dma.vmem_to_hbm [thread:$0]  %s3347, 128, %s3344, %s3333
        $region108: #{decoder_block_pallas.1} parent=103 // pred_fallthru
          _
      $region104: #{decoder_block_pallas.1} parent=5 // pred_fallthru
        _
      %p3350 = scmp.le.s32.totalorder 2, %s30
      // Predicated region
      $region109: #{decoder_block_pallas.1} parent=5 // pred_check
        %p3351 = pneg %p3350
      $region110: #{decoder_block_pallas.1} parent=5 // pred_check_branch
        %3353 = sbr.rel (%p3351) target = $region112
      $region111: #{decoder_block_pallas.1} parent=5 // pred_region
        %s3354 = ssub.s32 %s30, 2
        // Predicated region
        $region113: #{decoder_block_pallas.1} parent=111 // pred_check
          %p3355 = pneg %p515
        $region114: #{decoder_block_pallas.1} parent=111 // pred_check_branch
          %3357 = sbr.rel (%p3355) target = $region116
        $region115: #{decoder_block_pallas.1} parent=111 // pred_region
          %s3358 = sand.u32 %s500, 1
          %s3359 = scalar_lea.sflag [#allocation3], %s3358
          %s3360 = sand.u32 %s500, 1
          %s3361 = smul.addr %s3360, 8
          %s3362 = scalar_lea.vmem [#allocation2], %s3361
          %3363 = dma.done %s3359, 128
        $region116: #{decoder_block_pallas.1} parent=111 // pred_fallthru
          _
      $region112: #{decoder_block_pallas.1} parent=5 // pred_fallthru
        _
    $region6: #{decoder_block_pallas.1} parent=1 // loop_footer
      %s34 = sadd.s32 1, %s30
    $region7: #{decoder_block_pallas.1} parent=1 // loop_footer_branch
      %29 = sbr.rel target = $region3
    $region8: #{decoder_block_pallas.1} parent=1 // loop_exit
      _
    %3364 = vsyncpa [#allocation3], 1
    %s3365 = scalar_lea.sflag [#allocation3], 1
    %3366 = vsyncpa %s3365, 1

</llo_original>
